<compile_context>
chip_gen: v7x
topology: tpu7x:2x2x1
jax: 0.10.0
libtpu: 0.0.40
codegen_flags: <defaults>
</compile_context>

<pallas_src>
import functools
import math

import jax
import jax.numpy as jnp
from jax.experimental import pallas as pl
from jax.experimental.pallas import tpu as pltpu


# ----------------------------------------------------------------------------
# Shared math (used both inside the Pallas kernel and by the pure-JAX reference)
# ----------------------------------------------------------------------------
def _ln(x, g, b, eps=1e-5):
    mu = jnp.mean(x, axis=-1, keepdims=True)
    var = jnp.mean(jnp.square(x - mu), axis=-1, keepdims=True)
    return (x - mu) * jax.lax.rsqrt(var + eps) * g + b


def _mdot(a, w):
    """MXU matmul: bf16 inputs, f32 accumulation."""
    return jnp.dot(a.astype(jnp.bfloat16), w.astype(jnp.bfloat16),
                   preferred_element_type=jnp.float32)


def _dwconv_time(x, w, b, roll_fn):
    """Depthwise zero-padded 'same' conv along time.

    x: (T, C) f32, w: (K, 1, C), b: (1, C).  K shifted multiply-accumulates:
    roll along time + edge mask (zero padding), all VPU/XLU work.
    """
    T = x.shape[0]
    K = w.shape[0]
    pad = (K - 1) // 2
    t = jax.lax.broadcasted_iota(jnp.int32, (T, 1), 0)
    acc = jnp.broadcast_to(b, x.shape).astype(jnp.float32)
    for k in range(K):
        off = k - pad
        if off == 0:
            shifted = x
        else:
            rolled = roll_fn(x, (-off) % T)           # rolled[t] = x[(t+off) % T]
            valid = ((t + off) >= 0) & ((t + off) < T)
            shifted = jnp.where(valid, rolled, 0.0)
        acc = acc + shifted * w[k]
    return acc


def _layer_math(x, m, refs, *, num_heads, roll_fn, recip_fn):
    """One E-Branchformer layer for a single sequence. x:(T,D), m:(1,T) mask.

    `refs` may be Pallas Refs (kernel) or plain arrays (reference); every
    weight/bias is read with `[...]` at its use site.
    """
    (g_ffm, b_ffm, W1m, b1m, W2m, b2m,
     g_mha, b_mha, Wq, bq, Wk, bk, Wv, bv, Wo, bo,
     g_mlp, b_mlp, Wc1r, bc1r, Wc1g, bc1g, g_cs, b_cs, cw, cb, Wc2, bc2,
     fw1, fb1, fw2, fb2, Wmp1, Wmp2, bmp,
     g_ff, b_ff, W1f, b1f, W2f, b2f, g_fin, b_fin) = refs

    T, D = x.shape
    f32 = jnp.float32

    # --- macaron feed-forward (ff_scale = 0.5); dropout = identity ---
    h = _ln(x, g_ffm[...], b_ffm[...])
    h = _mdot(jnp.maximum(_mdot(h, W1m[...]) + b1m[...], 0.0), W2m[...]) + b2m[...]
    x = x + 0.5 * h

    # --- attention branch: fused QKV/O projections, per-head softmax ---
    x1 = _ln(x, g_mha[...], b_mha[...])
    H = num_heads
    dk = D // H
    scale = jnp.float32(1.0 / math.sqrt(dk))
    keep = m > 0.5                                   # (1, T): masks key positions
    neg = jnp.float32(-1e30)

    q = _mdot(x1, Wq[...]) + bq[...]                 # (T, D) — full-width MXU matmul
    k = _mdot(x1, Wk[...]) + bk[...]
    v = _mdot(x1, Wv[...]) + bv[...]
    Wo_v = Wo[...]                                   # (D, D)

    att = jnp.zeros((T, D), f32)
    for hh in range(H):
        sl = slice(hh * dk, (hh + 1) * dk)
        qh = q[:, sl]
        kh = k[:, sl]
        vh = v[:, sl]
        s = jax.lax.dot_general(qh.astype(jnp.bfloat16), kh.astype(jnp.bfloat16),
                                (((1,), (1,)), ((), ())),
                                preferred_element_type=f32) * scale   # (T, T)
        s = jnp.where(keep, s, neg)
        s = s - jnp.max(s, axis=-1, keepdims=True)
        e = jnp.exp(s)
        p = e * recip_fn(jnp.sum(e, axis=-1, keepdims=True))
        p = jnp.where(keep, p, 0.0)
        ctx = _mdot(p, vh)                           # (T, dk)
        att = att + _mdot(ctx, Wo_v[sl, :])          # (T, D)
    x_att = att + bo[...]                            # dropout = identity

    # --- cgMLP branch (ConvolutionalGatingMLP) ---
    # TODO(synk): torch.nn.GELU defaults to the exact erf form; tanh approximation used here.
    x2 = _ln(x, g_mlp[...], b_mlp[...])
    xr = jax.nn.gelu(_mdot(x2, Wc1r[...]) + bc1r[...], approximate=True)   # first half
    xg = jax.nn.gelu(_mdot(x2, Wc1g[...]) + bc1g[...], approximate=True)   # gate half
    xg = _ln(xg, g_cs[...], b_cs[...])
    xg = _dwconv_time(xg, cw[...], cb[...], roll_fn)  # CSGU depthwise conv along time
    x2 = _mdot(xr * xg, Wc2[...]) + bc2[...]          # channel_proj2; dropout = identity

    # --- merge: depthwise fusion conv per half + split merge projection ---
    xt1 = _dwconv_time(x_att, fw1[...], fb1[...], roll_fn)
    xt2 = _dwconv_time(x2, fw2[...], fb2[...], roll_fn)
    merged = _mdot(x_att + xt1, Wmp1[...]) + _mdot(x2 + xt2, Wmp2[...]) + bmp[...]
    x = x + merged

    # --- final feed-forward (ff_scale = 0.5) ---
    h = _ln(x, g_ff[...], b_ff[...])
    h = _mdot(jnp.maximum(_mdot(h, W1f[...]) + b1f[...], 0.0), W2f[...]) + b2f[...]
    x = x + 0.5 * h

    return _ln(x, g_fin[...], b_fin[...])


# ----------------------------------------------------------------------------
# Pallas kernel + wrapper
# ----------------------------------------------------------------------------
def ebranchformer_layer(x, mask, params, num_heads):
    """x: (B, T, D) f32, mask: (B, 1, T) f32 (1=keep, 0=pad). Returns ((B,T,D), mask)."""
    B, T, D = x.shape

    def kernel(x_ref, mask_ref, *rest):
        param_refs = rest[:-1]
        out_ref = rest[-1]
        out_ref[0] = _layer_math(
            x_ref[0], mask_ref[0], param_refs,
            num_heads=num_heads,
            roll_fn=lambda a, s: pltpu.roll(a, shift=s, axis=0),
            recip_fn=lambda d: pl.reciprocal(d, approx=True),
        )

    in_specs = [
        pl.BlockSpec((1, T, D), lambda b: (b, 0, 0)),
        pl.BlockSpec((1, 1, T), lambda b: (b, 0, 0)),
    ]
    for p in params:
        nd = p.ndim
        in_specs.append(pl.BlockSpec(p.shape, lambda b, _nd=nd: (0,) * _nd))

    out = pl.pallas_call(
        kernel,
        out_shape=jax.ShapeDtypeStruct((B, T, D), jnp.float32),
        grid=(B,),
        in_specs=in_specs,
        out_specs=pl.BlockSpec((1, T, D), lambda b: (b, 0, 0)),
        compiler_params=pltpu.CompilerParams(
            dimension_semantics=("parallel",),        # batch items independent (megacore)
            vmem_limit_bytes=48 * 1024 * 1024,
        ),
    )(x, mask, *params)
    return out, mask


# ----------------------------------------------------------------------------
# Deterministic synthetic parameter init (fused-head attention layout)
# ----------------------------------------------------------------------------
def init_params(key, D, F, U, Kc, Km):
    Uh = U // 2
    keys = iter(jax.random.split(key, 64))

    def w(shape, scale=0.1):
        return (scale * jax.random.normal(next(keys), shape)).astype(jnp.float32)

    zeros = lambda s: jnp.zeros(s, jnp.float32)
    ones = lambda s: jnp.ones(s, jnp.float32)

    params = [
        ones((1, D)), zeros((1, D)),                       # norm_ff_macaron
        w((D, F)), w((1, F)), w((F, D)), w((1, D)),        # ff_macaron
        ones((1, D)), zeros((1, D)),                       # norm_mha
        w((D, D)), w((1, D)),                              # attn Wq, bq (all heads fused)
        w((D, D)), w((1, D)),                              # attn Wk, bk
        w((D, D)), w((1, D)),                              # attn Wv, bv
        w((D, D)), w((1, D)),                              # attn Wo, bo
        ones((1, D)), zeros((1, D)),                       # norm_mlp
        w((D, Uh)), w((1, Uh)), w((D, Uh)), w((1, Uh)),    # cgmlp channel_proj1 (r / gate)
        ones((1, Uh)), zeros((1, Uh)),                     # CSGU LayerNorm
        w((Kc, 1, Uh)), w((1, Uh)),                        # CSGU depthwise conv weight, bias
        w((Uh, D)), w((1, D)),                             # cgmlp channel_proj2
        w((Km, 1, D)), w((1, D)),                          # fusion depthwise conv (attn half)
        w((Km, 1, D)), w((1, D)),                          # fusion depthwise conv (cgmlp half)
        w((D, D)), w((D, D)), w((1, D)),                   # merge_proj split along input + bias
        ones((1, D)), zeros((1, D)),                       # norm_ff
        w((D, F)), w((1, F)), w((F, D)), w((1, D)),        # feed_forward
        ones((1, D)), zeros((1, D)),                       # norm_final
    ]
    return params


if __name__ == "__main__":
    B, T, D = 2, 8, 32          # batch, time, model size
    H, F, U = 4, 64, 64         # attention heads, FF units, cgMLP units
    Kc, Km = 3, 3               # CSGU conv kernel, merge fusion conv kernel

    key = jax.random.PRNGKey(0)
    kx, kp = jax.random.split(key)
    x = jax.random.normal(kx, (B, T, D), dtype=jnp.float32)
    mask = jnp.ones((B, 1, T), dtype=jnp.float32)
    mask = mask.at[1, 0, T - 1].set(0.0)   # mask out last frame of batch 1

    params = init_params(kp, D, F, U, Kc, Km)

    out, out_mask = ebranchformer_layer(x, mask, params, num_heads=H)
    out = jax.block_until_ready(out)

    # Pure-JAX reference: identical math; jnp.roll for the conv shift and an
    # exact divide in place of the in-kernel approx reciprocal.
    ref_fn = functools.partial(
        _layer_math, num_heads=H,
        roll_fn=lambda a, s: jnp.roll(a, s, axis=0),
        recip_fn=lambda d: 1.0 / d)
    ref = jax.vmap(lambda xb, mb: ref_fn(xb, mb, tuple(params)))(x, mask)
    ref = jax.block_until_ready(ref)

    assert out.shape == (B, T, D)
    assert bool(jnp.all(jnp.isfinite(out)))
    max_diff = float(jnp.max(jnp.abs(out - ref)))
    assert max_diff < 2e-2, f"kernel/reference mismatch: {max_diff}"

    print("KERNEL_OK")
</pallas_src>

<mosaic_0001>
module attributes {stable_mosaic.version = 11 : i64} {
  func.func @kernel(%arg0: i32, %arg1: memref<1x8x32xf32, #tpu.memory_space<vmem>>, %arg2: memref<1x1x8xf32, #tpu.memory_space<vmem>>, %arg3: memref<1x32xf32, #tpu.memory_space<vmem>>, %arg4: memref<1x32xf32, #tpu.memory_space<vmem>>, %arg5: memref<32x64xf32, #tpu.memory_space<vmem>>, %arg6: memref<1x64xf32, #tpu.memory_space<vmem>>, %arg7: memref<64x32xf32, #tpu.memory_space<vmem>>, %arg8: memref<1x32xf32, #tpu.memory_space<vmem>>, %arg9: memref<1x32xf32, #tpu.memory_space<vmem>>, %arg10: memref<1x32xf32, #tpu.memory_space<vmem>>, %arg11: memref<32x32xf32, #tpu.memory_space<vmem>>, %arg12: memref<1x32xf32, #tpu.memory_space<vmem>>, %arg13: memref<32x32xf32, #tpu.memory_space<vmem>>, %arg14: memref<1x32xf32, #tpu.memory_space<vmem>>, %arg15: memref<32x32xf32, #tpu.memory_space<vmem>>, %arg16: memref<1x32xf32, #tpu.memory_space<vmem>>, %arg17: memref<32x32xf32, #tpu.memory_space<vmem>>, %arg18: memref<1x32xf32, #tpu.memory_space<vmem>>, %arg19: memref<1x32xf32, #tpu.memory_space<vmem>>, %arg20: memref<1x32xf32, #tpu.memory_space<vmem>>, %arg21: memref<32x32xf32, #tpu.memory_space<vmem>>, %arg22: memref<1x32xf32, #tpu.memory_space<vmem>>, %arg23: memref<32x32xf32, #tpu.memory_space<vmem>>, %arg24: memref<1x32xf32, #tpu.memory_space<vmem>>, %arg25: memref<1x32xf32, #tpu.memory_space<vmem>>, %arg26: memref<1x32xf32, #tpu.memory_space<vmem>>, %arg27: memref<3x1x32xf32, #tpu.memory_space<vmem>>, %arg28: memref<1x32xf32, #tpu.memory_space<vmem>>, %arg29: memref<32x32xf32, #tpu.memory_space<vmem>>, %arg30: memref<1x32xf32, #tpu.memory_space<vmem>>, %arg31: memref<3x1x32xf32, #tpu.memory_space<vmem>>, %arg32: memref<1x32xf32, #tpu.memory_space<vmem>>, %arg33: memref<3x1x32xf32, #tpu.memory_space<vmem>>, %arg34: memref<1x32xf32, #tpu.memory_space<vmem>>, %arg35: memref<32x32xf32, #tpu.memory_space<vmem>>, %arg36: memref<32x32xf32, #tpu.memory_space<vmem>>, %arg37: memref<1x32xf32, #tpu.memory_space<vmem>>, %arg38: memref<1x32xf32, #tpu.memory_space<vmem>>, %arg39: memref<1x32xf32, #tpu.memory_space<vmem>>, %arg40: memref<32x64xf32, #tpu.memory_space<vmem>>, %arg41: memref<1x64xf32, #tpu.memory_space<vmem>>, %arg42: memref<64x32xf32, #tpu.memory_space<vmem>>, %arg43: memref<1x32xf32, #tpu.memory_space<vmem>>, %arg44: memref<1x32xf32, #tpu.memory_space<vmem>>, %arg45: memref<1x32xf32, #tpu.memory_space<vmem>>, %arg46: memref<1x8x32xf32, #tpu.memory_space<vmem>>) attributes {dimension_semantics = [#tpu.dimension_semantics<parallel>], iteration_bounds = array<i64: 2>, scalar_prefetch = 0 : i64, scratch_operands = 0 : i64, tpu.core_type = #tpu.core_type<tc>, window_params = [{transform_indices = @transform_0, window_bounds = array<i64: 1, 8, 32>}, {transform_indices = @transform_1, window_bounds = array<i64: 1, 1, 8>}, {pipeline_mode = #tpu.pipeline_mode<synchronous>, transform_indices = @transform_2, window_bounds = array<i64: 1, 32>}, {pipeline_mode = #tpu.pipeline_mode<synchronous>, transform_indices = @transform_3, window_bounds = array<i64: 1, 32>}, {pipeline_mode = #tpu.pipeline_mode<synchronous>, transform_indices = @transform_4, window_bounds = array<i64: 32, 64>}, {pipeline_mode = #tpu.pipeline_mode<synchronous>, transform_indices = @transform_5, window_bounds = array<i64: 1, 64>}, {pipeline_mode = #tpu.pipeline_mode<synchronous>, transform_indices = @transform_6, window_bounds = array<i64: 64, 32>}, {pipeline_mode = #tpu.pipeline_mode<synchronous>, transform_indices = @transform_7, window_bounds = array<i64: 1, 32>}, {pipeline_mode = #tpu.pipeline_mode<synchronous>, transform_indices = @transform_8, window_bounds = array<i64: 1, 32>}, {pipeline_mode = #tpu.pipeline_mode<synchronous>, transform_indices = @transform_9, window_bounds = array<i64: 1, 32>}, {pipeline_mode = #tpu.pipeline_mode<synchronous>, transform_indices = @transform_10, window_bounds = array<i64: 32, 32>}, {pipeline_mode = #tpu.pipeline_mode<synchronous>, transform_indices = @transform_11, window_bounds = array<i64: 1, 32>}, {pipeline_mode = #tpu.pipeline_mode<synchronous>, transform_indices = @transform_12, window_bounds = array<i64: 32, 32>}, {pipeline_mode = #tpu.pipeline_mode<synchronous>, transform_indices = @transform_13, window_bounds = array<i64: 1, 32>}, {pipeline_mode = #tpu.pipeline_mode<synchronous>, transform_indices = @transform_14, window_bounds = array<i64: 32, 32>}, {pipeline_mode = #tpu.pipeline_mode<synchronous>, transform_indices = @transform_15, window_bounds = array<i64: 1, 32>}, {pipeline_mode = #tpu.pipeline_mode<synchronous>, transform_indices = @transform_16, window_bounds = array<i64: 32, 32>}, {pipeline_mode = #tpu.pipeline_mode<synchronous>, transform_indices = @transform_17, window_bounds = array<i64: 1, 32>}, {pipeline_mode = #tpu.pipeline_mode<synchronous>, transform_indices = @transform_18, window_bounds = array<i64: 1, 32>}, {pipeline_mode = #tpu.pipeline_mode<synchronous>, transform_indices = @transform_19, window_bounds = array<i64: 1, 32>}, {pipeline_mode = #tpu.pipeline_mode<synchronous>, transform_indices = @transform_20, window_bounds = array<i64: 32, 32>}, {pipeline_mode = #tpu.pipeline_mode<synchronous>, transform_indices = @transform_21, window_bounds = array<i64: 1, 32>}, {pipeline_mode = #tpu.pipeline_mode<synchronous>, transform_indices = @transform_22, window_bounds = array<i64: 32, 32>}, {pipeline_mode = #tpu.pipeline_mode<synchronous>, transform_indices = @transform_23, window_bounds = array<i64: 1, 32>}, {pipeline_mode = #tpu.pipeline_mode<synchronous>, transform_indices = @transform_24, window_bounds = array<i64: 1, 32>}, {pipeline_mode = #tpu.pipeline_mode<synchronous>, transform_indices = @transform_25, window_bounds = array<i64: 1, 32>}, {pipeline_mode = #tpu.pipeline_mode<synchronous>, transform_indices = @transform_26, window_bounds = array<i64: 3, 1, 32>}, {pipeline_mode = #tpu.pipeline_mode<synchronous>, transform_indices = @transform_27, window_bounds = array<i64: 1, 32>}, {pipeline_mode = #tpu.pipeline_mode<synchronous>, transform_indices = @transform_28, window_bounds = array<i64: 32, 32>}, {pipeline_mode = #tpu.pipeline_mode<synchronous>, transform_indices = @transform_29, window_bounds = array<i64: 1, 32>}, {pipeline_mode = #tpu.pipeline_mode<synchronous>, transform_indices = @transform_30, window_bounds = array<i64: 3, 1, 32>}, {pipeline_mode = #tpu.pipeline_mode<synchronous>, transform_indices = @transform_31, window_bounds = array<i64: 1, 32>}, {pipeline_mode = #tpu.pipeline_mode<synchronous>, transform_indices = @transform_32, window_bounds = array<i64: 3, 1, 32>}, {pipeline_mode = #tpu.pipeline_mode<synchronous>, transform_indices = @transform_33, window_bounds = array<i64: 1, 32>}, {pipeline_mode = #tpu.pipeline_mode<synchronous>, transform_indices = @transform_34, window_bounds = array<i64: 32, 32>}, {pipeline_mode = #tpu.pipeline_mode<synchronous>, transform_indices = @transform_35, window_bounds = array<i64: 32, 32>}, {pipeline_mode = #tpu.pipeline_mode<synchronous>, transform_indices = @transform_36, window_bounds = array<i64: 1, 32>}, {pipeline_mode = #tpu.pipeline_mode<synchronous>, transform_indices = @transform_37, window_bounds = array<i64: 1, 32>}, {pipeline_mode = #tpu.pipeline_mode<synchronous>, transform_indices = @transform_38, window_bounds = array<i64: 1, 32>}, {pipeline_mode = #tpu.pipeline_mode<synchronous>, transform_indices = @transform_39, window_bounds = array<i64: 32, 64>}, {pipeline_mode = #tpu.pipeline_mode<synchronous>, transform_indices = @transform_40, window_bounds = array<i64: 1, 64>}, {pipeline_mode = #tpu.pipeline_mode<synchronous>, transform_indices = @transform_41, window_bounds = array<i64: 64, 32>}, {pipeline_mode = #tpu.pipeline_mode<synchronous>, transform_indices = @transform_42, window_bounds = array<i64: 1, 32>}, {pipeline_mode = #tpu.pipeline_mode<synchronous>, transform_indices = @transform_43, window_bounds = array<i64: 1, 32>}, {pipeline_mode = #tpu.pipeline_mode<synchronous>, transform_indices = @transform_44, window_bounds = array<i64: 1, 32>}, {transform_indices = @transform_45, window_bounds = array<i64: 1, 8, 32>}]} {
    %c0 = arith.constant 0 : index
    %c0_0 = arith.constant 0 : index
    %c0_1 = arith.constant 0 : index
    %0 = vector.load %arg1[%c0, %c0_0, %c0_1] : memref<1x8x32xf32, #tpu.memory_space<vmem>>, vector<1x8x32xf32>
    %1 = vector.shape_cast %0 : vector<1x8x32xf32> to vector<8x32xf32>
    %c0_2 = arith.constant 0 : index
    %c0_3 = arith.constant 0 : index
    %c0_4 = arith.constant 0 : index
    %2 = vector.load %arg2[%c0_2, %c0_3, %c0_4] : memref<1x1x8xf32, #tpu.memory_space<vmem>>, vector<1x1x8xf32>
    %3 = vector.shape_cast %2 : vector<1x1x8xf32> to vector<1x8xf32>
    %c0_5 = arith.constant 0 : index
    %c0_6 = arith.constant 0 : index
    %4 = vector.load %arg3[%c0_5, %c0_6] : memref<1x32xf32, #tpu.memory_space<vmem>>, vector<1x32xf32>
    %c0_7 = arith.constant 0 : index
    %c0_8 = arith.constant 0 : index
    %5 = vector.load %arg4[%c0_7, %c0_8] : memref<1x32xf32, #tpu.memory_space<vmem>>, vector<1x32xf32>
    %cst = arith.constant dense<0.000000e+00> : vector<8xf32>
    %6 = vector.multi_reduction <add>, %1, %cst [1] : vector<8x32xf32> to vector<8xf32>
    %7 = vector.shape_cast %6 : vector<8xf32> to vector<8x1xf32>
    %cst_9 = arith.constant 3.200000e+01 : f32
    %8 = vector.broadcast %cst_9 : f32 to vector<8x1xf32>
    %9 = arith.divf %7, %8 : vector<8x1xf32>
    %10 = vector.broadcast %9 : vector<8x1xf32> to vector<8x32xf32>
    %11 = arith.subf %1, %10 : vector<8x32xf32>
    %12 = arith.mulf %11, %11 : vector<8x32xf32>
    %cst_10 = arith.constant dense<0.000000e+00> : vector<8xf32>
    %13 = vector.multi_reduction <add>, %12, %cst_10 [1] : vector<8x32xf32> to vector<8xf32>
    %14 = vector.shape_cast %13 : vector<8xf32> to vector<8x1xf32>
    %cst_11 = arith.constant 3.200000e+01 : f32
    %15 = vector.broadcast %cst_11 : f32 to vector<8x1xf32>
    %16 = arith.divf %14, %15 : vector<8x1xf32>
    %17 = vector.broadcast %9 : vector<8x1xf32> to vector<8x32xf32>
    %18 = arith.subf %1, %17 : vector<8x32xf32>
    %cst_12 = arith.constant 9.99999974E-6 : f32
    %19 = vector.broadcast %cst_12 : f32 to vector<8x1xf32>
    %20 = arith.addf %16, %19 : vector<8x1xf32>
    %21 = math.rsqrt %20 : vector<8x1xf32>
    %22 = vector.broadcast %21 : vector<8x1xf32> to vector<8x32xf32>
    %23 = arith.mulf %18, %22 : vector<8x32xf32>
    %24 = vector.broadcast %4 : vector<1x32xf32> to vector<8x32xf32>
    %25 = arith.mulf %23, %24 : vector<8x32xf32>
    %26 = vector.broadcast %5 : vector<1x32xf32> to vector<8x32xf32>
    %27 = arith.addf %25, %26 : vector<8x32xf32>
    %c0_13 = arith.constant 0 : index
    %c0_14 = arith.constant 0 : index
    %28 = vector.load %arg5[%c0_13, %c0_14] : memref<32x64xf32, #tpu.memory_space<vmem>>, vector<32x64xf32>
    %29 = arith.truncf %27 : vector<8x32xf32> to vector<8x32xbf16>
    %30 = arith.truncf %28 : vector<32x64xf32> to vector<32x64xbf16>
    %cst_15 = arith.constant dense<0.000000e+00> : vector<8x64xf32>
    %31 = tpu.matmul %29, %30, %cst_15 {dimension_numbers = #tpu.dot_dimension_numbers<[1], [0], [0], [1], [0, 0, 1, 1], [], []>} : vector<8x32xbf16>, vector<32x64xbf16>, vector<8x64xf32> -> vector<8x64xf32>
    %c0_16 = arith.constant 0 : index
    %c0_17 = arith.constant 0 : index
    %32 = vector.load %arg6[%c0_16, %c0_17] : memref<1x64xf32, #tpu.memory_space<vmem>>, vector<1x64xf32>
    %33 = vector.broadcast %32 : vector<1x64xf32> to vector<8x64xf32>
    %34 = arith.addf %31, %33 : vector<8x64xf32>
    %cst_18 = arith.constant 0.000000e+00 : f32
    %35 = vector.broadcast %cst_18 : f32 to vector<8x64xf32>
    %36 = arith.maximumf %34, %35 : vector<8x64xf32>
    %c0_19 = arith.constant 0 : index
    %c0_20 = arith.constant 0 : index
    %37 = vector.load %arg7[%c0_19, %c0_20] : memref<64x32xf32, #tpu.memory_space<vmem>>, vector<64x32xf32>
    %38 = arith.truncf %36 : vector<8x64xf32> to vector<8x64xbf16>
    %39 = arith.truncf %37 : vector<64x32xf32> to vector<64x32xbf16>
    %cst_21 = arith.constant dense<0.000000e+00> : vector<8x32xf32>
    %40 = tpu.matmul %38, %39, %cst_21 {dimension_numbers = #tpu.dot_dimension_numbers<[1], [0], [0], [1], [0, 0, 1, 1], [], []>} : vector<8x64xbf16>, vector<64x32xbf16>, vector<8x32xf32> -> vector<8x32xf32>
    %c0_22 = arith.constant 0 : index
    %c0_23 = arith.constant 0 : index
    %41 = vector.load %arg8[%c0_22, %c0_23] : memref<1x32xf32, #tpu.memory_space<vmem>>, vector<1x32xf32>
    %42 = vector.broadcast %41 : vector<1x32xf32> to vector<8x32xf32>
    %43 = arith.addf %40, %42 : vector<8x32xf32>
    %cst_24 = arith.constant 5.000000e-01 : f32
    %44 = vector.broadcast %cst_24 : f32 to vector<8x32xf32>
    %45 = arith.mulf %44, %43 : vector<8x32xf32>
    %46 = arith.addf %1, %45 : vector<8x32xf32>
    %c0_25 = arith.constant 0 : index
    %c0_26 = arith.constant 0 : index
    %47 = vector.load %arg9[%c0_25, %c0_26] : memref<1x32xf32, #tpu.memory_space<vmem>>, vector<1x32xf32>
    %c0_27 = arith.constant 0 : index
    %c0_28 = arith.constant 0 : index
    %48 = vector.load %arg10[%c0_27, %c0_28] : memref<1x32xf32, #tpu.memory_space<vmem>>, vector<1x32xf32>
    %cst_29 = arith.constant dense<0.000000e+00> : vector<8xf32>
    %49 = vector.multi_reduction <add>, %46, %cst_29 [1] : vector<8x32xf32> to vector<8xf32>
    %50 = vector.shape_cast %49 : vector<8xf32> to vector<8x1xf32>
    %cst_30 = arith.constant 3.200000e+01 : f32
    %51 = vector.broadcast %cst_30 : f32 to vector<8x1xf32>
    %52 = arith.divf %50, %51 : vector<8x1xf32>
    %53 = vector.broadcast %52 : vector<8x1xf32> to vector<8x32xf32>
    %54 = arith.subf %46, %53 : vector<8x32xf32>
    %55 = arith.mulf %54, %54 : vector<8x32xf32>
    %cst_31 = arith.constant dense<0.000000e+00> : vector<8xf32>
    %56 = vector.multi_reduction <add>, %55, %cst_31 [1] : vector<8x32xf32> to vector<8xf32>
    %57 = vector.shape_cast %56 : vector<8xf32> to vector<8x1xf32>
    %cst_32 = arith.constant 3.200000e+01 : f32
    %58 = vector.broadcast %cst_32 : f32 to vector<8x1xf32>
    %59 = arith.divf %57, %58 : vector<8x1xf32>
    %60 = vector.broadcast %52 : vector<8x1xf32> to vector<8x32xf32>
    %61 = arith.subf %46, %60 : vector<8x32xf32>
    %cst_33 = arith.constant 9.99999974E-6 : f32
    %62 = vector.broadcast %cst_33 : f32 to vector<8x1xf32>
    %63 = arith.addf %59, %62 : vector<8x1xf32>
    %64 = math.rsqrt %63 : vector<8x1xf32>
    %65 = vector.broadcast %64 : vector<8x1xf32> to vector<8x32xf32>
    %66 = arith.mulf %61, %65 : vector<8x32xf32>
    %67 = vector.broadcast %47 : vector<1x32xf32> to vector<8x32xf32>
    %68 = arith.mulf %66, %67 : vector<8x32xf32>
    %69 = vector.broadcast %48 : vector<1x32xf32> to vector<8x32xf32>
    %70 = arith.addf %68, %69 : vector<8x32xf32>
    %cst_34 = arith.constant 5.000000e-01 : f32
    %71 = vector.broadcast %cst_34 : f32 to vector<1x8xf32>
    %72 = arith.cmpf ogt, %3, %71 : vector<1x8xf32>
    %c0_35 = arith.constant 0 : index
    %c0_36 = arith.constant 0 : index
    %73 = vector.load %arg11[%c0_35, %c0_36] : memref<32x32xf32, #tpu.memory_space<vmem>>, vector<32x32xf32>
    %74 = arith.truncf %70 : vector<8x32xf32> to vector<8x32xbf16>
    %75 = arith.truncf %73 : vector<32x32xf32> to vector<32x32xbf16>
    %cst_37 = arith.constant dense<0.000000e+00> : vector<8x32xf32>
    %76 = tpu.matmul %74, %75, %cst_37 {dimension_numbers = #tpu.dot_dimension_numbers<[1], [0], [0], [1], [0, 0, 1, 1], [], []>} : vector<8x32xbf16>, vector<32x32xbf16>, vector<8x32xf32> -> vector<8x32xf32>
    %c0_38 = arith.constant 0 : index
    %c0_39 = arith.constant 0 : index
    %77 = vector.load %arg12[%c0_38, %c0_39] : memref<1x32xf32, #tpu.memory_space<vmem>>, vector<1x32xf32>
    %78 = vector.broadcast %77 : vector<1x32xf32> to vector<8x32xf32>
    %79 = arith.addf %76, %78 : vector<8x32xf32>
    %c0_40 = arith.constant 0 : index
    %c0_41 = arith.constant 0 : index
    %80 = vector.load %arg13[%c0_40, %c0_41] : memref<32x32xf32, #tpu.memory_space<vmem>>, vector<32x32xf32>
    %81 = arith.truncf %70 : vector<8x32xf32> to vector<8x32xbf16>
    %82 = arith.truncf %80 : vector<32x32xf32> to vector<32x32xbf16>
    %cst_42 = arith.constant dense<0.000000e+00> : vector<8x32xf32>
    %83 = tpu.matmul %81, %82, %cst_42 {dimension_numbers = #tpu.dot_dimension_numbers<[1], [0], [0], [1], [0, 0, 1, 1], [], []>} : vector<8x32xbf16>, vector<32x32xbf16>, vector<8x32xf32> -> vector<8x32xf32>
    %c0_43 = arith.constant 0 : index
    %c0_44 = arith.constant 0 : index
    %84 = vector.load %arg14[%c0_43, %c0_44] : memref<1x32xf32, #tpu.memory_space<vmem>>, vector<1x32xf32>
    %85 = vector.broadcast %84 : vector<1x32xf32> to vector<8x32xf32>
    %86 = arith.addf %83, %85 : vector<8x32xf32>
    %c0_45 = arith.constant 0 : index
    %c0_46 = arith.constant 0 : index
    %87 = vector.load %arg15[%c0_45, %c0_46] : memref<32x32xf32, #tpu.memory_space<vmem>>, vector<32x32xf32>
    %88 = arith.truncf %70 : vector<8x32xf32> to vector<8x32xbf16>
    %89 = arith.truncf %87 : vector<32x32xf32> to vector<32x32xbf16>
    %cst_47 = arith.constant dense<0.000000e+00> : vector<8x32xf32>
    %90 = tpu.matmul %88, %89, %cst_47 {dimension_numbers = #tpu.dot_dimension_numbers<[1], [0], [0], [1], [0, 0, 1, 1], [], []>} : vector<8x32xbf16>, vector<32x32xbf16>, vector<8x32xf32> -> vector<8x32xf32>
    %c0_48 = arith.constant 0 : index
    %c0_49 = arith.constant 0 : index
    %91 = vector.load %arg16[%c0_48, %c0_49] : memref<1x32xf32, #tpu.memory_space<vmem>>, vector<1x32xf32>
    %92 = vector.broadcast %91 : vector<1x32xf32> to vector<8x32xf32>
    %93 = arith.addf %90, %92 : vector<8x32xf32>
    %c0_50 = arith.constant 0 : index
    %c0_51 = arith.constant 0 : index
    %94 = vector.load %arg17[%c0_50, %c0_51] : memref<32x32xf32, #tpu.memory_space<vmem>>, vector<32x32xf32>
    %cst_52 = arith.constant 0.000000e+00 : f32
    %95 = vector.broadcast %cst_52 : f32 to vector<8x32xf32>
    %96 = vector.extract_strided_slice %79 {offsets = [0, 0], sizes = [8, 8], strides = [1, 1]} : vector<8x32xf32> to vector<8x8xf32>
    %97 = vector.extract_strided_slice %86 {offsets = [0, 0], sizes = [8, 8], strides = [1, 1]} : vector<8x32xf32> to vector<8x8xf32>
    %98 = vector.extract_strided_slice %93 {offsets = [0, 0], sizes = [8, 8], strides = [1, 1]} : vector<8x32xf32> to vector<8x8xf32>
    %99 = arith.truncf %96 : vector<8x8xf32> to vector<8x8xbf16>
    %100 = arith.truncf %97 : vector<8x8xf32> to vector<8x8xbf16>
    %cst_53 = arith.constant dense<0.000000e+00> : vector<8x8xf32>
    %101 = tpu.matmul %99, %100, %cst_53 {dimension_numbers = #tpu.dot_dimension_numbers<[1], [1], [0], [0], [0, 0, 1, 0], [], []>} : vector<8x8xbf16>, vector<8x8xbf16>, vector<8x8xf32> -> vector<8x8xf32>
    %cst_54 = arith.constant 0.353553385 : f32
    %102 = vector.broadcast %cst_54 : f32 to vector<8x8xf32>
    %103 = arith.mulf %101, %102 : vector<8x8xf32>
    %cst_55 = arith.constant -1.000000e+30 : f32
    %104 = vector.shape_cast %72 : vector<1x8xi1> to vector<1x8xi1>
    %105 = vector.broadcast %104 : vector<1x8xi1> to vector<8x8xi1>
    %106 = vector.broadcast %cst_55 : f32 to vector<8x8xf32>
    %107 = arith.select %105, %103, %106 : vector<8x8xi1>, vector<8x8xf32>
    %cst_56 = arith.constant dense<0xFF800000> : vector<8xf32>
    %108 = vector.multi_reduction <maximumf>, %107, %cst_56 [1] : vector<8x8xf32> to vector<8xf32>
    %109 = vector.shape_cast %108 : vector<8xf32> to vector<8x1xf32>
    %110 = vector.broadcast %109 : vector<8x1xf32> to vector<8x8xf32>
    %111 = arith.subf %107, %110 : vector<8x8xf32>
    %112 = math.exp %111 : vector<8x8xf32>
    %cst_57 = arith.constant dense<0.000000e+00> : vector<8xf32>
    %113 = vector.multi_reduction <add>, %112, %cst_57 [1] : vector<8x8xf32> to vector<8xf32>
    %114 = vector.shape_cast %113 : vector<8xf32> to vector<8x1xf32>
    %115 = tpu.reciprocal %114 {approx = true} : vector<8x1xf32> -> vector<8x1xf32>
    %116 = vector.broadcast %115 : vector<8x1xf32> to vector<8x8xf32>
    %117 = arith.mulf %112, %116 : vector<8x8xf32>
    %cst_58 = arith.constant 0.000000e+00 : f32
    %118 = vector.shape_cast %72 : vector<1x8xi1> to vector<1x8xi1>
    %119 = vector.broadcast %118 : vector<1x8xi1> to vector<8x8xi1>
    %120 = vector.broadcast %cst_58 : f32 to vector<8x8xf32>
    %121 = arith.select %119, %117, %120 : vector<8x8xi1>, vector<8x8xf32>
    %122 = arith.truncf %121 : vector<8x8xf32> to vector<8x8xbf16>
    %123 = arith.truncf %98 : vector<8x8xf32> to vector<8x8xbf16>
    %cst_59 = arith.constant dense<0.000000e+00> : vector<8x8xf32>
    %124 = tpu.matmul %122, %123, %cst_59 {dimension_numbers = #tpu.dot_dimension_numbers<[1], [0], [0], [1], [0, 0, 1, 1], [], []>} : vector<8x8xbf16>, vector<8x8xbf16>, vector<8x8xf32> -> vector<8x8xf32>
    %125 = vector.extract_strided_slice %94 {offsets = [0, 0], sizes = [8, 32], strides = [1, 1]} : vector<32x32xf32> to vector<8x32xf32>
    %126 = arith.truncf %124 : vector<8x8xf32> to vector<8x8xbf16>
    %127 = arith.truncf %125 : vector<8x32xf32> to vector<8x32xbf16>
    %cst_60 = arith.constant dense<0.000000e+00> : vector<8x32xf32>
    %128 = tpu.matmul %126, %127, %cst_60 {dimension_numbers = #tpu.dot_dimension_numbers<[1], [0], [0], [1], [0, 0, 1, 1], [], []>} : vector<8x8xbf16>, vector<8x32xbf16>, vector<8x32xf32> -> vector<8x32xf32>
    %129 = arith.addf %95, %128 : vector<8x32xf32>
    %130 = vector.extract_strided_slice %79 {offsets = [0, 8], sizes = [8, 8], strides = [1, 1]} : vector<8x32xf32> to vector<8x8xf32>
    %131 = vector.extract_strided_slice %86 {offsets = [0, 8], sizes = [8, 8], strides = [1, 1]} : vector<8x32xf32> to vector<8x8xf32>
    %132 = vector.extract_strided_slice %93 {offsets = [0, 8], sizes = [8, 8], strides = [1, 1]} : vector<8x32xf32> to vector<8x8xf32>
    %133 = arith.truncf %130 : vector<8x8xf32> to vector<8x8xbf16>
    %134 = arith.truncf %131 : vector<8x8xf32> to vector<8x8xbf16>
    %cst_61 = arith.constant dense<0.000000e+00> : vector<8x8xf32>
    %135 = tpu.matmul %133, %134, %cst_61 {dimension_numbers = #tpu.dot_dimension_numbers<[1], [1], [0], [0], [0, 0, 1, 0], [], []>} : vector<8x8xbf16>, vector<8x8xbf16>, vector<8x8xf32> -> vector<8x8xf32>
    %cst_62 = arith.constant 0.353553385 : f32
    %136 = vector.broadcast %cst_62 : f32 to vector<8x8xf32>
    %137 = arith.mulf %135, %136 : vector<8x8xf32>
    %cst_63 = arith.constant -1.000000e+30 : f32
    %138 = vector.shape_cast %72 : vector<1x8xi1> to vector<1x8xi1>
    %139 = vector.broadcast %138 : vector<1x8xi1> to vector<8x8xi1>
    %140 = vector.broadcast %cst_63 : f32 to vector<8x8xf32>
    %141 = arith.select %139, %137, %140 : vector<8x8xi1>, vector<8x8xf32>
    %cst_64 = arith.constant dense<0xFF800000> : vector<8xf32>
    %142 = vector.multi_reduction <maximumf>, %141, %cst_64 [1] : vector<8x8xf32> to vector<8xf32>
    %143 = vector.shape_cast %142 : vector<8xf32> to vector<8x1xf32>
    %144 = vector.broadcast %143 : vector<8x1xf32> to vector<8x8xf32>
    %145 = arith.subf %141, %144 : vector<8x8xf32>
    %146 = math.exp %145 : vector<8x8xf32>
    %cst_65 = arith.constant dense<0.000000e+00> : vector<8xf32>
    %147 = vector.multi_reduction <add>, %146, %cst_65 [1] : vector<8x8xf32> to vector<8xf32>
    %148 = vector.shape_cast %147 : vector<8xf32> to vector<8x1xf32>
    %149 = tpu.reciprocal %148 {approx = true} : vector<8x1xf32> -> vector<8x1xf32>
    %150 = vector.broadcast %149 : vector<8x1xf32> to vector<8x8xf32>
    %151 = arith.mulf %146, %150 : vector<8x8xf32>
    %cst_66 = arith.constant 0.000000e+00 : f32
    %152 = vector.shape_cast %72 : vector<1x8xi1> to vector<1x8xi1>
    %153 = vector.broadcast %152 : vector<1x8xi1> to vector<8x8xi1>
    %154 = vector.broadcast %cst_66 : f32 to vector<8x8xf32>
    %155 = arith.select %153, %151, %154 : vector<8x8xi1>, vector<8x8xf32>
    %156 = arith.truncf %155 : vector<8x8xf32> to vector<8x8xbf16>
    %157 = arith.truncf %132 : vector<8x8xf32> to vector<8x8xbf16>
    %cst_67 = arith.constant dense<0.000000e+00> : vector<8x8xf32>
    %158 = tpu.matmul %156, %157, %cst_67 {dimension_numbers = #tpu.dot_dimension_numbers<[1], [0], [0], [1], [0, 0, 1, 1], [], []>} : vector<8x8xbf16>, vector<8x8xbf16>, vector<8x8xf32> -> vector<8x8xf32>
    %159 = vector.extract_strided_slice %94 {offsets = [8, 0], sizes = [8, 32], strides = [1, 1]} : vector<32x32xf32> to vector<8x32xf32>
    %160 = arith.truncf %158 : vector<8x8xf32> to vector<8x8xbf16>
    %161 = arith.truncf %159 : vector<8x32xf32> to vector<8x32xbf16>
    %cst_68 = arith.constant dense<0.000000e+00> : vector<8x32xf32>
    %162 = tpu.matmul %160, %161, %cst_68 {dimension_numbers = #tpu.dot_dimension_numbers<[1], [0], [0], [1], [0, 0, 1, 1], [], []>} : vector<8x8xbf16>, vector<8x32xbf16>, vector<8x32xf32> -> vector<8x32xf32>
    %163 = arith.addf %129, %162 : vector<8x32xf32>
    %164 = vector.extract_strided_slice %79 {offsets = [0, 16], sizes = [8, 8], strides = [1, 1]} : vector<8x32xf32> to vector<8x8xf32>
    %165 = vector.extract_strided_slice %86 {offsets = [0, 16], sizes = [8, 8], strides = [1, 1]} : vector<8x32xf32> to vector<8x8xf32>
    %166 = vector.extract_strided_slice %93 {offsets = [0, 16], sizes = [8, 8], strides = [1, 1]} : vector<8x32xf32> to vector<8x8xf32>
    %167 = arith.truncf %164 : vector<8x8xf32> to vector<8x8xbf16>
    %168 = arith.truncf %165 : vector<8x8xf32> to vector<8x8xbf16>
    %cst_69 = arith.constant dense<0.000000e+00> : vector<8x8xf32>
    %169 = tpu.matmul %167, %168, %cst_69 {dimension_numbers = #tpu.dot_dimension_numbers<[1], [1], [0], [0], [0, 0, 1, 0], [], []>} : vector<8x8xbf16>, vector<8x8xbf16>, vector<8x8xf32> -> vector<8x8xf32>
    %cst_70 = arith.constant 0.353553385 : f32
    %170 = vector.broadcast %cst_70 : f32 to vector<8x8xf32>
    %171 = arith.mulf %169, %170 : vector<8x8xf32>
    %cst_71 = arith.constant -1.000000e+30 : f32
    %172 = vector.shape_cast %72 : vector<1x8xi1> to vector<1x8xi1>
    %173 = vector.broadcast %172 : vector<1x8xi1> to vector<8x8xi1>
    %174 = vector.broadcast %cst_71 : f32 to vector<8x8xf32>
    %175 = arith.select %173, %171, %174 : vector<8x8xi1>, vector<8x8xf32>
    %cst_72 = arith.constant dense<0xFF800000> : vector<8xf32>
    %176 = vector.multi_reduction <maximumf>, %175, %cst_72 [1] : vector<8x8xf32> to vector<8xf32>
    %177 = vector.shape_cast %176 : vector<8xf32> to vector<8x1xf32>
    %178 = vector.broadcast %177 : vector<8x1xf32> to vector<8x8xf32>
    %179 = arith.subf %175, %178 : vector<8x8xf32>
    %180 = math.exp %179 : vector<8x8xf32>
    %cst_73 = arith.constant dense<0.000000e+00> : vector<8xf32>
    %181 = vector.multi_reduction <add>, %180, %cst_73 [1] : vector<8x8xf32> to vector<8xf32>
    %182 = vector.shape_cast %181 : vector<8xf32> to vector<8x1xf32>
    %183 = tpu.reciprocal %182 {approx = true} : vector<8x1xf32> -> vector<8x1xf32>
    %184 = vector.broadcast %183 : vector<8x1xf32> to vector<8x8xf32>
    %185 = arith.mulf %180, %184 : vector<8x8xf32>
    %cst_74 = arith.constant 0.000000e+00 : f32
    %186 = vector.shape_cast %72 : vector<1x8xi1> to vector<1x8xi1>
    %187 = vector.broadcast %186 : vector<1x8xi1> to vector<8x8xi1>
    %188 = vector.broadcast %cst_74 : f32 to vector<8x8xf32>
    %189 = arith.select %187, %185, %188 : vector<8x8xi1>, vector<8x8xf32>
    %190 = arith.truncf %189 : vector<8x8xf32> to vector<8x8xbf16>
    %191 = arith.truncf %166 : vector<8x8xf32> to vector<8x8xbf16>
    %cst_75 = arith.constant dense<0.000000e+00> : vector<8x8xf32>
    %192 = tpu.matmul %190, %191, %cst_75 {dimension_numbers = #tpu.dot_dimension_numbers<[1], [0], [0], [1], [0, 0, 1, 1], [], []>} : vector<8x8xbf16>, vector<8x8xbf16>, vector<8x8xf32> -> vector<8x8xf32>
    %193 = vector.extract_strided_slice %94 {offsets = [16, 0], sizes = [8, 32], strides = [1, 1]} : vector<32x32xf32> to vector<8x32xf32>
    %194 = arith.truncf %192 : vector<8x8xf32> to vector<8x8xbf16>
    %195 = arith.truncf %193 : vector<8x32xf32> to vector<8x32xbf16>
    %cst_76 = arith.constant dense<0.000000e+00> : vector<8x32xf32>
    %196 = tpu.matmul %194, %195, %cst_76 {dimension_numbers = #tpu.dot_dimension_numbers<[1], [0], [0], [1], [0, 0, 1, 1], [], []>} : vector<8x8xbf16>, vector<8x32xbf16>, vector<8x32xf32> -> vector<8x32xf32>
    %197 = arith.addf %163, %196 : vector<8x32xf32>
    %198 = vector.extract_strided_slice %79 {offsets = [0, 24], sizes = [8, 8], strides = [1, 1]} : vector<8x32xf32> to vector<8x8xf32>
    %199 = vector.extract_strided_slice %86 {offsets = [0, 24], sizes = [8, 8], strides = [1, 1]} : vector<8x32xf32> to vector<8x8xf32>
    %200 = vector.extract_strided_slice %93 {offsets = [0, 24], sizes = [8, 8], strides = [1, 1]} : vector<8x32xf32> to vector<8x8xf32>
    %201 = arith.truncf %198 : vector<8x8xf32> to vector<8x8xbf16>
    %202 = arith.truncf %199 : vector<8x8xf32> to vector<8x8xbf16>
    %cst_77 = arith.constant dense<0.000000e+00> : vector<8x8xf32>
    %203 = tpu.matmul %201, %202, %cst_77 {dimension_numbers = #tpu.dot_dimension_numbers<[1], [1], [0], [0], [0, 0, 1, 0], [], []>} : vector<8x8xbf16>, vector<8x8xbf16>, vector<8x8xf32> -> vector<8x8xf32>
    %cst_78 = arith.constant 0.353553385 : f32
    %204 = vector.broadcast %cst_78 : f32 to vector<8x8xf32>
    %205 = arith.mulf %203, %204 : vector<8x8xf32>
    %cst_79 = arith.constant -1.000000e+30 : f32
    %206 = vector.shape_cast %72 : vector<1x8xi1> to vector<1x8xi1>
    %207 = vector.broadcast %206 : vector<1x8xi1> to vector<8x8xi1>
    %208 = vector.broadcast %cst_79 : f32 to vector<8x8xf32>
    %209 = arith.select %207, %205, %208 : vector<8x8xi1>, vector<8x8xf32>
    %cst_80 = arith.constant dense<0xFF800000> : vector<8xf32>
    %210 = vector.multi_reduction <maximumf>, %209, %cst_80 [1] : vector<8x8xf32> to vector<8xf32>
    %211 = vector.shape_cast %210 : vector<8xf32> to vector<8x1xf32>
    %212 = vector.broadcast %211 : vector<8x1xf32> to vector<8x8xf32>
    %213 = arith.subf %209, %212 : vector<8x8xf32>
    %214 = math.exp %213 : vector<8x8xf32>
    %cst_81 = arith.constant dense<0.000000e+00> : vector<8xf32>
    %215 = vector.multi_reduction <add>, %214, %cst_81 [1] : vector<8x8xf32> to vector<8xf32>
    %216 = vector.shape_cast %215 : vector<8xf32> to vector<8x1xf32>
    %217 = tpu.reciprocal %216 {approx = true} : vector<8x1xf32> -> vector<8x1xf32>
    %218 = vector.broadcast %217 : vector<8x1xf32> to vector<8x8xf32>
    %219 = arith.mulf %214, %218 : vector<8x8xf32>
    %cst_82 = arith.constant 0.000000e+00 : f32
    %220 = vector.shape_cast %72 : vector<1x8xi1> to vector<1x8xi1>
    %221 = vector.broadcast %220 : vector<1x8xi1> to vector<8x8xi1>
    %222 = vector.broadcast %cst_82 : f32 to vector<8x8xf32>
    %223 = arith.select %221, %219, %222 : vector<8x8xi1>, vector<8x8xf32>
    %224 = arith.truncf %223 : vector<8x8xf32> to vector<8x8xbf16>
    %225 = arith.truncf %200 : vector<8x8xf32> to vector<8x8xbf16>
    %cst_83 = arith.constant dense<0.000000e+00> : vector<8x8xf32>
    %226 = tpu.matmul %224, %225, %cst_83 {dimension_numbers = #tpu.dot_dimension_numbers<[1], [0], [0], [1], [0, 0, 1, 1], [], []>} : vector<8x8xbf16>, vector<8x8xbf16>, vector<8x8xf32> -> vector<8x8xf32>
    %227 = vector.extract_strided_slice %94 {offsets = [24, 0], sizes = [8, 32], strides = [1, 1]} : vector<32x32xf32> to vector<8x32xf32>
    %228 = arith.truncf %226 : vector<8x8xf32> to vector<8x8xbf16>
    %229 = arith.truncf %227 : vector<8x32xf32> to vector<8x32xbf16>
    %cst_84 = arith.constant dense<0.000000e+00> : vector<8x32xf32>
    %230 = tpu.matmul %228, %229, %cst_84 {dimension_numbers = #tpu.dot_dimension_numbers<[1], [0], [0], [1], [0, 0, 1, 1], [], []>} : vector<8x8xbf16>, vector<8x32xbf16>, vector<8x32xf32> -> vector<8x32xf32>
    %231 = arith.addf %197, %230 : vector<8x32xf32>
    %c0_85 = arith.constant 0 : index
    %c0_86 = arith.constant 0 : index
    %232 = vector.load %arg18[%c0_85, %c0_86] : memref<1x32xf32, #tpu.memory_space<vmem>>, vector<1x32xf32>
    %233 = vector.broadcast %232 : vector<1x32xf32> to vector<8x32xf32>
    %234 = arith.addf %231, %233 : vector<8x32xf32>
    %c0_87 = arith.constant 0 : index
    %c0_88 = arith.constant 0 : index
    %235 = vector.load %arg19[%c0_87, %c0_88] : memref<1x32xf32, #tpu.memory_space<vmem>>, vector<1x32xf32>
    %c0_89 = arith.constant 0 : index
    %c0_90 = arith.constant 0 : index
    %236 = vector.load %arg20[%c0_89, %c0_90] : memref<1x32xf32, #tpu.memory_space<vmem>>, vector<1x32xf32>
    %cst_91 = arith.constant dense<0.000000e+00> : vector<8xf32>
    %237 = vector.multi_reduction <add>, %46, %cst_91 [1] : vector<8x32xf32> to vector<8xf32>
    %238 = vector.shape_cast %237 : vector<8xf32> to vector<8x1xf32>
    %cst_92 = arith.constant 3.200000e+01 : f32
    %239 = vector.broadcast %cst_92 : f32 to vector<8x1xf32>
    %240 = arith.divf %238, %239 : vector<8x1xf32>
    %241 = vector.broadcast %240 : vector<8x1xf32> to vector<8x32xf32>
    %242 = arith.subf %46, %241 : vector<8x32xf32>
    %243 = arith.mulf %242, %242 : vector<8x32xf32>
    %cst_93 = arith.constant dense<0.000000e+00> : vector<8xf32>
    %244 = vector.multi_reduction <add>, %243, %cst_93 [1] : vector<8x32xf32> to vector<8xf32>
    %245 = vector.shape_cast %244 : vector<8xf32> to vector<8x1xf32>
    %cst_94 = arith.constant 3.200000e+01 : f32
    %246 = vector.broadcast %cst_94 : f32 to vector<8x1xf32>
    %247 = arith.divf %245, %246 : vector<8x1xf32>
    %248 = vector.broadcast %240 : vector<8x1xf32> to vector<8x32xf32>
    %249 = arith.subf %46, %248 : vector<8x32xf32>
    %cst_95 = arith.constant 9.99999974E-6 : f32
    %250 = vector.broadcast %cst_95 : f32 to vector<8x1xf32>
    %251 = arith.addf %247, %250 : vector<8x1xf32>
    %252 = math.rsqrt %251 : vector<8x1xf32>
    %253 = vector.broadcast %252 : vector<8x1xf32> to vector<8x32xf32>
    %254 = arith.mulf %249, %253 : vector<8x32xf32>
    %255 = vector.broadcast %235 : vector<1x32xf32> to vector<8x32xf32>
    %256 = arith.mulf %254, %255 : vector<8x32xf32>
    %257 = vector.broadcast %236 : vector<1x32xf32> to vector<8x32xf32>
    %258 = arith.addf %256, %257 : vector<8x32xf32>
    %c0_96 = arith.constant 0 : index
    %c0_97 = arith.constant 0 : index
    %259 = vector.load %arg21[%c0_96, %c0_97] : memref<32x32xf32, #tpu.memory_space<vmem>>, vector<32x32xf32>
    %260 = arith.truncf %258 : vector<8x32xf32> to vector<8x32xbf16>
    %261 = arith.truncf %259 : vector<32x32xf32> to vector<32x32xbf16>
    %cst_98 = arith.constant dense<0.000000e+00> : vector<8x32xf32>
    %262 = tpu.matmul %260, %261, %cst_98 {dimension_numbers = #tpu.dot_dimension_numbers<[1], [0], [0], [1], [0, 0, 1, 1], [], []>} : vector<8x32xbf16>, vector<32x32xbf16>, vector<8x32xf32> -> vector<8x32xf32>
    %c0_99 = arith.constant 0 : index
    %c0_100 = arith.constant 0 : index
    %263 = vector.load %arg22[%c0_99, %c0_100] : memref<1x32xf32, #tpu.memory_space<vmem>>, vector<1x32xf32>
    %264 = vector.broadcast %263 : vector<1x32xf32> to vector<8x32xf32>
    %265 = arith.addf %262, %264 : vector<8x32xf32>
    %266 = arith.mulf %265, %265 : vector<8x32xf32>
    %267 = arith.mulf %265, %266 : vector<8x32xf32>
    %cst_101 = arith.constant 4.471500e-02 : f32
    %268 = vector.broadcast %cst_101 : f32 to vector<8x32xf32>
    %269 = arith.mulf %268, %267 : vector<8x32xf32>
    %270 = arith.addf %265, %269 : vector<8x32xf32>
    %cst_102 = arith.constant 0.797884583 : f32
    %271 = vector.broadcast %cst_102 : f32 to vector<8x32xf32>
    %272 = arith.mulf %271, %270 : vector<8x32xf32>
    %273 = math.tanh %272 : vector<8x32xf32>
    %cst_103 = arith.constant 1.000000e+00 : f32
    %274 = vector.broadcast %cst_103 : f32 to vector<8x32xf32>
    %275 = arith.addf %274, %273 : vector<8x32xf32>
    %cst_104 = arith.constant 5.000000e-01 : f32
    %276 = vector.broadcast %cst_104 : f32 to vector<8x32xf32>
    %277 = arith.mulf %276, %275 : vector<8x32xf32>
    %278 = arith.mulf %265, %277 : vector<8x32xf32>
    %c0_105 = arith.constant 0 : index
    %c0_106 = arith.constant 0 : index
    %279 = vector.load %arg23[%c0_105, %c0_106] : memref<32x32xf32, #tpu.memory_space<vmem>>, vector<32x32xf32>
    %280 = arith.truncf %258 : vector<8x32xf32> to vector<8x32xbf16>
    %281 = arith.truncf %279 : vector<32x32xf32> to vector<32x32xbf16>
    %cst_107 = arith.constant dense<0.000000e+00> : vector<8x32xf32>
    %282 = tpu.matmul %280, %281, %cst_107 {dimension_numbers = #tpu.dot_dimension_numbers<[1], [0], [0], [1], [0, 0, 1, 1], [], []>} : vector<8x32xbf16>, vector<32x32xbf16>, vector<8x32xf32> -> vector<8x32xf32>
    %c0_108 = arith.constant 0 : index
    %c0_109 = arith.constant 0 : index
    %283 = vector.load %arg24[%c0_108, %c0_109] : memref<1x32xf32, #tpu.memory_space<vmem>>, vector<1x32xf32>
    %284 = vector.broadcast %283 : vector<1x32xf32> to vector<8x32xf32>
    %285 = arith.addf %282, %284 : vector<8x32xf32>
    %286 = arith.mulf %285, %285 : vector<8x32xf32>
    %287 = arith.mulf %285, %286 : vector<8x32xf32>
    %cst_110 = arith.constant 4.471500e-02 : f32
    %288 = vector.broadcast %cst_110 : f32 to vector<8x32xf32>
    %289 = arith.mulf %288, %287 : vector<8x32xf32>
    %290 = arith.addf %285, %289 : vector<8x32xf32>
    %cst_111 = arith.constant 0.797884583 : f32
    %291 = vector.broadcast %cst_111 : f32 to vector<8x32xf32>
    %292 = arith.mulf %291, %290 : vector<8x32xf32>
    %293 = math.tanh %292 : vector<8x32xf32>
    %cst_112 = arith.constant 1.000000e+00 : f32
    %294 = vector.broadcast %cst_112 : f32 to vector<8x32xf32>
    %295 = arith.addf %294, %293 : vector<8x32xf32>
    %cst_113 = arith.constant 5.000000e-01 : f32
    %296 = vector.broadcast %cst_113 : f32 to vector<8x32xf32>
    %297 = arith.mulf %296, %295 : vector<8x32xf32>
    %298 = arith.mulf %285, %297 : vector<8x32xf32>
    %c0_114 = arith.constant 0 : index
    %c0_115 = arith.constant 0 : index
    %299 = vector.load %arg25[%c0_114, %c0_115] : memref<1x32xf32, #tpu.memory_space<vmem>>, vector<1x32xf32>
    %c0_116 = arith.constant 0 : index
    %c0_117 = arith.constant 0 : index
    %300 = vector.load %arg26[%c0_116, %c0_117] : memref<1x32xf32, #tpu.memory_space<vmem>>, vector<1x32xf32>
    %cst_118 = arith.constant dense<0.000000e+00> : vector<8xf32>
    %301 = vector.multi_reduction <add>, %298, %cst_118 [1] : vector<8x32xf32> to vector<8xf32>
    %302 = vector.shape_cast %301 : vector<8xf32> to vector<8x1xf32>
    %cst_119 = arith.constant 3.200000e+01 : f32
    %303 = vector.broadcast %cst_119 : f32 to vector<8x1xf32>
    %304 = arith.divf %302, %303 : vector<8x1xf32>
    %305 = vector.broadcast %304 : vector<8x1xf32> to vector<8x32xf32>
    %306 = arith.subf %298, %305 : vector<8x32xf32>
    %307 = arith.mulf %306, %306 : vector<8x32xf32>
    %cst_120 = arith.constant dense<0.000000e+00> : vector<8xf32>
    %308 = vector.multi_reduction <add>, %307, %cst_120 [1] : vector<8x32xf32> to vector<8xf32>
    %309 = vector.shape_cast %308 : vector<8xf32> to vector<8x1xf32>
    %cst_121 = arith.constant 3.200000e+01 : f32
    %310 = vector.broadcast %cst_121 : f32 to vector<8x1xf32>
    %311 = arith.divf %309, %310 : vector<8x1xf32>
    %312 = vector.broadcast %304 : vector<8x1xf32> to vector<8x32xf32>
    %313 = arith.subf %298, %312 : vector<8x32xf32>
    %cst_122 = arith.constant 9.99999974E-6 : f32
    %314 = vector.broadcast %cst_122 : f32 to vector<8x1xf32>
    %315 = arith.addf %311, %314 : vector<8x1xf32>
    %316 = math.rsqrt %315 : vector<8x1xf32>
    %317 = vector.broadcast %316 : vector<8x1xf32> to vector<8x32xf32>
    %318 = arith.mulf %313, %317 : vector<8x32xf32>
    %319 = vector.broadcast %299 : vector<1x32xf32> to vector<8x32xf32>
    %320 = arith.mulf %318, %319 : vector<8x32xf32>
    %321 = vector.broadcast %300 : vector<1x32xf32> to vector<8x32xf32>
    %322 = arith.addf %320, %321 : vector<8x32xf32>
    %c0_123 = arith.constant 0 : index
    %c0_124 = arith.constant 0 : index
    %c0_125 = arith.constant 0 : index
    %323 = vector.load %arg27[%c0_123, %c0_124, %c0_125] : memref<3x1x32xf32, #tpu.memory_space<vmem>>, vector<3x1x32xf32>
    %c0_126 = arith.constant 0 : index
    %c0_127 = arith.constant 0 : index
    %324 = vector.load %arg28[%c0_126, %c0_127] : memref<1x32xf32, #tpu.memory_space<vmem>>, vector<1x32xf32>
    %325 = tpu.iota {dimensions = array<i32: 0>} : vector<8x1xi32>
    %326 = vector.shape_cast %324 : vector<1x32xf32> to vector<1x32xf32>
    %327 = vector.broadcast %326 : vector<1x32xf32> to vector<8x32xf32>
    %c1_i32 = arith.constant 1 : i32
    %328 = tpu.dynamic_rotate %322 by %c1_i32 dim 0 : vector<8x32xf32>, i32 -> vector<8x32xf32>
    %c-1_i32 = arith.constant -1 : i32
    %329 = vector.broadcast %c-1_i32 : i32 to vector<8x1xi32>
    %330 = arith.addi %325, %329 : vector<8x1xi32>
    %c0_i32 = arith.constant 0 : i32
    %331 = vector.broadcast %c0_i32 : i32 to vector<8x1xi32>
    %332 = arith.cmpi sge, %330, %331 : vector<8x1xi32>
    %c-1_i32_128 = arith.constant -1 : i32
    %333 = vector.broadcast %c-1_i32_128 : i32 to vector<8x1xi32>
    %334 = arith.addi %325, %333 : vector<8x1xi32>
    %c8_i32 = arith.constant 8 : i32
    %335 = vector.broadcast %c8_i32 : i32 to vector<8x1xi32>
    %336 = arith.cmpi slt, %334, %335 : vector<8x1xi32>
    %337 = arith.andi %332, %336 : vector<8x1xi1>
    %cst_129 = arith.constant 0.000000e+00 : f32
    %338 = vector.shape_cast %337 : vector<8x1xi1> to vector<8x1xi1>
    %339 = vector.broadcast %338 : vector<8x1xi1> to vector<8x32xi1>
    %340 = vector.broadcast %cst_129 : f32 to vector<8x32xf32>
    %341 = arith.select %339, %328, %340 : vector<8x32xi1>, vector<8x32xf32>
    %342 = vector.extract_strided_slice %323 {offsets = [0, 0, 0], sizes = [1, 1, 32], strides = [1, 1, 1]} : vector<3x1x32xf32> to vector<1x1x32xf32>
    %343 = vector.shape_cast %342 : vector<1x1x32xf32> to vector<1x32xf32>
    %344 = vector.broadcast %343 : vector<1x32xf32> to vector<8x32xf32>
    %345 = arith.mulf %341, %344 : vector<8x32xf32>
    %346 = arith.addf %327, %345 : vector<8x32xf32>
    %347 = vector.extract_strided_slice %323 {offsets = [1, 0, 0], sizes = [1, 1, 32], strides = [1, 1, 1]} : vector<3x1x32xf32> to vector<1x1x32xf32>
    %348 = vector.shape_cast %347 : vector<1x1x32xf32> to vector<1x32xf32>
    %349 = vector.broadcast %348 : vector<1x32xf32> to vector<8x32xf32>
    %350 = arith.mulf %322, %349 : vector<8x32xf32>
    %351 = arith.addf %346, %350 : vector<8x32xf32>
    %c7_i32 = arith.constant 7 : i32
    %352 = tpu.dynamic_rotate %322 by %c7_i32 dim 0 : vector<8x32xf32>, i32 -> vector<8x32xf32>
    %c1_i32_130 = arith.constant 1 : i32
    %353 = vector.broadcast %c1_i32_130 : i32 to vector<8x1xi32>
    %354 = arith.addi %325, %353 : vector<8x1xi32>
    %c0_i32_131 = arith.constant 0 : i32
    %355 = vector.broadcast %c0_i32_131 : i32 to vector<8x1xi32>
    %356 = arith.cmpi sge, %354, %355 : vector<8x1xi32>
    %c1_i32_132 = arith.constant 1 : i32
    %357 = vector.broadcast %c1_i32_132 : i32 to vector<8x1xi32>
    %358 = arith.addi %325, %357 : vector<8x1xi32>
    %c8_i32_133 = arith.constant 8 : i32
    %359 = vector.broadcast %c8_i32_133 : i32 to vector<8x1xi32>
    %360 = arith.cmpi slt, %358, %359 : vector<8x1xi32>
    %361 = arith.andi %356, %360 : vector<8x1xi1>
    %cst_134 = arith.constant 0.000000e+00 : f32
    %362 = vector.shape_cast %361 : vector<8x1xi1> to vector<8x1xi1>
    %363 = vector.broadcast %362 : vector<8x1xi1> to vector<8x32xi1>
    %364 = vector.broadcast %cst_134 : f32 to vector<8x32xf32>
    %365 = arith.select %363, %352, %364 : vector<8x32xi1>, vector<8x32xf32>
    %366 = vector.extract_strided_slice %323 {offsets = [2, 0, 0], sizes = [1, 1, 32], strides = [1, 1, 1]} : vector<3x1x32xf32> to vector<1x1x32xf32>
    %367 = vector.shape_cast %366 : vector<1x1x32xf32> to vector<1x32xf32>
    %368 = vector.broadcast %367 : vector<1x32xf32> to vector<8x32xf32>
    %369 = arith.mulf %365, %368 : vector<8x32xf32>
    %370 = arith.addf %351, %369 : vector<8x32xf32>
    %371 = arith.mulf %278, %370 : vector<8x32xf32>
    %c0_135 = arith.constant 0 : index
    %c0_136 = arith.constant 0 : index
    %372 = vector.load %arg29[%c0_135, %c0_136] : memref<32x32xf32, #tpu.memory_space<vmem>>, vector<32x32xf32>
    %373 = arith.truncf %371 : vector<8x32xf32> to vector<8x32xbf16>
    %374 = arith.truncf %372 : vector<32x32xf32> to vector<32x32xbf16>
    %cst_137 = arith.constant dense<0.000000e+00> : vector<8x32xf32>
    %375 = tpu.matmul %373, %374, %cst_137 {dimension_numbers = #tpu.dot_dimension_numbers<[1], [0], [0], [1], [0, 0, 1, 1], [], []>} : vector<8x32xbf16>, vector<32x32xbf16>, vector<8x32xf32> -> vector<8x32xf32>
    %c0_138 = arith.constant 0 : index
    %c0_139 = arith.constant 0 : index
    %376 = vector.load %arg30[%c0_138, %c0_139] : memref<1x32xf32, #tpu.memory_space<vmem>>, vector<1x32xf32>
    %377 = vector.broadcast %376 : vector<1x32xf32> to vector<8x32xf32>
    %378 = arith.addf %375, %377 : vector<8x32xf32>
    %c0_140 = arith.constant 0 : index
    %c0_141 = arith.constant 0 : index
    %c0_142 = arith.constant 0 : index
    %379 = vector.load %arg31[%c0_140, %c0_141, %c0_142] : memref<3x1x32xf32, #tpu.memory_space<vmem>>, vector<3x1x32xf32>
    %c0_143 = arith.constant 0 : index
    %c0_144 = arith.constant 0 : index
    %380 = vector.load %arg32[%c0_143, %c0_144] : memref<1x32xf32, #tpu.memory_space<vmem>>, vector<1x32xf32>
    %381 = tpu.iota {dimensions = array<i32: 0>} : vector<8x1xi32>
    %382 = vector.shape_cast %380 : vector<1x32xf32> to vector<1x32xf32>
    %383 = vector.broadcast %382 : vector<1x32xf32> to vector<8x32xf32>
    %c1_i32_145 = arith.constant 1 : i32
    %384 = tpu.dynamic_rotate %234 by %c1_i32_145 dim 0 : vector<8x32xf32>, i32 -> vector<8x32xf32>
    %c-1_i32_146 = arith.constant -1 : i32
    %385 = vector.broadcast %c-1_i32_146 : i32 to vector<8x1xi32>
    %386 = arith.addi %381, %385 : vector<8x1xi32>
    %c0_i32_147 = arith.constant 0 : i32
    %387 = vector.broadcast %c0_i32_147 : i32 to vector<8x1xi32>
    %388 = arith.cmpi sge, %386, %387 : vector<8x1xi32>
    %c-1_i32_148 = arith.constant -1 : i32
    %389 = vector.broadcast %c-1_i32_148 : i32 to vector<8x1xi32>
    %390 = arith.addi %381, %389 : vector<8x1xi32>
    %c8_i32_149 = arith.constant 8 : i32
    %391 = vector.broadcast %c8_i32_149 : i32 to vector<8x1xi32>
    %392 = arith.cmpi slt, %390, %391 : vector<8x1xi32>
    %393 = arith.andi %388, %392 : vector<8x1xi1>
    %cst_150 = arith.constant 0.000000e+00 : f32
    %394 = vector.shape_cast %393 : vector<8x1xi1> to vector<8x1xi1>
    %395 = vector.broadcast %394 : vector<8x1xi1> to vector<8x32xi1>
    %396 = vector.broadcast %cst_150 : f32 to vector<8x32xf32>
    %397 = arith.select %395, %384, %396 : vector<8x32xi1>, vector<8x32xf32>
    %398 = vector.extract_strided_slice %379 {offsets = [0, 0, 0], sizes = [1, 1, 32], strides = [1, 1, 1]} : vector<3x1x32xf32> to vector<1x1x32xf32>
    %399 = vector.shape_cast %398 : vector<1x1x32xf32> to vector<1x32xf32>
    %400 = vector.broadcast %399 : vector<1x32xf32> to vector<8x32xf32>
    %401 = arith.mulf %397, %400 : vector<8x32xf32>
    %402 = arith.addf %383, %401 : vector<8x32xf32>
    %403 = vector.extract_strided_slice %379 {offsets = [1, 0, 0], sizes = [1, 1, 32], strides = [1, 1, 1]} : vector<3x1x32xf32> to vector<1x1x32xf32>
    %404 = vector.shape_cast %403 : vector<1x1x32xf32> to vector<1x32xf32>
    %405 = vector.broadcast %404 : vector<1x32xf32> to vector<8x32xf32>
    %406 = arith.mulf %234, %405 : vector<8x32xf32>
    %407 = arith.addf %402, %406 : vector<8x32xf32>
    %c7_i32_151 = arith.constant 7 : i32
    %408 = tpu.dynamic_rotate %234 by %c7_i32_151 dim 0 : vector<8x32xf32>, i32 -> vector<8x32xf32>
    %c1_i32_152 = arith.constant 1 : i32
    %409 = vector.broadcast %c1_i32_152 : i32 to vector<8x1xi32>
    %410 = arith.addi %381, %409 : vector<8x1xi32>
    %c0_i32_153 = arith.constant 0 : i32
    %411 = vector.broadcast %c0_i32_153 : i32 to vector<8x1xi32>
    %412 = arith.cmpi sge, %410, %411 : vector<8x1xi32>
    %c1_i32_154 = arith.constant 1 : i32
    %413 = vector.broadcast %c1_i32_154 : i32 to vector<8x1xi32>
    %414 = arith.addi %381, %413 : vector<8x1xi32>
    %c8_i32_155 = arith.constant 8 : i32
    %415 = vector.broadcast %c8_i32_155 : i32 to vector<8x1xi32>
    %416 = arith.cmpi slt, %414, %415 : vector<8x1xi32>
    %417 = arith.andi %412, %416 : vector<8x1xi1>
    %cst_156 = arith.constant 0.000000e+00 : f32
    %418 = vector.shape_cast %417 : vector<8x1xi1> to vector<8x1xi1>
    %419 = vector.broadcast %418 : vector<8x1xi1> to vector<8x32xi1>
    %420 = vector.broadcast %cst_156 : f32 to vector<8x32xf32>
    %421 = arith.select %419, %408, %420 : vector<8x32xi1>, vector<8x32xf32>
    %422 = vector.extract_strided_slice %379 {offsets = [2, 0, 0], sizes = [1, 1, 32], strides = [1, 1, 1]} : vector<3x1x32xf32> to vector<1x1x32xf32>
    %423 = vector.shape_cast %422 : vector<1x1x32xf32> to vector<1x32xf32>
    %424 = vector.broadcast %423 : vector<1x32xf32> to vector<8x32xf32>
    %425 = arith.mulf %421, %424 : vector<8x32xf32>
    %426 = arith.addf %407, %425 : vector<8x32xf32>
    %c0_157 = arith.constant 0 : index
    %c0_158 = arith.constant 0 : index
    %c0_159 = arith.constant 0 : index
    %427 = vector.load %arg33[%c0_157, %c0_158, %c0_159] : memref<3x1x32xf32, #tpu.memory_space<vmem>>, vector<3x1x32xf32>
    %c0_160 = arith.constant 0 : index
    %c0_161 = arith.constant 0 : index
    %428 = vector.load %arg34[%c0_160, %c0_161] : memref<1x32xf32, #tpu.memory_space<vmem>>, vector<1x32xf32>
    %429 = tpu.iota {dimensions = array<i32: 0>} : vector<8x1xi32>
    %430 = vector.shape_cast %428 : vector<1x32xf32> to vector<1x32xf32>
    %431 = vector.broadcast %430 : vector<1x32xf32> to vector<8x32xf32>
    %c1_i32_162 = arith.constant 1 : i32
    %432 = tpu.dynamic_rotate %378 by %c1_i32_162 dim 0 : vector<8x32xf32>, i32 -> vector<8x32xf32>
    %c-1_i32_163 = arith.constant -1 : i32
    %433 = vector.broadcast %c-1_i32_163 : i32 to vector<8x1xi32>
    %434 = arith.addi %429, %433 : vector<8x1xi32>
    %c0_i32_164 = arith.constant 0 : i32
    %435 = vector.broadcast %c0_i32_164 : i32 to vector<8x1xi32>
    %436 = arith.cmpi sge, %434, %435 : vector<8x1xi32>
    %c-1_i32_165 = arith.constant -1 : i32
    %437 = vector.broadcast %c-1_i32_165 : i32 to vector<8x1xi32>
    %438 = arith.addi %429, %437 : vector<8x1xi32>
    %c8_i32_166 = arith.constant 8 : i32
    %439 = vector.broadcast %c8_i32_166 : i32 to vector<8x1xi32>
    %440 = arith.cmpi slt, %438, %439 : vector<8x1xi32>
    %441 = arith.andi %436, %440 : vector<8x1xi1>
    %cst_167 = arith.constant 0.000000e+00 : f32
    %442 = vector.shape_cast %441 : vector<8x1xi1> to vector<8x1xi1>
    %443 = vector.broadcast %442 : vector<8x1xi1> to vector<8x32xi1>
    %444 = vector.broadcast %cst_167 : f32 to vector<8x32xf32>
    %445 = arith.select %443, %432, %444 : vector<8x32xi1>, vector<8x32xf32>
    %446 = vector.extract_strided_slice %427 {offsets = [0, 0, 0], sizes = [1, 1, 32], strides = [1, 1, 1]} : vector<3x1x32xf32> to vector<1x1x32xf32>
    %447 = vector.shape_cast %446 : vector<1x1x32xf32> to vector<1x32xf32>
    %448 = vector.broadcast %447 : vector<1x32xf32> to vector<8x32xf32>
    %449 = arith.mulf %445, %448 : vector<8x32xf32>
    %450 = arith.addf %431, %449 : vector<8x32xf32>
    %451 = vector.extract_strided_slice %427 {offsets = [1, 0, 0], sizes = [1, 1, 32], strides = [1, 1, 1]} : vector<3x1x32xf32> to vector<1x1x32xf32>
    %452 = vector.shape_cast %451 : vector<1x1x32xf32> to vector<1x32xf32>
    %453 = vector.broadcast %452 : vector<1x32xf32> to vector<8x32xf32>
    %454 = arith.mulf %378, %453 : vector<8x32xf32>
    %455 = arith.addf %450, %454 : vector<8x32xf32>
    %c7_i32_168 = arith.constant 7 : i32
    %456 = tpu.dynamic_rotate %378 by %c7_i32_168 dim 0 : vector<8x32xf32>, i32 -> vector<8x32xf32>
    %c1_i32_169 = arith.constant 1 : i32
    %457 = vector.broadcast %c1_i32_169 : i32 to vector<8x1xi32>
    %458 = arith.addi %429, %457 : vector<8x1xi32>
    %c0_i32_170 = arith.constant 0 : i32
    %459 = vector.broadcast %c0_i32_170 : i32 to vector<8x1xi32>
    %460 = arith.cmpi sge, %458, %459 : vector<8x1xi32>
    %c1_i32_171 = arith.constant 1 : i32
    %461 = vector.broadcast %c1_i32_171 : i32 to vector<8x1xi32>
    %462 = arith.addi %429, %461 : vector<8x1xi32>
    %c8_i32_172 = arith.constant 8 : i32
    %463 = vector.broadcast %c8_i32_172 : i32 to vector<8x1xi32>
    %464 = arith.cmpi slt, %462, %463 : vector<8x1xi32>
    %465 = arith.andi %460, %464 : vector<8x1xi1>
    %cst_173 = arith.constant 0.000000e+00 : f32
    %466 = vector.shape_cast %465 : vector<8x1xi1> to vector<8x1xi1>
    %467 = vector.broadcast %466 : vector<8x1xi1> to vector<8x32xi1>
    %468 = vector.broadcast %cst_173 : f32 to vector<8x32xf32>
    %469 = arith.select %467, %456, %468 : vector<8x32xi1>, vector<8x32xf32>
    %470 = vector.extract_strided_slice %427 {offsets = [2, 0, 0], sizes = [1, 1, 32], strides = [1, 1, 1]} : vector<3x1x32xf32> to vector<1x1x32xf32>
    %471 = vector.shape_cast %470 : vector<1x1x32xf32> to vector<1x32xf32>
    %472 = vector.broadcast %471 : vector<1x32xf32> to vector<8x32xf32>
    %473 = arith.mulf %469, %472 : vector<8x32xf32>
    %474 = arith.addf %455, %473 : vector<8x32xf32>
    %475 = arith.addf %234, %426 : vector<8x32xf32>
    %c0_174 = arith.constant 0 : index
    %c0_175 = arith.constant 0 : index
    %476 = vector.load %arg35[%c0_174, %c0_175] : memref<32x32xf32, #tpu.memory_space<vmem>>, vector<32x32xf32>
    %477 = arith.truncf %475 : vector<8x32xf32> to vector<8x32xbf16>
    %478 = arith.truncf %476 : vector<32x32xf32> to vector<32x32xbf16>
    %cst_176 = arith.constant dense<0.000000e+00> : vector<8x32xf32>
    %479 = tpu.matmul %477, %478, %cst_176 {dimension_numbers = #tpu.dot_dimension_numbers<[1], [0], [0], [1], [0, 0, 1, 1], [], []>} : vector<8x32xbf16>, vector<32x32xbf16>, vector<8x32xf32> -> vector<8x32xf32>
    %480 = arith.addf %378, %474 : vector<8x32xf32>
    %c0_177 = arith.constant 0 : index
    %c0_178 = arith.constant 0 : index
    %481 = vector.load %arg36[%c0_177, %c0_178] : memref<32x32xf32, #tpu.memory_space<vmem>>, vector<32x32xf32>
    %482 = arith.truncf %480 : vector<8x32xf32> to vector<8x32xbf16>
    %483 = arith.truncf %481 : vector<32x32xf32> to vector<32x32xbf16>
    %cst_179 = arith.constant dense<0.000000e+00> : vector<8x32xf32>
    %484 = tpu.matmul %482, %483, %cst_179 {dimension_numbers = #tpu.dot_dimension_numbers<[1], [0], [0], [1], [0, 0, 1, 1], [], []>} : vector<8x32xbf16>, vector<32x32xbf16>, vector<8x32xf32> -> vector<8x32xf32>
    %485 = arith.addf %479, %484 : vector<8x32xf32>
    %c0_180 = arith.constant 0 : index
    %c0_181 = arith.constant 0 : index
    %486 = vector.load %arg37[%c0_180, %c0_181] : memref<1x32xf32, #tpu.memory_space<vmem>>, vector<1x32xf32>
    %487 = vector.broadcast %486 : vector<1x32xf32> to vector<8x32xf32>
    %488 = arith.addf %485, %487 : vector<8x32xf32>
    %489 = arith.addf %46, %488 : vector<8x32xf32>
    %c0_182 = arith.constant 0 : index
    %c0_183 = arith.constant 0 : index
    %490 = vector.load %arg38[%c0_182, %c0_183] : memref<1x32xf32, #tpu.memory_space<vmem>>, vector<1x32xf32>
    %c0_184 = arith.constant 0 : index
    %c0_185 = arith.constant 0 : index
    %491 = vector.load %arg39[%c0_184, %c0_185] : memref<1x32xf32, #tpu.memory_space<vmem>>, vector<1x32xf32>
    %cst_186 = arith.constant dense<0.000000e+00> : vector<8xf32>
    %492 = vector.multi_reduction <add>, %489, %cst_186 [1] : vector<8x32xf32> to vector<8xf32>
    %493 = vector.shape_cast %492 : vector<8xf32> to vector<8x1xf32>
    %cst_187 = arith.constant 3.200000e+01 : f32
    %494 = vector.broadcast %cst_187 : f32 to vector<8x1xf32>
    %495 = arith.divf %493, %494 : vector<8x1xf32>
    %496 = vector.broadcast %495 : vector<8x1xf32> to vector<8x32xf32>
    %497 = arith.subf %489, %496 : vector<8x32xf32>
    %498 = arith.mulf %497, %497 : vector<8x32xf32>
    %cst_188 = arith.constant dense<0.000000e+00> : vector<8xf32>
    %499 = vector.multi_reduction <add>, %498, %cst_188 [1] : vector<8x32xf32> to vector<8xf32>
    %500 = vector.shape_cast %499 : vector<8xf32> to vector<8x1xf32>
    %cst_189 = arith.constant 3.200000e+01 : f32
    %501 = vector.broadcast %cst_189 : f32 to vector<8x1xf32>
    %502 = arith.divf %500, %501 : vector<8x1xf32>
    %503 = vector.broadcast %495 : vector<8x1xf32> to vector<8x32xf32>
    %504 = arith.subf %489, %503 : vector<8x32xf32>
    %cst_190 = arith.constant 9.99999974E-6 : f32
    %505 = vector.broadcast %cst_190 : f32 to vector<8x1xf32>
    %506 = arith.addf %502, %505 : vector<8x1xf32>
    %507 = math.rsqrt %506 : vector<8x1xf32>
    %508 = vector.broadcast %507 : vector<8x1xf32> to vector<8x32xf32>
    %509 = arith.mulf %504, %508 : vector<8x32xf32>
    %510 = vector.broadcast %490 : vector<1x32xf32> to vector<8x32xf32>
    %511 = arith.mulf %509, %510 : vector<8x32xf32>
    %512 = vector.broadcast %491 : vector<1x32xf32> to vector<8x32xf32>
    %513 = arith.addf %511, %512 : vector<8x32xf32>
    %c0_191 = arith.constant 0 : index
    %c0_192 = arith.constant 0 : index
    %514 = vector.load %arg40[%c0_191, %c0_192] : memref<32x64xf32, #tpu.memory_space<vmem>>, vector<32x64xf32>
    %515 = arith.truncf %513 : vector<8x32xf32> to vector<8x32xbf16>
    %516 = arith.truncf %514 : vector<32x64xf32> to vector<32x64xbf16>
    %cst_193 = arith.constant dense<0.000000e+00> : vector<8x64xf32>
    %517 = tpu.matmul %515, %516, %cst_193 {dimension_numbers = #tpu.dot_dimension_numbers<[1], [0], [0], [1], [0, 0, 1, 1], [], []>} : vector<8x32xbf16>, vector<32x64xbf16>, vector<8x64xf32> -> vector<8x64xf32>
    %c0_194 = arith.constant 0 : index
    %c0_195 = arith.constant 0 : index
    %518 = vector.load %arg41[%c0_194, %c0_195] : memref<1x64xf32, #tpu.memory_space<vmem>>, vector<1x64xf32>
    %519 = vector.broadcast %518 : vector<1x64xf32> to vector<8x64xf32>
    %520 = arith.addf %517, %519 : vector<8x64xf32>
    %cst_196 = arith.constant 0.000000e+00 : f32
    %521 = vector.broadcast %cst_196 : f32 to vector<8x64xf32>
    %522 = arith.maximumf %520, %521 : vector<8x64xf32>
    %c0_197 = arith.constant 0 : index
    %c0_198 = arith.constant 0 : index
    %523 = vector.load %arg42[%c0_197, %c0_198] : memref<64x32xf32, #tpu.memory_space<vmem>>, vector<64x32xf32>
    %524 = arith.truncf %522 : vector<8x64xf32> to vector<8x64xbf16>
    %525 = arith.truncf %523 : vector<64x32xf32> to vector<64x32xbf16>
    %cst_199 = arith.constant dense<0.000000e+00> : vector<8x32xf32>
    %526 = tpu.matmul %524, %525, %cst_199 {dimension_numbers = #tpu.dot_dimension_numbers<[1], [0], [0], [1], [0, 0, 1, 1], [], []>} : vector<8x64xbf16>, vector<64x32xbf16>, vector<8x32xf32> -> vector<8x32xf32>
    %c0_200 = arith.constant 0 : index
    %c0_201 = arith.constant 0 : index
    %527 = vector.load %arg43[%c0_200, %c0_201] : memref<1x32xf32, #tpu.memory_space<vmem>>, vector<1x32xf32>
    %528 = vector.broadcast %527 : vector<1x32xf32> to vector<8x32xf32>
    %529 = arith.addf %526, %528 : vector<8x32xf32>
    %cst_202 = arith.constant 5.000000e-01 : f32
    %530 = vector.broadcast %cst_202 : f32 to vector<8x32xf32>
    %531 = arith.mulf %530, %529 : vector<8x32xf32>
    %532 = arith.addf %489, %531 : vector<8x32xf32>
    %c0_203 = arith.constant 0 : index
    %c0_204 = arith.constant 0 : index
    %533 = vector.load %arg44[%c0_203, %c0_204] : memref<1x32xf32, #tpu.memory_space<vmem>>, vector<1x32xf32>
    %c0_205 = arith.constant 0 : index
    %c0_206 = arith.constant 0 : index
    %534 = vector.load %arg45[%c0_205, %c0_206] : memref<1x32xf32, #tpu.memory_space<vmem>>, vector<1x32xf32>
    %cst_207 = arith.constant dense<0.000000e+00> : vector<8xf32>
    %535 = vector.multi_reduction <add>, %532, %cst_207 [1] : vector<8x32xf32> to vector<8xf32>
    %536 = vector.shape_cast %535 : vector<8xf32> to vector<8x1xf32>
    %cst_208 = arith.constant 3.200000e+01 : f32
    %537 = vector.broadcast %cst_208 : f32 to vector<8x1xf32>
    %538 = arith.divf %536, %537 : vector<8x1xf32>
    %539 = vector.broadcast %538 : vector<8x1xf32> to vector<8x32xf32>
    %540 = arith.subf %532, %539 : vector<8x32xf32>
    %541 = arith.mulf %540, %540 : vector<8x32xf32>
    %cst_209 = arith.constant dense<0.000000e+00> : vector<8xf32>
    %542 = vector.multi_reduction <add>, %541, %cst_209 [1] : vector<8x32xf32> to vector<8xf32>
    %543 = vector.shape_cast %542 : vector<8xf32> to vector<8x1xf32>
    %cst_210 = arith.constant 3.200000e+01 : f32
    %544 = vector.broadcast %cst_210 : f32 to vector<8x1xf32>
    %545 = arith.divf %543, %544 : vector<8x1xf32>
    %546 = vector.broadcast %538 : vector<8x1xf32> to vector<8x32xf32>
    %547 = arith.subf %532, %546 : vector<8x32xf32>
    %cst_211 = arith.constant 9.99999974E-6 : f32
    %548 = vector.broadcast %cst_211 : f32 to vector<8x1xf32>
    %549 = arith.addf %545, %548 : vector<8x1xf32>
    %550 = math.rsqrt %549 : vector<8x1xf32>
    %551 = vector.broadcast %550 : vector<8x1xf32> to vector<8x32xf32>
    %552 = arith.mulf %547, %551 : vector<8x32xf32>
    %553 = vector.broadcast %533 : vector<1x32xf32> to vector<8x32xf32>
    %554 = arith.mulf %552, %553 : vector<8x32xf32>
    %555 = vector.broadcast %534 : vector<1x32xf32> to vector<8x32xf32>
    %556 = arith.addf %554, %555 : vector<8x32xf32>
    %c0_212 = arith.constant 0 : index
    %c0_213 = arith.constant 0 : index
    %c0_214 = arith.constant 0 : index
    %557 = vector.load %arg46[%c0_212, %c0_213, %c0_214] : memref<1x8x32xf32, #tpu.memory_space<vmem>>, vector<1x8x32xf32>
    %558 = vector.shape_cast %557 : vector<1x8x32xf32> to vector<8x32xf32>
    %559 = vector.shape_cast %556 : vector<8x32xf32> to vector<1x8x32xf32>
    tpu.vector_store %arg46[%c0_212, %c0_213, %c0_214], %559 {strides = array<i32>} : memref<1x8x32xf32, #tpu.memory_space<vmem>>, vector<1x8x32xf32>,
    return
  }
  func.func @transform_0(%arg0: i32) -> (i32, i32, i32) {
    %c0_i32 = arith.constant 0 : i32
    %c0_i32_0 = arith.constant 0 : i32
    %c0_i32_1 = arith.constant 0 : i32
    return %arg0, %c0_i32, %c0_i32_0 : i32, i32, i32
  }
  func.func @transform_1(%arg0: i32) -> (i32, i32, i32) {
    %c0_i32 = arith.constant 0 : i32
    %c0_i32_0 = arith.constant 0 : i32
    %c0_i32_1 = arith.constant 0 : i32
    return %arg0, %c0_i32, %c0_i32_0 : i32, i32, i32
  }
  func.func @transform_2(%arg0: i32) -> (i32, i32) {
    %c0_i32 = arith.constant 0 : i32
    %c0_i32_0 = arith.constant 0 : i32
    %c0_i32_1 = arith.constant 0 : i32
    return %c0_i32, %c0_i32_0 : i32, i32
  }
  func.func @transform_3(%arg0: i32) -> (i32, i32) {
    %c0_i32 = arith.constant 0 : i32
    %c0_i32_0 = arith.constant 0 : i32
    %c0_i32_1 = arith.constant 0 : i32
    return %c0_i32, %c0_i32_0 : i32, i32
  }
  func.func @transform_4(%arg0: i32) -> (i32, i32) {
    %c0_i32 = arith.constant 0 : i32
    %c0_i32_0 = arith.constant 0 : i32
    %c0_i32_1 = arith.constant 0 : i32
    return %c0_i32, %c0_i32_0 : i32, i32
  }
  func.func @transform_5(%arg0: i32) -> (i32, i32) {
    %c0_i32 = arith.constant 0 : i32
    %c0_i32_0 = arith.constant 0 : i32
    %c0_i32_1 = arith.constant 0 : i32
    return %c0_i32, %c0_i32_0 : i32, i32
  }
  func.func @transform_6(%arg0: i32) -> (i32, i32) {
    %c0_i32 = arith.constant 0 : i32
    %c0_i32_0 = arith.constant 0 : i32
    %c0_i32_1 = arith.constant 0 : i32
    return %c0_i32, %c0_i32_0 : i32, i32
  }
  func.func @transform_7(%arg0: i32) -> (i32, i32) {
    %c0_i32 = arith.constant 0 : i32
    %c0_i32_0 = arith.constant 0 : i32
    %c0_i32_1 = arith.constant 0 : i32
    return %c0_i32, %c0_i32_0 : i32, i32
  }
  func.func @transform_8(%arg0: i32) -> (i32, i32) {
    %c0_i32 = arith.constant 0 : i32
    %c0_i32_0 = arith.constant 0 : i32
    %c0_i32_1 = arith.constant 0 : i32
    return %c0_i32, %c0_i32_0 : i32, i32
  }
  func.func @transform_9(%arg0: i32) -> (i32, i32) {
    %c0_i32 = arith.constant 0 : i32
    %c0_i32_0 = arith.constant 0 : i32
    %c0_i32_1 = arith.constant 0 : i32
    return %c0_i32, %c0_i32_0 : i32, i32
  }
  func.func @transform_10(%arg0: i32) -> (i32, i32) {
    %c0_i32 = arith.constant 0 : i32
    %c0_i32_0 = arith.constant 0 : i32
    %c0_i32_1 = arith.constant 0 : i32
    return %c0_i32, %c0_i32_0 : i32, i32
  }
  func.func @transform_11(%arg0: i32) -> (i32, i32) {
    %c0_i32 = arith.constant 0 : i32
    %c0_i32_0 = arith.constant 0 : i32
    %c0_i32_1 = arith.constant 0 : i32
    return %c0_i32, %c0_i32_0 : i32, i32
  }
  func.func @transform_12(%arg0: i32) -> (i32, i32) {
    %c0_i32 = arith.constant 0 : i32
    %c0_i32_0 = arith.constant 0 : i32
    %c0_i32_1 = arith.constant 0 : i32
    return %c0_i32, %c0_i32_0 : i32, i32
  }
  func.func @transform_13(%arg0: i32) -> (i32, i32) {
    %c0_i32 = arith.constant 0 : i32
    %c0_i32_0 = arith.constant 0 : i32
    %c0_i32_1 = arith.constant 0 : i32
    return %c0_i32, %c0_i32_0 : i32, i32
  }
  func.func @transform_14(%arg0: i32) -> (i32, i32) {
    %c0_i32 = arith.constant 0 : i32
    %c0_i32_0 = arith.constant 0 : i32
    %c0_i32_1 = arith.constant 0 : i32
    return %c0_i32, %c0_i32_0 : i32, i32
  }
  func.func @transform_15(%arg0: i32) -> (i32, i32) {
    %c0_i32 = arith.constant 0 : i32
    %c0_i32_0 = arith.constant 0 : i32
    %c0_i32_1 = arith.constant 0 : i32
    return %c0_i32, %c0_i32_0 : i32, i32
  }
  func.func @transform_16(%arg0: i32) -> (i32, i32) {
    %c0_i32 = arith.constant 0 : i32
    %c0_i32_0 = arith.constant 0 : i32
    %c0_i32_1 = arith.constant 0 : i32
    return %c0_i32, %c0_i32_0 : i32, i32
  }
  func.func @transform_17(%arg0: i32) -> (i32, i32) {
    %c0_i32 = arith.constant 0 : i32
    %c0_i32_0 = arith.constant 0 : i32
    %c0_i32_1 = arith.constant 0 : i32
    return %c0_i32, %c0_i32_0 : i32, i32
  }
  func.func @transform_18(%arg0: i32) -> (i32, i32) {
    %c0_i32 = arith.constant 0 : i32
    %c0_i32_0 = arith.constant 0 : i32
    %c0_i32_1 = arith.constant 0 : i32
    return %c0_i32, %c0_i32_0 : i32, i32
  }
  func.func @transform_19(%arg0: i32) -> (i32, i32) {
    %c0_i32 = arith.constant 0 : i32
    %c0_i32_0 = arith.constant 0 : i32
    %c0_i32_1 = arith.constant 0 : i32
    return %c0_i32, %c0_i32_0 : i32, i32
  }
  func.func @transform_20(%arg0: i32) -> (i32, i32) {
    %c0_i32 = arith.constant 0 : i32
    %c0_i32_0 = arith.constant 0 : i32
    %c0_i32_1 = arith.constant 0 : i32
    return %c0_i32, %c0_i32_0 : i32, i32
  }
  func.func @transform_21(%arg0: i32) -> (i32, i32) {
    %c0_i32 = arith.constant 0 : i32
    %c0_i32_0 = arith.constant 0 : i32
    %c0_i32_1 = arith.constant 0 : i32
    return %c0_i32, %c0_i32_0 : i32, i32
  }
  func.func @transform_22(%arg0: i32) -> (i32, i32) {
    %c0_i32 = arith.constant 0 : i32
    %c0_i32_0 = arith.constant 0 : i32
    %c0_i32_1 = arith.constant 0 : i32
    return %c0_i32, %c0_i32_0 : i32, i32
  }
  func.func @transform_23(%arg0: i32) -> (i32, i32) {
    %c0_i32 = arith.constant 0 : i32
    %c0_i32_0 = arith.constant 0 : i32
    %c0_i32_1 = arith.constant 0 : i32
    return %c0_i32, %c0_i32_0 : i32, i32
  }
  func.func @transform_24(%arg0: i32) -> (i32, i32) {
    %c0_i32 = arith.constant 0 : i32
    %c0_i32_0 = arith.constant 0 : i32
    %c0_i32_1 = arith.constant 0 : i32
    return %c0_i32, %c0_i32_0 : i32, i32
  }
  func.func @transform_25(%arg0: i32) -> (i32, i32) {
    %c0_i32 = arith.constant 0 : i32
    %c0_i32_0 = arith.constant 0 : i32
    %c0_i32_1 = arith.constant 0 : i32
    return %c0_i32, %c0_i32_0 : i32, i32
  }
  func.func @transform_26(%arg0: i32) -> (i32, i32, i32) {
    %c0_i32 = arith.constant 0 : i32
    %c0_i32_0 = arith.constant 0 : i32
    %c0_i32_1 = arith.constant 0 : i32
    %c0_i32_2 = arith.constant 0 : i32
    return %c0_i32, %c0_i32_0, %c0_i32_1 : i32, i32, i32
  }
  func.func @transform_27(%arg0: i32) -> (i32, i32) {
    %c0_i32 = arith.constant 0 : i32
    %c0_i32_0 = arith.constant 0 : i32
    %c0_i32_1 = arith.constant 0 : i32
    return %c0_i32, %c0_i32_0 : i32, i32
  }
  func.func @transform_28(%arg0: i32) -> (i32, i32) {
    %c0_i32 = arith.constant 0 : i32
    %c0_i32_0 = arith.constant 0 : i32
    %c0_i32_1 = arith.constant 0 : i32
    return %c0_i32, %c0_i32_0 : i32, i32
  }
  func.func @transform_29(%arg0: i32) -> (i32, i32) {
    %c0_i32 = arith.constant 0 : i32
    %c0_i32_0 = arith.constant 0 : i32
    %c0_i32_1 = arith.constant 0 : i32
    return %c0_i32, %c0_i32_0 : i32, i32
  }
  func.func @transform_30(%arg0: i32) -> (i32, i32, i32) {
    %c0_i32 = arith.constant 0 : i32
    %c0_i32_0 = arith.constant 0 : i32
    %c0_i32_1 = arith.constant 0 : i32
    %c0_i32_2 = arith.constant 0 : i32
    return %c0_i32, %c0_i32_0, %c0_i32_1 : i32, i32, i32
  }
  func.func @transform_31(%arg0: i32) -> (i32, i32) {
    %c0_i32 = arith.constant 0 : i32
    %c0_i32_0 = arith.constant 0 : i32
    %c0_i32_1 = arith.constant 0 : i32
    return %c0_i32, %c0_i32_0 : i32, i32
  }
  func.func @transform_32(%arg0: i32) -> (i32, i32, i32) {
    %c0_i32 = arith.constant 0 : i32
    %c0_i32_0 = arith.constant 0 : i32
    %c0_i32_1 = arith.constant 0 : i32
    %c0_i32_2 = arith.constant 0 : i32
    return %c0_i32, %c0_i32_0, %c0_i32_1 : i32, i32, i32
  }
  func.func @transform_33(%arg0: i32) -> (i32, i32) {
    %c0_i32 = arith.constant 0 : i32
    %c0_i32_0 = arith.constant 0 : i32
    %c0_i32_1 = arith.constant 0 : i32
    return %c0_i32, %c0_i32_0 : i32, i32
  }
  func.func @transform_34(%arg0: i32) -> (i32, i32) {
    %c0_i32 = arith.constant 0 : i32
    %c0_i32_0 = arith.constant 0 : i32
    %c0_i32_1 = arith.constant 0 : i32
    return %c0_i32, %c0_i32_0 : i32, i32
  }
  func.func @transform_35(%arg0: i32) -> (i32, i32) {
    %c0_i32 = arith.constant 0 : i32
    %c0_i32_0 = arith.constant 0 : i32
    %c0_i32_1 = arith.constant 0 : i32
    return %c0_i32, %c0_i32_0 : i32, i32
  }
  func.func @transform_36(%arg0: i32) -> (i32, i32) {
    %c0_i32 = arith.constant 0 : i32
    %c0_i32_0 = arith.constant 0 : i32
    %c0_i32_1 = arith.constant 0 : i32
    return %c0_i32, %c0_i32_0 : i32, i32
  }
  func.func @transform_37(%arg0: i32) -> (i32, i32) {
    %c0_i32 = arith.constant 0 : i32
    %c0_i32_0 = arith.constant 0 : i32
    %c0_i32_1 = arith.constant 0 : i32
    return %c0_i32, %c0_i32_0 : i32, i32
  }
  func.func @transform_38(%arg0: i32) -> (i32, i32) {
    %c0_i32 = arith.constant 0 : i32
    %c0_i32_0 = arith.constant 0 : i32
    %c0_i32_1 = arith.constant 0 : i32
    return %c0_i32, %c0_i32_0 : i32, i32
  }
  func.func @transform_39(%arg0: i32) -> (i32, i32) {
    %c0_i32 = arith.constant 0 : i32
    %c0_i32_0 = arith.constant 0 : i32
    %c0_i32_1 = arith.constant 0 : i32
    return %c0_i32, %c0_i32_0 : i32, i32
  }
  func.func @transform_40(%arg0: i32) -> (i32, i32) {
    %c0_i32 = arith.constant 0 : i32
    %c0_i32_0 = arith.constant 0 : i32
    %c0_i32_1 = arith.constant 0 : i32
    return %c0_i32, %c0_i32_0 : i32, i32
  }
  func.func @transform_41(%arg0: i32) -> (i32, i32) {
    %c0_i32 = arith.constant 0 : i32
    %c0_i32_0 = arith.constant 0 : i32
    %c0_i32_1 = arith.constant 0 : i32
    return %c0_i32, %c0_i32_0 : i32, i32
  }
  func.func @transform_42(%arg0: i32) -> (i32, i32) {
    %c0_i32 = arith.constant 0 : i32
    %c0_i32_0 = arith.constant 0 : i32
    %c0_i32_1 = arith.constant 0 : i32
    return %c0_i32, %c0_i32_0 : i32, i32
  }
  func.func @transform_43(%arg0: i32) -> (i32, i32) {
    %c0_i32 = arith.constant 0 : i32
    %c0_i32_0 = arith.constant 0 : i32
    %c0_i32_1 = arith.constant 0 : i32
    return %c0_i32, %c0_i32_0 : i32, i32
  }
  func.func @transform_44(%arg0: i32) -> (i32, i32) {
    %c0_i32 = arith.constant 0 : i32
    %c0_i32_0 = arith.constant 0 : i32
    %c0_i32_1 = arith.constant 0 : i32
    return %c0_i32, %c0_i32_0 : i32, i32
  }
  func.func @transform_45(%arg0: i32) -> (i32, i32, i32) {
    %c0_i32 = arith.constant 0 : i32
    %c0_i32_0 = arith.constant 0 : i32
    %c0_i32_1 = arith.constant 0 : i32
    return %arg0, %c0_i32, %c0_i32_0 : i32, i32, i32
  }
}

</mosaic_0001>

<llo_original>
// kernel: tpu_custom_call.1
$region0: #{tpu_custom_call.1}
  #allocation0 [shape = 'u32[]', space=smem, size = 0x4, offset = 0x4, fixed_abs, tag = 'smem constant byte address 0x4 - core index']
  #allocation1 [shape = 'u32[144,128]{1,0:T(1,128)}', space=vmem, size = 0x12000, scoped, tag = 'internal scratch']
  %s0 = inlined_call_operand.smem [shape: u32[46], index: -1, kind: input, shape index: {}]
  %s1 = sld [smem:[%s0]]
  %s2 = scalar_lea.smem %s0, 1
  %s3 = sld [smem:[%s2]]
  %s4 = scalar_lea.smem %s0, 2
  %s5 = sld [smem:[%s4]]
  %s6 = scalar_lea.smem %s0, 3
  %s7 = sld [smem:[%s6]]
  %s8 = scalar_lea.smem %s0, 4
  %s9 = sld [smem:[%s8]]
  %s10 = scalar_lea.smem %s0, 5
  %s11 = sld [smem:[%s10]]
  %s12 = scalar_lea.smem %s0, 6
  %s13 = sld [smem:[%s12]]
  %s14 = scalar_lea.smem %s0, 7
  %s15 = sld [smem:[%s14]]
  %s16 = scalar_lea.smem %s0, 8
  %s17 = sld [smem:[%s16]]
  %s18 = scalar_lea.smem %s0, 9
  %s19 = sld [smem:[%s18]]
  %s20 = scalar_lea.smem %s0, 10
  %s21 = sld [smem:[%s20]]
  %s22 = scalar_lea.smem %s0, 11
  %s23 = sld [smem:[%s22]]
  %s24 = scalar_lea.smem %s0, 12
  %s25 = sld [smem:[%s24]]
  %s26 = scalar_lea.smem %s0, 13
  %s27 = sld [smem:[%s26]]
  %s28 = scalar_lea.smem %s0, 14
  %s29 = sld [smem:[%s28]]
  %s30 = scalar_lea.smem %s0, 15
  %s31 = sld [smem:[%s30]]
  %s32 = scalar_lea.smem %s0, 16
  %s33 = sld [smem:[%s32]]
  %s34 = scalar_lea.smem %s0, 17
  %s35 = sld [smem:[%s34]]
  %s36 = scalar_lea.smem %s0, 18
  %s37 = sld [smem:[%s36]]
  %s38 = scalar_lea.smem %s0, 19
  %s39 = sld [smem:[%s38]]
  %s40 = scalar_lea.smem %s0, 20
  %s41 = sld [smem:[%s40]]
  %s42 = scalar_lea.smem %s0, 21
  %s43 = sld [smem:[%s42]]
  %s44 = scalar_lea.smem %s0, 22
  %s45 = sld [smem:[%s44]]
  %s46 = scalar_lea.smem %s0, 23
  %s47 = sld [smem:[%s46]]
  %s48 = scalar_lea.smem %s0, 24
  %s49 = sld [smem:[%s48]]
  %s50 = scalar_lea.smem %s0, 25
  %s51 = sld [smem:[%s50]]
  %s52 = scalar_lea.smem %s0, 26
  %s53 = sld [smem:[%s52]]
  %s54 = scalar_lea.smem %s0, 27
  %s55 = sld [smem:[%s54]]
  %s56 = scalar_lea.smem %s0, 28
  %s57 = sld [smem:[%s56]]
  %s58 = scalar_lea.smem %s0, 29
  %s59 = sld [smem:[%s58]]
  %s60 = scalar_lea.smem %s0, 30
  %s61 = sld [smem:[%s60]]
  %s62 = scalar_lea.smem %s0, 31
  %s63 = sld [smem:[%s62]]
  %s64 = scalar_lea.smem %s0, 32
  %s65 = sld [smem:[%s64]]
  %s66 = scalar_lea.smem %s0, 33
  %s67 = sld [smem:[%s66]]
  %s68 = scalar_lea.smem %s0, 34
  %s69 = sld [smem:[%s68]]
  %s70 = scalar_lea.smem %s0, 35
  %s71 = sld [smem:[%s70]]
  %s72 = scalar_lea.smem %s0, 36
  %s73 = sld [smem:[%s72]]
  %s74 = scalar_lea.smem %s0, 37
  %s75 = sld [smem:[%s74]]
  %s76 = scalar_lea.smem %s0, 38
  %s77 = sld [smem:[%s76]]
  %s78 = scalar_lea.smem %s0, 39
  %s79 = sld [smem:[%s78]]
  %s80 = scalar_lea.smem %s0, 40
  %s81 = sld [smem:[%s80]]
  %s82 = scalar_lea.smem %s0, 41
  %s83 = sld [smem:[%s82]]
  %s84 = scalar_lea.smem %s0, 42
  %s85 = sld [smem:[%s84]]
  %s86 = scalar_lea.smem %s0, 43
  %s87 = sld [smem:[%s86]]
  %s88 = scalar_lea.smem %s0, 44
  %s89 = sld [smem:[%s88]]
  %s90 = scalar_lea.smem %s0, 45
  %s91 = sld [smem:[%s90]]
  %s92 = sld [smem:[#allocation0]]
  $region321: #{tpu_custom_call.1} parent=0
    _
  %s94 = ssub.s32 1, %s92
  %s95 = scalar_select 0, %s94, %s92
  $region1: #{tpu_custom_call.1} parent=0
    #allocation2 [shape = 'u8[8192]{0}', space=vmem, size = 0x2000, scoped, tag = 'input window, operand 0']
    #allocation3 [shape = 's32[2]{0}', space=sflag, size = 0x8, scoped, tag = 'scoped memory for tpu_custom_call.1']
    #allocation4 [shape = 's32[2]{0}', space=sflag, size = 0x8, scoped, tag = 'scoped memory for tpu_custom_call.1']
    #allocation5 [shape = 'u8[1024]{0}', space=vmem, size = 0x400, scoped, tag = 'input window, operand 1']
    #allocation6 [shape = 's32[2]{0}', space=sflag, size = 0x8, scoped, tag = 'scoped memory for tpu_custom_call.1']
    #allocation7 [shape = 'u8[512]{0}', space=vmem, size = 0x400, scoped, tag = 'input window, operand 2, single buffered']
    #allocation8 [shape = 'u8[512]{0}', space=vmem, size = 0x400, scoped, tag = 'input window, operand 3, single buffered']
    #allocation9 [shape = 's32[1]{0}', space=sflag, size = 0x4, scoped, tag = 'scoped memory for tpu_custom_call.1']
    #allocation10 [shape = 'u8[512]{0}', space=vmem, size = 0x400, scoped, tag = 'input window, operand 5, single buffered']
    #allocation11 [shape = 'u8[512]{0}', space=vmem, size = 0x400, scoped, tag = 'input window, operand 7, single buffered']
    #allocation12 [shape = 's32[1]{0}', space=sflag, size = 0x4, scoped, tag = 'scoped memory for tpu_custom_call.1']
    #allocation13 [shape = 'u8[512]{0}', space=vmem, size = 0x400, scoped, tag = 'input window, operand 8, single buffered']
    #allocation14 [shape = 'u8[512]{0}', space=vmem, size = 0x400, scoped, tag = 'input window, operand 9, single buffered']
    #allocation15 [shape = 's32[1]{0}', space=sflag, size = 0x4, scoped, tag = 'scoped memory for tpu_custom_call.1']
    #allocation16 [shape = 'u8[512]{0}', space=vmem, size = 0x400, scoped, tag = 'input window, operand 11, single buffered']
    #allocation17 [shape = 'u8[512]{0}', space=vmem, size = 0x400, scoped, tag = 'input window, operand 13, single buffered']
    #allocation18 [shape = 's32[1]{0}', space=sflag, size = 0x4, scoped, tag = 'scoped memory for tpu_custom_call.1']
    #allocation19 [shape = 'u8[512]{0}', space=vmem, size = 0x400, scoped, tag = 'input window, operand 15, single buffered']
    #allocation20 [shape = 'u8[512]{0}', space=vmem, size = 0x400, scoped, tag = 'input window, operand 17, single buffered']
    #allocation21 [shape = 's32[1]{0}', space=sflag, size = 0x4, scoped, tag = 'scoped memory for tpu_custom_call.1']
    #allocation22 [shape = 'u8[512]{0}', space=vmem, size = 0x400, scoped, tag = 'input window, operand 18, single buffered']
    #allocation23 [shape = 'u8[512]{0}', space=vmem, size = 0x400, scoped, tag = 'input window, operand 19, single buffered']
    #allocation24 [shape = 's32[1]{0}', space=sflag, size = 0x4, scoped, tag = 'scoped memory for tpu_custom_call.1']
    #allocation25 [shape = 'u8[512]{0}', space=vmem, size = 0x400, scoped, tag = 'input window, operand 21, single buffered']
    #allocation26 [shape = 'u8[512]{0}', space=vmem, size = 0x400, scoped, tag = 'input window, operand 23, single buffered']
    #allocation27 [shape = 's32[1]{0}', space=sflag, size = 0x4, scoped, tag = 'scoped memory for tpu_custom_call.1']
    #allocation28 [shape = 'u8[512]{0}', space=vmem, size = 0x400, scoped, tag = 'input window, operand 24, single buffered']
    #allocation29 [shape = 'u8[512]{0}', space=vmem, size = 0x400, scoped, tag = 'input window, operand 25, single buffered']
    #allocation30 [shape = 's32[1]{0}', space=sflag, size = 0x4, scoped, tag = 'scoped memory for tpu_custom_call.1']
    #allocation31 [shape = 'u8[1536]{0}', space=vmem, size = 0x800, scoped, tag = 'input window, operand 26, single buffered']
    #allocation32 [shape = 'u8[512]{0}', space=vmem, size = 0x400, scoped, tag = 'input window, operand 27, single buffered']
    #allocation33 [shape = 's32[1]{0}', space=sflag, size = 0x4, scoped, tag = 'scoped memory for tpu_custom_call.1']
    #allocation34 [shape = 'u8[512]{0}', space=vmem, size = 0x400, scoped, tag = 'input window, operand 29, single buffered']
    #allocation35 [shape = 'u8[1536]{0}', space=vmem, size = 0x800, scoped, tag = 'input window, operand 30, single buffered']
    #allocation36 [shape = 's32[1]{0}', space=sflag, size = 0x4, scoped, tag = 'scoped memory for tpu_custom_call.1']
    #allocation37 [shape = 'u8[512]{0}', space=vmem, size = 0x400, scoped, tag = 'input window, operand 31, single buffered']
    #allocation38 [shape = 'u8[1536]{0}', space=vmem, size = 0x800, scoped, tag = 'input window, operand 32, single buffered']
    #allocation39 [shape = 's32[1]{0}', space=sflag, size = 0x4, scoped, tag = 'scoped memory for tpu_custom_call.1']
    #allocation40 [shape = 'u8[512]{0}', space=vmem, size = 0x400, scoped, tag = 'input window, operand 33, single buffered']
    #allocation41 [shape = 'u8[16384]{0}', space=vmem, size = 0x4000, scoped, tag = 'input window, operand 35, single buffered']
    #allocation42 [shape = 's32[1]{0}', space=sflag, size = 0x4, scoped, tag = 'scoped memory for tpu_custom_call.1']
    #allocation43 [shape = 'u8[16384]{0}', space=vmem, size = 0x4000, scoped, tag = 'input window, operand 39, single buffered']
    #allocation44 [shape = 'u8[8192]{0}', space=vmem, size = 0x2000, scoped, tag = 'output window, operand 0']
    %96 = vsyncpa [#allocation3], 0
    %s97 = scalar_lea.sflag [#allocation3], 1
    %98 = vsyncpa %s97, 0
    %99 = vsyncpa [#allocation6], 0
    %s100 = scalar_lea.sflag [#allocation6], 1
    %101 = vsyncpa %s100, 0
    %102 = vsyncpa [#allocation9], 0
    %103 = vsyncpa [#allocation12], 0
    %104 = vsyncpa [#allocation15], 0
    %105 = vsyncpa [#allocation18], 0
    %106 = vsyncpa [#allocation21], 0
    %107 = vsyncpa [#allocation24], 0
    %108 = vsyncpa [#allocation27], 0
    %109 = vsyncpa [#allocation30], 0
    %110 = vsyncpa [#allocation33], 0
    %111 = vsyncpa [#allocation36], 0
    %112 = vsyncpa [#allocation39], 0
    %113 = vsyncpa [#allocation42], 0
    %114 = vsyncpa [#allocation4], 0
    %s115 = scalar_lea.sflag [#allocation4], 1
    %116 = vsyncpa %s115, 0
    loop: start=0, step=1, limit=4
    $region2: #{tpu_custom_call.1} parent=1 // loop_pre_header
      _
    $region3: #{tpu_custom_call.1} parent=1 // loop_header
      %s118 = sphi 0, %s122
      %p119 = scmp.ge.s32.totalorder %s118, 4
      %s128 = sphi 0, %s130
      %s131 = sphi 0, %s128
      %s132 = sphi 0, %s131
      %s148 = sphi 0, %s132
      %s154 = sphi 0, %s156
      %s157 = sphi 0, %s154
      %s158 = sphi 0, %s157
      %s174 = sphi 0, %s158
      %s178 = sphi 0, %s178
      %s180 = sphi 0, %s178
      %s181 = sphi 0, %s180
      %s195 = sphi 0, %s181
      %s199 = sphi 0, %s199
      %s201 = sphi 0, %s199
      %s202 = sphi 0, %s201
      %s216 = sphi 0, %s202
      %s220 = sphi 0, %s220
      %s222 = sphi 0, %s220
      %s223 = sphi 0, %s222
      %s237 = sphi 0, %s223
      %s241 = sphi 0, %s241
      %s243 = sphi 0, %s241
      %s244 = sphi 0, %s243
      %s258 = sphi 0, %s244
      %s262 = sphi 0, %s262
      %s264 = sphi 0, %s262
      %s265 = sphi 0, %s264
      %s279 = sphi 0, %s265
      %s283 = sphi 0, %s283
      %s285 = sphi 0, %s283
      %s286 = sphi 0, %s285
      %s300 = sphi 0, %s286
      %s304 = sphi 0, %s304
      %s306 = sphi 0, %s304
      %s307 = sphi 0, %s306
      %s321 = sphi 0, %s307
      %s325 = sphi 0, %s325
      %s327 = sphi 0, %s325
      %s328 = sphi 0, %s327
      %s342 = sphi 0, %s328
      %s346 = sphi 0, %s346
      %s348 = sphi 0, %s346
      %s349 = sphi 0, %s348
      %s363 = sphi 0, %s349
      %s367 = sphi 0, %s367
      %s369 = sphi 0, %s367
      %s370 = sphi 0, %s369
      %s384 = sphi 0, %s370
      %s388 = sphi 0, %s388
      %s390 = sphi 0, %s388
      %s391 = sphi 0, %s390
      %s405 = sphi 0, %s391
      %s409 = sphi 0, %s409
      %s411 = sphi 0, %s409
      %s412 = sphi 0, %s411
      %s426 = sphi 0, %s412
      %s430 = sphi 0, %s430
      %s432 = sphi 0, %s430
      %s433 = sphi 0, %s432
      %s447 = sphi 0, %s433
      %s451 = sphi 0, %s451
      %s453 = sphi 0, %s451
      %s454 = sphi 0, %s453
      %s468 = sphi 0, %s454
      %s472 = sphi 0, %s472
      %s474 = sphi 0, %s472
      %s475 = sphi 0, %s474
      %s489 = sphi 0, %s475
      %s493 = sphi 0, %s493
      %s495 = sphi 0, %s493
      %s496 = sphi 0, %s495
      %s510 = sphi 0, %s496
      %s514 = sphi 0, %s514
      %s516 = sphi 0, %s514
      %s517 = sphi 0, %s516
      %s531 = sphi 0, %s517
      %s535 = sphi 0, %s535
      %s537 = sphi 0, %s535
      %s538 = sphi 0, %s537
      %s552 = sphi 0, %s538
      %s556 = sphi 0, %s556
      %s558 = sphi 0, %s556
      %s559 = sphi 0, %s558
      %s573 = sphi 0, %s559
      %s577 = sphi 0, %s577
      %s579 = sphi 0, %s577
      %s580 = sphi 0, %s579
      %s594 = sphi 0, %s580
      %s598 = sphi 0, %s598
      %s600 = sphi 0, %s598
      %s601 = sphi 0, %s600
      %s615 = sphi 0, %s601
      %s619 = sphi 0, %s619
      %s621 = sphi 0, %s619
      %s622 = sphi 0, %s621
      %s636 = sphi 0, %s622
      %s640 = sphi 0, %s640
      %s642 = sphi 0, %s640
      %s643 = sphi 0, %s642
      %s657 = sphi 0, %s643
      %s661 = sphi 0, %s661
      %s663 = sphi 0, %s661
      %s664 = sphi 0, %s663
      %s678 = sphi 0, %s664
      %s682 = sphi 0, %s682
      %s684 = sphi 0, %s682
      %s685 = sphi 0, %s684
      %s699 = sphi 0, %s685
      %s703 = sphi 0, %s703
      %s705 = sphi 0, %s703
      %s706 = sphi 0, %s705
      %s720 = sphi 0, %s706
      %s724 = sphi 0, %s724
      %s726 = sphi 0, %s724
      %s727 = sphi 0, %s726
      %s741 = sphi 0, %s727
      %s745 = sphi 0, %s745
      %s747 = sphi 0, %s745
      %s748 = sphi 0, %s747
      %s762 = sphi 0, %s748
      %s766 = sphi 0, %s766
      %s768 = sphi 0, %s766
      %s769 = sphi 0, %s768
      %s783 = sphi 0, %s769
      %s787 = sphi 0, %s787
      %s789 = sphi 0, %s787
      %s790 = sphi 0, %s789
      %s804 = sphi 0, %s790
      %s808 = sphi 0, %s808
      %s810 = sphi 0, %s808
      %s811 = sphi 0, %s810
      %s825 = sphi 0, %s811
      %s829 = sphi 0, %s829
      %s831 = sphi 0, %s829
      %s832 = sphi 0, %s831
      %s846 = sphi 0, %s832
      %s850 = sphi 0, %s850
      %s852 = sphi 0, %s850
      %s853 = sphi 0, %s852
      %s867 = sphi 0, %s853
      %s871 = sphi 0, %s871
      %s873 = sphi 0, %s871
      %s874 = sphi 0, %s873
      %s888 = sphi 0, %s874
      %s892 = sphi 0, %s892
      %s894 = sphi 0, %s892
      %s895 = sphi 0, %s894
      %s909 = sphi 0, %s895
      %s913 = sphi 0, %s913
      %s915 = sphi 0, %s913
      %s916 = sphi 0, %s915
      %s930 = sphi 0, %s916
      %s934 = sphi 0, %s934
      %s936 = sphi 0, %s934
      %s937 = sphi 0, %s936
      %s951 = sphi 0, %s937
      %s955 = sphi 0, %s955
      %s957 = sphi 0, %s955
      %s958 = sphi 0, %s957
      %s972 = sphi 0, %s958
      %s976 = sphi 0, %s976
      %s978 = sphi 0, %s976
      %s979 = sphi 0, %s978
      %s993 = sphi 0, %s979
      %s997 = sphi 0, %s997
      %s999 = sphi 0, %s997
      %s1000 = sphi 0, %s999
      %s1014 = sphi 0, %s1000
      %s1018 = sphi 0, %s1018
      %s1020 = sphi 0, %s1018
      %s1021 = sphi 0, %s1020
      %s1035 = sphi 0, %s1021
      %s1039 = sphi 0, %s1039
      %s1041 = sphi 0, %s1039
      %s1042 = sphi 0, %s1041
      %s1056 = sphi 0, %s1042
      %s1060 = sphi 0, %s1060
      %s1062 = sphi 0, %s1060
      %s1063 = sphi 0, %s1062
      %s1077 = sphi 0, %s1063
      %s1083 = sphi 0, %s1085
      %s1086 = sphi 0, %s1083
      %s1087 = sphi 0, %s1086
      %s1103 = sphi 0, %s1087
    $region4: #{tpu_custom_call.1} parent=1 // loop_header_branch
      %121 = sbr.rel (%p119) target = $region8
    $region5: #{tpu_custom_call.1} parent=1 // loop_body
      %s123 = ssub.s32 %s118, 1
      %s124 = ssub.s32 %s118, 2
      %s125 = sadd.s32 %s118, 1
      %s126 = ssub.s32 %s118, %s125
      %p127 = scmp.eq.s32.totalorder %s126, 0
      %s129 = sadd.s32 %s128, 1
      %s130 = scalar_select %p127, %s128, %s129
      %p133 = pneg %p127
      %p134 = scmp.eq.s32.totalorder %s118, 1
      %p135 = por %p133, %p134
      %p136 = scmp.ne.s32.totalorder %s128, %s131
      %p137 = scmp.eq.s32.totalorder %s118, 0
      %p138 = por %p136, %p137
      %p139 = scmp.ne.s32.totalorder %s128, %s131
      %p140 = scmp.eq.s32.totalorder %s123, 1
      %p141 = por %p139, %p140
      %p142 = scmp.ne.s32.totalorder %s131, %s132
      %p143 = scmp.eq.s32.totalorder %s123, 0
      %p144 = por %p142, %p143
      %p145 = scmp.ne.s32.totalorder %s131, %s132
      %p146 = scmp.eq.s32.totalorder %s124, 1
      %p147 = por %p145, %p146
      %p149 = scmp.ne.s32.totalorder %s132, %s148
      %p150 = scmp.eq.s32.totalorder %s124, 0
      %p151 = por %p149, %p150
      %s152 = ssub.s32 %s118, %s125
      %p153 = scmp.eq.s32.totalorder %s152, 0
      %s155 = sadd.s32 %s154, 1
      %s156 = scalar_select %p153, %s154, %s155
      %p159 = pneg %p153
      %p160 = scmp.eq.s32.totalorder %s118, 1
      %p161 = por %p159, %p160
      %p162 = scmp.ne.s32.totalorder %s154, %s157
      %p163 = scmp.eq.s32.totalorder %s118, 0
      %p164 = por %p162, %p163
      %p165 = scmp.ne.s32.totalorder %s154, %s157
      %p166 = scmp.eq.s32.totalorder %s123, 1
      %p167 = por %p165, %p166
      %p168 = scmp.ne.s32.totalorder %s157, %s158
      %p169 = scmp.eq.s32.totalorder %s123, 0
      %p170 = por %p168, %p169
      %p171 = scmp.ne.s32.totalorder %s157, %s158
      %p172 = scmp.eq.s32.totalorder %s124, 1
      %p173 = por %p171, %p172
      %p175 = scmp.ne.s32.totalorder %s158, %s174
      %p176 = scmp.eq.s32.totalorder %s124, 0
      %p177 = por %p175, %p176
      %s179 = sadd.s32 %s178, 1
      %p182 = scmp.eq.s32.totalorder %s118, 1
      %p183 = scmp.ne.s32.totalorder %s178, %s180
      %p184 = scmp.eq.s32.totalorder %s118, 0
      %p185 = por %p183, %p184
      %p186 = scmp.ne.s32.totalorder %s178, %s180
      %p187 = scmp.eq.s32.totalorder %s123, 1
      %p188 = por %p186, %p187
      %p189 = scmp.ne.s32.totalorder %s180, %s181
      %p190 = scmp.eq.s32.totalorder %s123, 0
      %p191 = por %p189, %p190
      %p192 = scmp.ne.s32.totalorder %s180, %s181
      %p193 = scmp.eq.s32.totalorder %s124, 1
      %p194 = por %p192, %p193
      %p196 = scmp.ne.s32.totalorder %s181, %s195
      %p197 = scmp.eq.s32.totalorder %s124, 0
      %p198 = por %p196, %p197
      %s200 = sadd.s32 %s199, 1
      %p203 = scmp.eq.s32.totalorder %s118, 1
      %p204 = scmp.ne.s32.totalorder %s199, %s201
      %p205 = scmp.eq.s32.totalorder %s118, 0
      %p206 = por %p204, %p205
      %p207 = scmp.ne.s32.totalorder %s199, %s201
      %p208 = scmp.eq.s32.totalorder %s123, 1
      %p209 = por %p207, %p208
      %p210 = scmp.ne.s32.totalorder %s201, %s202
      %p211 = scmp.eq.s32.totalorder %s123, 0
      %p212 = por %p210, %p211
      %p213 = scmp.ne.s32.totalorder %s201, %s202
      %p214 = scmp.eq.s32.totalorder %s124, 1
      %p215 = por %p213, %p214
      %p217 = scmp.ne.s32.totalorder %s202, %s216
      %p218 = scmp.eq.s32.totalorder %s124, 0
      %p219 = por %p217, %p218
      %s221 = sadd.s32 %s220, 1
      %p224 = scmp.eq.s32.totalorder %s118, 1
      %p225 = scmp.ne.s32.totalorder %s220, %s222
      %p226 = scmp.eq.s32.totalorder %s118, 0
      %p227 = por %p225, %p226
      %p228 = scmp.ne.s32.totalorder %s220, %s222
      %p229 = scmp.eq.s32.totalorder %s123, 1
      %p230 = por %p228, %p229
      %p231 = scmp.ne.s32.totalorder %s222, %s223
      %p232 = scmp.eq.s32.totalorder %s123, 0
      %p233 = por %p231, %p232
      %p234 = scmp.ne.s32.totalorder %s222, %s223
      %p235 = scmp.eq.s32.totalorder %s124, 1
      %p236 = por %p234, %p235
      %p238 = scmp.ne.s32.totalorder %s223, %s237
      %p239 = scmp.eq.s32.totalorder %s124, 0
      %p240 = por %p238, %p239
      %s242 = sadd.s32 %s241, 1
      %p245 = scmp.eq.s32.totalorder %s118, 1
      %p246 = scmp.ne.s32.totalorder %s241, %s243
      %p247 = scmp.eq.s32.totalorder %s118, 0
      %p248 = por %p246, %p247
      %p249 = scmp.ne.s32.totalorder %s241, %s243
      %p250 = scmp.eq.s32.totalorder %s123, 1
      %p251 = por %p249, %p250
      %p252 = scmp.ne.s32.totalorder %s243, %s244
      %p253 = scmp.eq.s32.totalorder %s123, 0
      %p254 = por %p252, %p253
      %p255 = scmp.ne.s32.totalorder %s243, %s244
      %p256 = scmp.eq.s32.totalorder %s124, 1
      %p257 = por %p255, %p256
      %p259 = scmp.ne.s32.totalorder %s244, %s258
      %p260 = scmp.eq.s32.totalorder %s124, 0
      %p261 = por %p259, %p260
      %s263 = sadd.s32 %s262, 1
      %p266 = scmp.eq.s32.totalorder %s118, 1
      %p267 = scmp.ne.s32.totalorder %s262, %s264
      %p268 = scmp.eq.s32.totalorder %s118, 0
      %p269 = por %p267, %p268
      %p270 = scmp.ne.s32.totalorder %s262, %s264
      %p271 = scmp.eq.s32.totalorder %s123, 1
      %p272 = por %p270, %p271
      %p273 = scmp.ne.s32.totalorder %s264, %s265
      %p274 = scmp.eq.s32.totalorder %s123, 0
      %p275 = por %p273, %p274
      %p276 = scmp.ne.s32.totalorder %s264, %s265
      %p277 = scmp.eq.s32.totalorder %s124, 1
      %p278 = por %p276, %p277
      %p280 = scmp.ne.s32.totalorder %s265, %s279
      %p281 = scmp.eq.s32.totalorder %s124, 0
      %p282 = por %p280, %p281
      %s284 = sadd.s32 %s283, 1
      %p287 = scmp.eq.s32.totalorder %s118, 1
      %p288 = scmp.ne.s32.totalorder %s283, %s285
      %p289 = scmp.eq.s32.totalorder %s118, 0
      %p290 = por %p288, %p289
      %p291 = scmp.ne.s32.totalorder %s283, %s285
      %p292 = scmp.eq.s32.totalorder %s123, 1
      %p293 = por %p291, %p292
      %p294 = scmp.ne.s32.totalorder %s285, %s286
      %p295 = scmp.eq.s32.totalorder %s123, 0
      %p296 = por %p294, %p295
      %p297 = scmp.ne.s32.totalorder %s285, %s286
      %p298 = scmp.eq.s32.totalorder %s124, 1
      %p299 = por %p297, %p298
      %p301 = scmp.ne.s32.totalorder %s286, %s300
      %p302 = scmp.eq.s32.totalorder %s124, 0
      %p303 = por %p301, %p302
      %s305 = sadd.s32 %s304, 1
      %p308 = scmp.eq.s32.totalorder %s118, 1
      %p309 = scmp.ne.s32.totalorder %s304, %s306
      %p310 = scmp.eq.s32.totalorder %s118, 0
      %p311 = por %p309, %p310
      %p312 = scmp.ne.s32.totalorder %s304, %s306
      %p313 = scmp.eq.s32.totalorder %s123, 1
      %p314 = por %p312, %p313
      %p315 = scmp.ne.s32.totalorder %s306, %s307
      %p316 = scmp.eq.s32.totalorder %s123, 0
      %p317 = por %p315, %p316
      %p318 = scmp.ne.s32.totalorder %s306, %s307
      %p319 = scmp.eq.s32.totalorder %s124, 1
      %p320 = por %p318, %p319
      %p322 = scmp.ne.s32.totalorder %s307, %s321
      %p323 = scmp.eq.s32.totalorder %s124, 0
      %p324 = por %p322, %p323
      %s326 = sadd.s32 %s325, 1
      %p329 = scmp.eq.s32.totalorder %s118, 1
      %p330 = scmp.ne.s32.totalorder %s325, %s327
      %p331 = scmp.eq.s32.totalorder %s118, 0
      %p332 = por %p330, %p331
      %p333 = scmp.ne.s32.totalorder %s325, %s327
      %p334 = scmp.eq.s32.totalorder %s123, 1
      %p335 = por %p333, %p334
      %p336 = scmp.ne.s32.totalorder %s327, %s328
      %p337 = scmp.eq.s32.totalorder %s123, 0
      %p338 = por %p336, %p337
      %p339 = scmp.ne.s32.totalorder %s327, %s328
      %p340 = scmp.eq.s32.totalorder %s124, 1
      %p341 = por %p339, %p340
      %p343 = scmp.ne.s32.totalorder %s328, %s342
      %p344 = scmp.eq.s32.totalorder %s124, 0
      %p345 = por %p343, %p344
      %s347 = sadd.s32 %s346, 1
      %p350 = scmp.eq.s32.totalorder %s118, 1
      %p351 = scmp.ne.s32.totalorder %s346, %s348
      %p352 = scmp.eq.s32.totalorder %s118, 0
      %p353 = por %p351, %p352
      %p354 = scmp.ne.s32.totalorder %s346, %s348
      %p355 = scmp.eq.s32.totalorder %s123, 1
      %p356 = por %p354, %p355
      %p357 = scmp.ne.s32.totalorder %s348, %s349
      %p358 = scmp.eq.s32.totalorder %s123, 0
      %p359 = por %p357, %p358
      %p360 = scmp.ne.s32.totalorder %s348, %s349
      %p361 = scmp.eq.s32.totalorder %s124, 1
      %p362 = por %p360, %p361
      %p364 = scmp.ne.s32.totalorder %s349, %s363
      %p365 = scmp.eq.s32.totalorder %s124, 0
      %p366 = por %p364, %p365
      %s368 = sadd.s32 %s367, 1
      %p371 = scmp.eq.s32.totalorder %s118, 1
      %p372 = scmp.ne.s32.totalorder %s367, %s369
      %p373 = scmp.eq.s32.totalorder %s118, 0
      %p374 = por %p372, %p373
      %p375 = scmp.ne.s32.totalorder %s367, %s369
      %p376 = scmp.eq.s32.totalorder %s123, 1
      %p377 = por %p375, %p376
      %p378 = scmp.ne.s32.totalorder %s369, %s370
      %p379 = scmp.eq.s32.totalorder %s123, 0
      %p380 = por %p378, %p379
      %p381 = scmp.ne.s32.totalorder %s369, %s370
      %p382 = scmp.eq.s32.totalorder %s124, 1
      %p383 = por %p381, %p382
      %p385 = scmp.ne.s32.totalorder %s370, %s384
      %p386 = scmp.eq.s32.totalorder %s124, 0
      %p387 = por %p385, %p386
      %s389 = sadd.s32 %s388, 1
      %p392 = scmp.eq.s32.totalorder %s118, 1
      %p393 = scmp.ne.s32.totalorder %s388, %s390
      %p394 = scmp.eq.s32.totalorder %s118, 0
      %p395 = por %p393, %p394
      %p396 = scmp.ne.s32.totalorder %s388, %s390
      %p397 = scmp.eq.s32.totalorder %s123, 1
      %p398 = por %p396, %p397
      %p399 = scmp.ne.s32.totalorder %s390, %s391
      %p400 = scmp.eq.s32.totalorder %s123, 0
      %p401 = por %p399, %p400
      %p402 = scmp.ne.s32.totalorder %s390, %s391
      %p403 = scmp.eq.s32.totalorder %s124, 1
      %p404 = por %p402, %p403
      %p406 = scmp.ne.s32.totalorder %s391, %s405
      %p407 = scmp.eq.s32.totalorder %s124, 0
      %p408 = por %p406, %p407
      %s410 = sadd.s32 %s409, 1
      %p413 = scmp.eq.s32.totalorder %s118, 1
      %p414 = scmp.ne.s32.totalorder %s409, %s411
      %p415 = scmp.eq.s32.totalorder %s118, 0
      %p416 = por %p414, %p415
      %p417 = scmp.ne.s32.totalorder %s409, %s411
      %p418 = scmp.eq.s32.totalorder %s123, 1
      %p419 = por %p417, %p418
      %p420 = scmp.ne.s32.totalorder %s411, %s412
      %p421 = scmp.eq.s32.totalorder %s123, 0
      %p422 = por %p420, %p421
      %p423 = scmp.ne.s32.totalorder %s411, %s412
      %p424 = scmp.eq.s32.totalorder %s124, 1
      %p425 = por %p423, %p424
      %p427 = scmp.ne.s32.totalorder %s412, %s426
      %p428 = scmp.eq.s32.totalorder %s124, 0
      %p429 = por %p427, %p428
      %s431 = sadd.s32 %s430, 1
      %p434 = scmp.eq.s32.totalorder %s118, 1
      %p435 = scmp.ne.s32.totalorder %s430, %s432
      %p436 = scmp.eq.s32.totalorder %s118, 0
      %p437 = por %p435, %p436
      %p438 = scmp.ne.s32.totalorder %s430, %s432
      %p439 = scmp.eq.s32.totalorder %s123, 1
      %p440 = por %p438, %p439
      %p441 = scmp.ne.s32.totalorder %s432, %s433
      %p442 = scmp.eq.s32.totalorder %s123, 0
      %p443 = por %p441, %p442
      %p444 = scmp.ne.s32.totalorder %s432, %s433
      %p445 = scmp.eq.s32.totalorder %s124, 1
      %p446 = por %p444, %p445
      %p448 = scmp.ne.s32.totalorder %s433, %s447
      %p449 = scmp.eq.s32.totalorder %s124, 0
      %p450 = por %p448, %p449
      %s452 = sadd.s32 %s451, 1
      %p455 = scmp.eq.s32.totalorder %s118, 1
      %p456 = scmp.ne.s32.totalorder %s451, %s453
      %p457 = scmp.eq.s32.totalorder %s118, 0
      %p458 = por %p456, %p457
      %p459 = scmp.ne.s32.totalorder %s451, %s453
      %p460 = scmp.eq.s32.totalorder %s123, 1
      %p461 = por %p459, %p460
      %p462 = scmp.ne.s32.totalorder %s453, %s454
      %p463 = scmp.eq.s32.totalorder %s123, 0
      %p464 = por %p462, %p463
      %p465 = scmp.ne.s32.totalorder %s453, %s454
      %p466 = scmp.eq.s32.totalorder %s124, 1
      %p467 = por %p465, %p466
      %p469 = scmp.ne.s32.totalorder %s454, %s468
      %p470 = scmp.eq.s32.totalorder %s124, 0
      %p471 = por %p469, %p470
      %s473 = sadd.s32 %s472, 1
      %p476 = scmp.eq.s32.totalorder %s118, 1
      %p477 = scmp.ne.s32.totalorder %s472, %s474
      %p478 = scmp.eq.s32.totalorder %s118, 0
      %p479 = por %p477, %p478
      %p480 = scmp.ne.s32.totalorder %s472, %s474
      %p481 = scmp.eq.s32.totalorder %s123, 1
      %p482 = por %p480, %p481
      %p483 = scmp.ne.s32.totalorder %s474, %s475
      %p484 = scmp.eq.s32.totalorder %s123, 0
      %p485 = por %p483, %p484
      %p486 = scmp.ne.s32.totalorder %s474, %s475
      %p487 = scmp.eq.s32.totalorder %s124, 1
      %p488 = por %p486, %p487
      %p490 = scmp.ne.s32.totalorder %s475, %s489
      %p491 = scmp.eq.s32.totalorder %s124, 0
      %p492 = por %p490, %p491
      %s494 = sadd.s32 %s493, 1
      %p497 = scmp.eq.s32.totalorder %s118, 1
      %p498 = scmp.ne.s32.totalorder %s493, %s495
      %p499 = scmp.eq.s32.totalorder %s118, 0
      %p500 = por %p498, %p499
      %p501 = scmp.ne.s32.totalorder %s493, %s495
      %p502 = scmp.eq.s32.totalorder %s123, 1
      %p503 = por %p501, %p502
      %p504 = scmp.ne.s32.totalorder %s495, %s496
      %p505 = scmp.eq.s32.totalorder %s123, 0
      %p506 = por %p504, %p505
      %p507 = scmp.ne.s32.totalorder %s495, %s496
      %p508 = scmp.eq.s32.totalorder %s124, 1
      %p509 = por %p507, %p508
      %p511 = scmp.ne.s32.totalorder %s496, %s510
      %p512 = scmp.eq.s32.totalorder %s124, 0
      %p513 = por %p511, %p512
      %s515 = sadd.s32 %s514, 1
      %p518 = scmp.eq.s32.totalorder %s118, 1
      %p519 = scmp.ne.s32.totalorder %s514, %s516
      %p520 = scmp.eq.s32.totalorder %s118, 0
      %p521 = por %p519, %p520
      %p522 = scmp.ne.s32.totalorder %s514, %s516
      %p523 = scmp.eq.s32.totalorder %s123, 1
      %p524 = por %p522, %p523
      %p525 = scmp.ne.s32.totalorder %s516, %s517
      %p526 = scmp.eq.s32.totalorder %s123, 0
      %p527 = por %p525, %p526
      %p528 = scmp.ne.s32.totalorder %s516, %s517
      %p529 = scmp.eq.s32.totalorder %s124, 1
      %p530 = por %p528, %p529
      %p532 = scmp.ne.s32.totalorder %s517, %s531
      %p533 = scmp.eq.s32.totalorder %s124, 0
      %p534 = por %p532, %p533
      %s536 = sadd.s32 %s535, 1
      %p539 = scmp.eq.s32.totalorder %s118, 1
      %p540 = scmp.ne.s32.totalorder %s535, %s537
      %p541 = scmp.eq.s32.totalorder %s118, 0
      %p542 = por %p540, %p541
      %p543 = scmp.ne.s32.totalorder %s535, %s537
      %p544 = scmp.eq.s32.totalorder %s123, 1
      %p545 = por %p543, %p544
      %p546 = scmp.ne.s32.totalorder %s537, %s538
      %p547 = scmp.eq.s32.totalorder %s123, 0
      %p548 = por %p546, %p547
      %p549 = scmp.ne.s32.totalorder %s537, %s538
      %p550 = scmp.eq.s32.totalorder %s124, 1
      %p551 = por %p549, %p550
      %p553 = scmp.ne.s32.totalorder %s538, %s552
      %p554 = scmp.eq.s32.totalorder %s124, 0
      %p555 = por %p553, %p554
      %s557 = sadd.s32 %s556, 1
      %p560 = scmp.eq.s32.totalorder %s118, 1
      %p561 = scmp.ne.s32.totalorder %s556, %s558
      %p562 = scmp.eq.s32.totalorder %s118, 0
      %p563 = por %p561, %p562
      %p564 = scmp.ne.s32.totalorder %s556, %s558
      %p565 = scmp.eq.s32.totalorder %s123, 1
      %p566 = por %p564, %p565
      %p567 = scmp.ne.s32.totalorder %s558, %s559
      %p568 = scmp.eq.s32.totalorder %s123, 0
      %p569 = por %p567, %p568
      %p570 = scmp.ne.s32.totalorder %s558, %s559
      %p571 = scmp.eq.s32.totalorder %s124, 1
      %p572 = por %p570, %p571
      %p574 = scmp.ne.s32.totalorder %s559, %s573
      %p575 = scmp.eq.s32.totalorder %s124, 0
      %p576 = por %p574, %p575
      %s578 = sadd.s32 %s577, 1
      %p581 = scmp.eq.s32.totalorder %s118, 1
      %p582 = scmp.ne.s32.totalorder %s577, %s579
      %p583 = scmp.eq.s32.totalorder %s118, 0
      %p584 = por %p582, %p583
      %p585 = scmp.ne.s32.totalorder %s577, %s579
      %p586 = scmp.eq.s32.totalorder %s123, 1
      %p587 = por %p585, %p586
      %p588 = scmp.ne.s32.totalorder %s579, %s580
      %p589 = scmp.eq.s32.totalorder %s123, 0
      %p590 = por %p588, %p589
      %p591 = scmp.ne.s32.totalorder %s579, %s580
      %p592 = scmp.eq.s32.totalorder %s124, 1
      %p593 = por %p591, %p592
      %p595 = scmp.ne.s32.totalorder %s580, %s594
      %p596 = scmp.eq.s32.totalorder %s124, 0
      %p597 = por %p595, %p596
      %s599 = sadd.s32 %s598, 1
      %p602 = scmp.eq.s32.totalorder %s118, 1
      %p603 = scmp.ne.s32.totalorder %s598, %s600
      %p604 = scmp.eq.s32.totalorder %s118, 0
      %p605 = por %p603, %p604
      %p606 = scmp.ne.s32.totalorder %s598, %s600
      %p607 = scmp.eq.s32.totalorder %s123, 1
      %p608 = por %p606, %p607
      %p609 = scmp.ne.s32.totalorder %s600, %s601
      %p610 = scmp.eq.s32.totalorder %s123, 0
      %p611 = por %p609, %p610
      %p612 = scmp.ne.s32.totalorder %s600, %s601
      %p613 = scmp.eq.s32.totalorder %s124, 1
      %p614 = por %p612, %p613
      %p616 = scmp.ne.s32.totalorder %s601, %s615
      %p617 = scmp.eq.s32.totalorder %s124, 0
      %p618 = por %p616, %p617
      %s620 = sadd.s32 %s619, 1
      %p623 = scmp.eq.s32.totalorder %s118, 1
      %p624 = scmp.ne.s32.totalorder %s619, %s621
      %p625 = scmp.eq.s32.totalorder %s118, 0
      %p626 = por %p624, %p625
      %p627 = scmp.ne.s32.totalorder %s619, %s621
      %p628 = scmp.eq.s32.totalorder %s123, 1
      %p629 = por %p627, %p628
      %p630 = scmp.ne.s32.totalorder %s621, %s622
      %p631 = scmp.eq.s32.totalorder %s123, 0
      %p632 = por %p630, %p631
      %p633 = scmp.ne.s32.totalorder %s621, %s622
      %p634 = scmp.eq.s32.totalorder %s124, 1
      %p635 = por %p633, %p634
      %p637 = scmp.ne.s32.totalorder %s622, %s636
      %p638 = scmp.eq.s32.totalorder %s124, 0
      %p639 = por %p637, %p638
      %s641 = sadd.s32 %s640, 1
      %p644 = scmp.eq.s32.totalorder %s118, 1
      %p645 = scmp.ne.s32.totalorder %s640, %s642
      %p646 = scmp.eq.s32.totalorder %s118, 0
      %p647 = por %p645, %p646
      %p648 = scmp.ne.s32.totalorder %s640, %s642
      %p649 = scmp.eq.s32.totalorder %s123, 1
      %p650 = por %p648, %p649
      %p651 = scmp.ne.s32.totalorder %s642, %s643
      %p652 = scmp.eq.s32.totalorder %s123, 0
      %p653 = por %p651, %p652
      %p654 = scmp.ne.s32.totalorder %s642, %s643
      %p655 = scmp.eq.s32.totalorder %s124, 1
      %p656 = por %p654, %p655
      %p658 = scmp.ne.s32.totalorder %s643, %s657
      %p659 = scmp.eq.s32.totalorder %s124, 0
      %p660 = por %p658, %p659
      %s662 = sadd.s32 %s661, 1
      %p665 = scmp.eq.s32.totalorder %s118, 1
      %p666 = scmp.ne.s32.totalorder %s661, %s663
      %p667 = scmp.eq.s32.totalorder %s118, 0
      %p668 = por %p666, %p667
      %p669 = scmp.ne.s32.totalorder %s661, %s663
      %p670 = scmp.eq.s32.totalorder %s123, 1
      %p671 = por %p669, %p670
      %p672 = scmp.ne.s32.totalorder %s663, %s664
      %p673 = scmp.eq.s32.totalorder %s123, 0
      %p674 = por %p672, %p673
      %p675 = scmp.ne.s32.totalorder %s663, %s664
      %p676 = scmp.eq.s32.totalorder %s124, 1
      %p677 = por %p675, %p676
      %p679 = scmp.ne.s32.totalorder %s664, %s678
      %p680 = scmp.eq.s32.totalorder %s124, 0
      %p681 = por %p679, %p680
      %s683 = sadd.s32 %s682, 1
      %p686 = scmp.eq.s32.totalorder %s118, 1
      %p687 = scmp.ne.s32.totalorder %s682, %s684
      %p688 = scmp.eq.s32.totalorder %s118, 0
      %p689 = por %p687, %p688
      %p690 = scmp.ne.s32.totalorder %s682, %s684
      %p691 = scmp.eq.s32.totalorder %s123, 1
      %p692 = por %p690, %p691
      %p693 = scmp.ne.s32.totalorder %s684, %s685
      %p694 = scmp.eq.s32.totalorder %s123, 0
      %p695 = por %p693, %p694
      %p696 = scmp.ne.s32.totalorder %s684, %s685
      %p697 = scmp.eq.s32.totalorder %s124, 1
      %p698 = por %p696, %p697
      %p700 = scmp.ne.s32.totalorder %s685, %s699
      %p701 = scmp.eq.s32.totalorder %s124, 0
      %p702 = por %p700, %p701
      %s704 = sadd.s32 %s703, 1
      %p707 = scmp.eq.s32.totalorder %s118, 1
      %p708 = scmp.ne.s32.totalorder %s703, %s705
      %p709 = scmp.eq.s32.totalorder %s118, 0
      %p710 = por %p708, %p709
      %p711 = scmp.ne.s32.totalorder %s703, %s705
      %p712 = scmp.eq.s32.totalorder %s123, 1
      %p713 = por %p711, %p712
      %p714 = scmp.ne.s32.totalorder %s705, %s706
      %p715 = scmp.eq.s32.totalorder %s123, 0
      %p716 = por %p714, %p715
      %p717 = scmp.ne.s32.totalorder %s705, %s706
      %p718 = scmp.eq.s32.totalorder %s124, 1
      %p719 = por %p717, %p718
      %p721 = scmp.ne.s32.totalorder %s706, %s720
      %p722 = scmp.eq.s32.totalorder %s124, 0
      %p723 = por %p721, %p722
      %s725 = sadd.s32 %s724, 1
      %p728 = scmp.eq.s32.totalorder %s118, 1
      %p729 = scmp.ne.s32.totalorder %s724, %s726
      %p730 = scmp.eq.s32.totalorder %s118, 0
      %p731 = por %p729, %p730
      %p732 = scmp.ne.s32.totalorder %s724, %s726
      %p733 = scmp.eq.s32.totalorder %s123, 1
      %p734 = por %p732, %p733
      %p735 = scmp.ne.s32.totalorder %s726, %s727
      %p736 = scmp.eq.s32.totalorder %s123, 0
      %p737 = por %p735, %p736
      %p738 = scmp.ne.s32.totalorder %s726, %s727
      %p739 = scmp.eq.s32.totalorder %s124, 1
      %p740 = por %p738, %p739
      %p742 = scmp.ne.s32.totalorder %s727, %s741
      %p743 = scmp.eq.s32.totalorder %s124, 0
      %p744 = por %p742, %p743
      %s746 = sadd.s32 %s745, 1
      %p749 = scmp.eq.s32.totalorder %s118, 1
      %p750 = scmp.ne.s32.totalorder %s745, %s747
      %p751 = scmp.eq.s32.totalorder %s118, 0
      %p752 = por %p750, %p751
      %p753 = scmp.ne.s32.totalorder %s745, %s747
      %p754 = scmp.eq.s32.totalorder %s123, 1
      %p755 = por %p753, %p754
      %p756 = scmp.ne.s32.totalorder %s747, %s748
      %p757 = scmp.eq.s32.totalorder %s123, 0
      %p758 = por %p756, %p757
      %p759 = scmp.ne.s32.totalorder %s747, %s748
      %p760 = scmp.eq.s32.totalorder %s124, 1
      %p761 = por %p759, %p760
      %p763 = scmp.ne.s32.totalorder %s748, %s762
      %p764 = scmp.eq.s32.totalorder %s124, 0
      %p765 = por %p763, %p764
      %s767 = sadd.s32 %s766, 1
      %p770 = scmp.eq.s32.totalorder %s118, 1
      %p771 = scmp.ne.s32.totalorder %s766, %s768
      %p772 = scmp.eq.s32.totalorder %s118, 0
      %p773 = por %p771, %p772
      %p774 = scmp.ne.s32.totalorder %s766, %s768
      %p775 = scmp.eq.s32.totalorder %s123, 1
      %p776 = por %p774, %p775
      %p777 = scmp.ne.s32.totalorder %s768, %s769
      %p778 = scmp.eq.s32.totalorder %s123, 0
      %p779 = por %p777, %p778
      %p780 = scmp.ne.s32.totalorder %s768, %s769
      %p781 = scmp.eq.s32.totalorder %s124, 1
      %p782 = por %p780, %p781
      %p784 = scmp.ne.s32.totalorder %s769, %s783
      %p785 = scmp.eq.s32.totalorder %s124, 0
      %p786 = por %p784, %p785
      %s788 = sadd.s32 %s787, 1
      %p791 = scmp.eq.s32.totalorder %s118, 1
      %p792 = scmp.ne.s32.totalorder %s787, %s789
      %p793 = scmp.eq.s32.totalorder %s118, 0
      %p794 = por %p792, %p793
      %p795 = scmp.ne.s32.totalorder %s787, %s789
      %p796 = scmp.eq.s32.totalorder %s123, 1
      %p797 = por %p795, %p796
      %p798 = scmp.ne.s32.totalorder %s789, %s790
      %p799 = scmp.eq.s32.totalorder %s123, 0
      %p800 = por %p798, %p799
      %p801 = scmp.ne.s32.totalorder %s789, %s790
      %p802 = scmp.eq.s32.totalorder %s124, 1
      %p803 = por %p801, %p802
      %p805 = scmp.ne.s32.totalorder %s790, %s804
      %p806 = scmp.eq.s32.totalorder %s124, 0
      %p807 = por %p805, %p806
      %s809 = sadd.s32 %s808, 1
      %p812 = scmp.eq.s32.totalorder %s118, 1
      %p813 = scmp.ne.s32.totalorder %s808, %s810
      %p814 = scmp.eq.s32.totalorder %s118, 0
      %p815 = por %p813, %p814
      %p816 = scmp.ne.s32.totalorder %s808, %s810
      %p817 = scmp.eq.s32.totalorder %s123, 1
      %p818 = por %p816, %p817
      %p819 = scmp.ne.s32.totalorder %s810, %s811
      %p820 = scmp.eq.s32.totalorder %s123, 0
      %p821 = por %p819, %p820
      %p822 = scmp.ne.s32.totalorder %s810, %s811
      %p823 = scmp.eq.s32.totalorder %s124, 1
      %p824 = por %p822, %p823
      %p826 = scmp.ne.s32.totalorder %s811, %s825
      %p827 = scmp.eq.s32.totalorder %s124, 0
      %p828 = por %p826, %p827
      %s830 = sadd.s32 %s829, 1
      %p833 = scmp.eq.s32.totalorder %s118, 1
      %p834 = scmp.ne.s32.totalorder %s829, %s831
      %p835 = scmp.eq.s32.totalorder %s118, 0
      %p836 = por %p834, %p835
      %p837 = scmp.ne.s32.totalorder %s829, %s831
      %p838 = scmp.eq.s32.totalorder %s123, 1
      %p839 = por %p837, %p838
      %p840 = scmp.ne.s32.totalorder %s831, %s832
      %p841 = scmp.eq.s32.totalorder %s123, 0
      %p842 = por %p840, %p841
      %p843 = scmp.ne.s32.totalorder %s831, %s832
      %p844 = scmp.eq.s32.totalorder %s124, 1
      %p845 = por %p843, %p844
      %p847 = scmp.ne.s32.totalorder %s832, %s846
      %p848 = scmp.eq.s32.totalorder %s124, 0
      %p849 = por %p847, %p848
      %s851 = sadd.s32 %s850, 1
      %p854 = scmp.eq.s32.totalorder %s118, 1
      %p855 = scmp.ne.s32.totalorder %s850, %s852
      %p856 = scmp.eq.s32.totalorder %s118, 0
      %p857 = por %p855, %p856
      %p858 = scmp.ne.s32.totalorder %s850, %s852
      %p859 = scmp.eq.s32.totalorder %s123, 1
      %p860 = por %p858, %p859
      %p861 = scmp.ne.s32.totalorder %s852, %s853
      %p862 = scmp.eq.s32.totalorder %s123, 0
      %p863 = por %p861, %p862
      %p864 = scmp.ne.s32.totalorder %s852, %s853
      %p865 = scmp.eq.s32.totalorder %s124, 1
      %p866 = por %p864, %p865
      %p868 = scmp.ne.s32.totalorder %s853, %s867
      %p869 = scmp.eq.s32.totalorder %s124, 0
      %p870 = por %p868, %p869
      %s872 = sadd.s32 %s871, 1
      %p875 = scmp.eq.s32.totalorder %s118, 1
      %p876 = scmp.ne.s32.totalorder %s871, %s873
      %p877 = scmp.eq.s32.totalorder %s118, 0
      %p878 = por %p876, %p877
      %p879 = scmp.ne.s32.totalorder %s871, %s873
      %p880 = scmp.eq.s32.totalorder %s123, 1
      %p881 = por %p879, %p880
      %p882 = scmp.ne.s32.totalorder %s873, %s874
      %p883 = scmp.eq.s32.totalorder %s123, 0
      %p884 = por %p882, %p883
      %p885 = scmp.ne.s32.totalorder %s873, %s874
      %p886 = scmp.eq.s32.totalorder %s124, 1
      %p887 = por %p885, %p886
      %p889 = scmp.ne.s32.totalorder %s874, %s888
      %p890 = scmp.eq.s32.totalorder %s124, 0
      %p891 = por %p889, %p890
      %s893 = sadd.s32 %s892, 1
      %p896 = scmp.eq.s32.totalorder %s118, 1
      %p897 = scmp.ne.s32.totalorder %s892, %s894
      %p898 = scmp.eq.s32.totalorder %s118, 0
      %p899 = por %p897, %p898
      %p900 = scmp.ne.s32.totalorder %s892, %s894
      %p901 = scmp.eq.s32.totalorder %s123, 1
      %p902 = por %p900, %p901
      %p903 = scmp.ne.s32.totalorder %s894, %s895
      %p904 = scmp.eq.s32.totalorder %s123, 0
      %p905 = por %p903, %p904
      %p906 = scmp.ne.s32.totalorder %s894, %s895
      %p907 = scmp.eq.s32.totalorder %s124, 1
      %p908 = por %p906, %p907
      %p910 = scmp.ne.s32.totalorder %s895, %s909
      %p911 = scmp.eq.s32.totalorder %s124, 0
      %p912 = por %p910, %p911
      %s914 = sadd.s32 %s913, 1
      %p917 = scmp.eq.s32.totalorder %s118, 1
      %p918 = scmp.ne.s32.totalorder %s913, %s915
      %p919 = scmp.eq.s32.totalorder %s118, 0
      %p920 = por %p918, %p919
      %p921 = scmp.ne.s32.totalorder %s913, %s915
      %p922 = scmp.eq.s32.totalorder %s123, 1
      %p923 = por %p921, %p922
      %p924 = scmp.ne.s32.totalorder %s915, %s916
      %p925 = scmp.eq.s32.totalorder %s123, 0
      %p926 = por %p924, %p925
      %p927 = scmp.ne.s32.totalorder %s915, %s916
      %p928 = scmp.eq.s32.totalorder %s124, 1
      %p929 = por %p927, %p928
      %p931 = scmp.ne.s32.totalorder %s916, %s930
      %p932 = scmp.eq.s32.totalorder %s124, 0
      %p933 = por %p931, %p932
      %s935 = sadd.s32 %s934, 1
      %p938 = scmp.eq.s32.totalorder %s118, 1
      %p939 = scmp.ne.s32.totalorder %s934, %s936
      %p940 = scmp.eq.s32.totalorder %s118, 0
      %p941 = por %p939, %p940
      %p942 = scmp.ne.s32.totalorder %s934, %s936
      %p943 = scmp.eq.s32.totalorder %s123, 1
      %p944 = por %p942, %p943
      %p945 = scmp.ne.s32.totalorder %s936, %s937
      %p946 = scmp.eq.s32.totalorder %s123, 0
      %p947 = por %p945, %p946
      %p948 = scmp.ne.s32.totalorder %s936, %s937
      %p949 = scmp.eq.s32.totalorder %s124, 1
      %p950 = por %p948, %p949
      %p952 = scmp.ne.s32.totalorder %s937, %s951
      %p953 = scmp.eq.s32.totalorder %s124, 0
      %p954 = por %p952, %p953
      %s956 = sadd.s32 %s955, 1
      %p959 = scmp.eq.s32.totalorder %s118, 1
      %p960 = scmp.ne.s32.totalorder %s955, %s957
      %p961 = scmp.eq.s32.totalorder %s118, 0
      %p962 = por %p960, %p961
      %p963 = scmp.ne.s32.totalorder %s955, %s957
      %p964 = scmp.eq.s32.totalorder %s123, 1
      %p965 = por %p963, %p964
      %p966 = scmp.ne.s32.totalorder %s957, %s958
      %p967 = scmp.eq.s32.totalorder %s123, 0
      %p968 = por %p966, %p967
      %p969 = scmp.ne.s32.totalorder %s957, %s958
      %p970 = scmp.eq.s32.totalorder %s124, 1
      %p971 = por %p969, %p970
      %p973 = scmp.ne.s32.totalorder %s958, %s972
      %p974 = scmp.eq.s32.totalorder %s124, 0
      %p975 = por %p973, %p974
      %s977 = sadd.s32 %s976, 1
      %p980 = scmp.eq.s32.totalorder %s118, 1
      %p981 = scmp.ne.s32.totalorder %s976, %s978
      %p982 = scmp.eq.s32.totalorder %s118, 0
      %p983 = por %p981, %p982
      %p984 = scmp.ne.s32.totalorder %s976, %s978
      %p985 = scmp.eq.s32.totalorder %s123, 1
      %p986 = por %p984, %p985
      %p987 = scmp.ne.s32.totalorder %s978, %s979
      %p988 = scmp.eq.s32.totalorder %s123, 0
      %p989 = por %p987, %p988
      %p990 = scmp.ne.s32.totalorder %s978, %s979
      %p991 = scmp.eq.s32.totalorder %s124, 1
      %p992 = por %p990, %p991
      %p994 = scmp.ne.s32.totalorder %s979, %s993
      %p995 = scmp.eq.s32.totalorder %s124, 0
      %p996 = por %p994, %p995
      %s998 = sadd.s32 %s997, 1
      %p1001 = scmp.eq.s32.totalorder %s118, 1
      %p1002 = scmp.ne.s32.totalorder %s997, %s999
      %p1003 = scmp.eq.s32.totalorder %s118, 0
      %p1004 = por %p1002, %p1003
      %p1005 = scmp.ne.s32.totalorder %s997, %s999
      %p1006 = scmp.eq.s32.totalorder %s123, 1
      %p1007 = por %p1005, %p1006
      %p1008 = scmp.ne.s32.totalorder %s999, %s1000
      %p1009 = scmp.eq.s32.totalorder %s123, 0
      %p1010 = por %p1008, %p1009
      %p1011 = scmp.ne.s32.totalorder %s999, %s1000
      %p1012 = scmp.eq.s32.totalorder %s124, 1
      %p1013 = por %p1011, %p1012
      %p1015 = scmp.ne.s32.totalorder %s1000, %s1014
      %p1016 = scmp.eq.s32.totalorder %s124, 0
      %p1017 = por %p1015, %p1016
      %s1019 = sadd.s32 %s1018, 1
      %p1022 = scmp.eq.s32.totalorder %s118, 1
      %p1023 = scmp.ne.s32.totalorder %s1018, %s1020
      %p1024 = scmp.eq.s32.totalorder %s118, 0
      %p1025 = por %p1023, %p1024
      %p1026 = scmp.ne.s32.totalorder %s1018, %s1020
      %p1027 = scmp.eq.s32.totalorder %s123, 1
      %p1028 = por %p1026, %p1027
      %p1029 = scmp.ne.s32.totalorder %s1020, %s1021
      %p1030 = scmp.eq.s32.totalorder %s123, 0
      %p1031 = por %p1029, %p1030
      %p1032 = scmp.ne.s32.totalorder %s1020, %s1021
      %p1033 = scmp.eq.s32.totalorder %s124, 1
      %p1034 = por %p1032, %p1033
      %p1036 = scmp.ne.s32.totalorder %s1021, %s1035
      %p1037 = scmp.eq.s32.totalorder %s124, 0
      %p1038 = por %p1036, %p1037
      %s1040 = sadd.s32 %s1039, 1
      %p1043 = scmp.eq.s32.totalorder %s118, 1
      %p1044 = scmp.ne.s32.totalorder %s1039, %s1041
      %p1045 = scmp.eq.s32.totalorder %s118, 0
      %p1046 = por %p1044, %p1045
      %p1047 = scmp.ne.s32.totalorder %s1039, %s1041
      %p1048 = scmp.eq.s32.totalorder %s123, 1
      %p1049 = por %p1047, %p1048
      %p1050 = scmp.ne.s32.totalorder %s1041, %s1042
      %p1051 = scmp.eq.s32.totalorder %s123, 0
      %p1052 = por %p1050, %p1051
      %p1053 = scmp.ne.s32.totalorder %s1041, %s1042
      %p1054 = scmp.eq.s32.totalorder %s124, 1
      %p1055 = por %p1053, %p1054
      %p1057 = scmp.ne.s32.totalorder %s1042, %s1056
      %p1058 = scmp.eq.s32.totalorder %s124, 0
      %p1059 = por %p1057, %p1058
      %s1061 = sadd.s32 %s1060, 1
      %p1064 = scmp.eq.s32.totalorder %s118, 1
      %p1065 = scmp.ne.s32.totalorder %s1060, %s1062
      %p1066 = scmp.eq.s32.totalorder %s118, 0
      %p1067 = por %p1065, %p1066
      %p1068 = scmp.ne.s32.totalorder %s1060, %s1062
      %p1069 = scmp.eq.s32.totalorder %s123, 1
      %p1070 = por %p1068, %p1069
      %p1071 = scmp.ne.s32.totalorder %s1062, %s1063
      %p1072 = scmp.eq.s32.totalorder %s123, 0
      %p1073 = por %p1071, %p1072
      %p1074 = scmp.ne.s32.totalorder %s1062, %s1063
      %p1075 = scmp.eq.s32.totalorder %s124, 1
      %p1076 = por %p1074, %p1075
      %p1078 = scmp.ne.s32.totalorder %s1063, %s1077
      %p1079 = scmp.eq.s32.totalorder %s124, 0
      %p1080 = por %p1078, %p1079
      %s1081 = ssub.s32 %s118, %s125
      %p1082 = scmp.eq.s32.totalorder %s1081, 0
      %s1084 = sadd.s32 %s1083, 1
      %s1085 = scalar_select %p1082, %s1083, %s1084
      %p1088 = pneg %p1082
      %p1089 = scmp.eq.s32.totalorder %s118, 1
      %p1090 = por %p1088, %p1089
      %p1091 = scmp.ne.s32.totalorder %s1083, %s1086
      %p1092 = scmp.eq.s32.totalorder %s118, 0
      %p1093 = por %p1091, %p1092
      %p1094 = scmp.ne.s32.totalorder %s1083, %s1086
      %p1095 = scmp.eq.s32.totalorder %s123, 1
      %p1096 = por %p1094, %p1095
      %p1097 = scmp.ne.s32.totalorder %s1086, %s1087
      %p1098 = scmp.eq.s32.totalorder %s123, 0
      %p1099 = por %p1097, %p1098
      %p1100 = scmp.ne.s32.totalorder %s1086, %s1087
      %p1101 = scmp.eq.s32.totalorder %s124, 1
      %p1102 = por %p1100, %p1101
      %p1104 = scmp.ne.s32.totalorder %s1087, %s1103
      %p1105 = scmp.eq.s32.totalorder %s124, 0
      %p1106 = por %p1104, %p1105
      %p1107 = scmp.le.s32.totalorder 1, %s118
      %p1108 = scmp.lt.s32.totalorder %s118, 3
      %p1109 = pnand %p1107, %p1108
      %p1110 = pneg %p1109
      // Predicated region
      $region9: #{tpu_custom_call.1} parent=5 // pred_check
        _
      $region10: #{tpu_custom_call.1} parent=5 // pred_check_branch
        %1112 = sbr.rel (%p1109) target = $region12
      $region11: #{tpu_custom_call.1} parent=5 // pred_region
        %s1113 = ssub.s32 %s118, 1
        // Predicated region
        $region13: #{tpu_custom_call.1} parent=11 // pred_check
          %p1114 = pneg %p191
        $region14: #{tpu_custom_call.1} parent=11 // pred_check_branch
          %1116 = sbr.rel (%p1114) target = $region16
        $region15: #{tpu_custom_call.1} parent=11 // pred_region
          %s1118 = ssub.s32 16, 16
          %1119 = vsyncadd [#allocation6], %s1118
          %s1121 = sshll.u32 [#allocation7], 4
          %s1122 = int_to_ptr.vmem [resolvable:$true] %s1121
          %1124 = dma.hbm_to_vmem [thread:$0]  %s5, 16, %s1122, [#allocation6]
        $region16: #{tpu_custom_call.1} parent=11 // pred_fallthru
          _
        // Predicated region
        $region17: #{tpu_custom_call.1} parent=11 // pred_check
          %p1125 = pneg %p212
        $region18: #{tpu_custom_call.1} parent=11 // pred_check_branch
          %1127 = sbr.rel (%p1125) target = $region20
        $region19: #{tpu_custom_call.1} parent=11 // pred_region
          %s1129 = ssub.s32 16, 16
          %1130 = vsyncadd [#allocation9], %s1129
          %s1132 = sshll.u32 [#allocation8], 4
          %s1133 = int_to_ptr.vmem [resolvable:$true] %s1132
          %1135 = dma.hbm_to_vmem [thread:$0]  %s7, 16, %s1133, [#allocation9]
        $region20: #{tpu_custom_call.1} parent=11 // pred_fallthru
          _
        // Predicated region
        $region21: #{tpu_custom_call.1} parent=11 // pred_check
          %p1136 = pneg %p233
        $region22: #{tpu_custom_call.1} parent=11 // pred_check_branch
          %1138 = sbr.rel (%p1136) target = $region24
        $region23: #{tpu_custom_call.1} parent=11 // pred_region
          _
        $region24: #{tpu_custom_call.1} parent=11 // pred_fallthru
          _
        // Predicated region
        $region25: #{tpu_custom_call.1} parent=11 // pred_check
          %p1139 = pneg %p254
        $region26: #{tpu_custom_call.1} parent=11 // pred_check_branch
          %1141 = sbr.rel (%p1139) target = $region28
        $region27: #{tpu_custom_call.1} parent=11 // pred_region
          %s1143 = ssub.s32 16, 16
          %1144 = vsyncadd [#allocation9], %s1143
          %s1146 = sshll.u32 [#allocation10], 4
          %s1147 = int_to_ptr.vmem [resolvable:$true] %s1146
          %1149 = dma.hbm_to_vmem [thread:$0]  %s11, 16, %s1147, [#allocation9]
        $region28: #{tpu_custom_call.1} parent=11 // pred_fallthru
          _
        // Predicated region
        $region29: #{tpu_custom_call.1} parent=11 // pred_check
          %p1150 = pneg %p275
        $region30: #{tpu_custom_call.1} parent=11 // pred_check_branch
          %1152 = sbr.rel (%p1150) target = $region32
        $region31: #{tpu_custom_call.1} parent=11 // pred_region
          _
        $region32: #{tpu_custom_call.1} parent=11 // pred_fallthru
          _
        // Predicated region
        $region33: #{tpu_custom_call.1} parent=11 // pred_check
          %p1153 = pneg %p296
        $region34: #{tpu_custom_call.1} parent=11 // pred_check_branch
          %1155 = sbr.rel (%p1153) target = $region36
        $region35: #{tpu_custom_call.1} parent=11 // pred_region
          %s1157 = ssub.s32 16, 16
          %1158 = vsyncadd [#allocation12], %s1157
          %s1160 = sshll.u32 [#allocation11], 4
          %s1161 = int_to_ptr.vmem [resolvable:$true] %s1160
          %1163 = dma.hbm_to_vmem [thread:$0]  %s15, 16, %s1161, [#allocation12]
        $region36: #{tpu_custom_call.1} parent=11 // pred_fallthru
          _
        // Predicated region
        $region37: #{tpu_custom_call.1} parent=11 // pred_check
          %p1164 = pneg %p317
        $region38: #{tpu_custom_call.1} parent=11 // pred_check_branch
          %1166 = sbr.rel (%p1164) target = $region40
        $region39: #{tpu_custom_call.1} parent=11 // pred_region
          %s1168 = ssub.s32 16, 16
          %1169 = vsyncadd [#allocation12], %s1168
          %s1171 = sshll.u32 [#allocation13], 4
          %s1172 = int_to_ptr.vmem [resolvable:$true] %s1171
          %1174 = dma.hbm_to_vmem [thread:$0]  %s17, 16, %s1172, [#allocation12]
        $region40: #{tpu_custom_call.1} parent=11 // pred_fallthru
          _
        // Predicated region
        $region41: #{tpu_custom_call.1} parent=11 // pred_check
          %p1175 = pneg %p338
        $region42: #{tpu_custom_call.1} parent=11 // pred_check_branch
          %1177 = sbr.rel (%p1175) target = $region44
        $region43: #{tpu_custom_call.1} parent=11 // pred_region
          %s1179 = ssub.s32 16, 16
          %1180 = vsyncadd [#allocation15], %s1179
          %s1182 = sshll.u32 [#allocation14], 4
          %s1183 = int_to_ptr.vmem [resolvable:$true] %s1182
          %1185 = dma.hbm_to_vmem [thread:$0]  %s19, 16, %s1183, [#allocation15]
        $region44: #{tpu_custom_call.1} parent=11 // pred_fallthru
          _
        // Predicated region
        $region45: #{tpu_custom_call.1} parent=11 // pred_check
          %p1186 = pneg %p359
        $region46: #{tpu_custom_call.1} parent=11 // pred_check_branch
          %1188 = sbr.rel (%p1186) target = $region48
        $region47: #{tpu_custom_call.1} parent=11 // pred_region
          _
        $region48: #{tpu_custom_call.1} parent=11 // pred_fallthru
          _
        // Predicated region
        $region49: #{tpu_custom_call.1} parent=11 // pred_check
          %p1189 = pneg %p380
        $region50: #{tpu_custom_call.1} parent=11 // pred_check_branch
          %1191 = sbr.rel (%p1189) target = $region52
        $region51: #{tpu_custom_call.1} parent=11 // pred_region
          %s1193 = ssub.s32 16, 16
          %1194 = vsyncadd [#allocation15], %s1193
          %s1196 = sshll.u32 [#allocation16], 4
          %s1197 = int_to_ptr.vmem [resolvable:$true] %s1196
          %1199 = dma.hbm_to_vmem [thread:$0]  %s23, 16, %s1197, [#allocation15]
        $region52: #{tpu_custom_call.1} parent=11 // pred_fallthru
          _
        // Predicated region
        $region53: #{tpu_custom_call.1} parent=11 // pred_check
          %p1200 = pneg %p401
        $region54: #{tpu_custom_call.1} parent=11 // pred_check_branch
          %1202 = sbr.rel (%p1200) target = $region56
        $region55: #{tpu_custom_call.1} parent=11 // pred_region
          _
        $region56: #{tpu_custom_call.1} parent=11 // pred_fallthru
          _
        // Predicated region
        $region57: #{tpu_custom_call.1} parent=11 // pred_check
          %p1203 = pneg %p422
        $region58: #{tpu_custom_call.1} parent=11 // pred_check_branch
          %1205 = sbr.rel (%p1203) target = $region60
        $region59: #{tpu_custom_call.1} parent=11 // pred_region
          %s1207 = ssub.s32 16, 16
          %1208 = vsyncadd [#allocation18], %s1207
          %s1210 = sshll.u32 [#allocation17], 4
          %s1211 = int_to_ptr.vmem [resolvable:$true] %s1210
          %1213 = dma.hbm_to_vmem [thread:$0]  %s27, 16, %s1211, [#allocation18]
        $region60: #{tpu_custom_call.1} parent=11 // pred_fallthru
          _
        // Predicated region
        $region61: #{tpu_custom_call.1} parent=11 // pred_check
          %p1214 = pneg %p443
        $region62: #{tpu_custom_call.1} parent=11 // pred_check_branch
          %1216 = sbr.rel (%p1214) target = $region64
        $region63: #{tpu_custom_call.1} parent=11 // pred_region
          _
        $region64: #{tpu_custom_call.1} parent=11 // pred_fallthru
          _
        // Predicated region
        $region65: #{tpu_custom_call.1} parent=11 // pred_check
          %p1217 = pneg %p464
        $region66: #{tpu_custom_call.1} parent=11 // pred_check_branch
          %1219 = sbr.rel (%p1217) target = $region68
        $region67: #{tpu_custom_call.1} parent=11 // pred_region
          %s1221 = ssub.s32 16, 16
          %1222 = vsyncadd [#allocation18], %s1221
          %s1224 = sshll.u32 [#allocation19], 4
          %s1225 = int_to_ptr.vmem [resolvable:$true] %s1224
          %1227 = dma.hbm_to_vmem [thread:$0]  %s31, 16, %s1225, [#allocation18]
        $region68: #{tpu_custom_call.1} parent=11 // pred_fallthru
          _
        // Predicated region
        $region69: #{tpu_custom_call.1} parent=11 // pred_check
          %p1228 = pneg %p485
        $region70: #{tpu_custom_call.1} parent=11 // pred_check_branch
          %1230 = sbr.rel (%p1228) target = $region72
        $region71: #{tpu_custom_call.1} parent=11 // pred_region
          _
        $region72: #{tpu_custom_call.1} parent=11 // pred_fallthru
          _
        // Predicated region
        $region73: #{tpu_custom_call.1} parent=11 // pred_check
          %p1231 = pneg %p506
        $region74: #{tpu_custom_call.1} parent=11 // pred_check_branch
          %1233 = sbr.rel (%p1231) target = $region76
        $region75: #{tpu_custom_call.1} parent=11 // pred_region
          %s1235 = ssub.s32 16, 16
          %1236 = vsyncadd [#allocation21], %s1235
          %s1238 = sshll.u32 [#allocation20], 4
          %s1239 = int_to_ptr.vmem [resolvable:$true] %s1238
          %1241 = dma.hbm_to_vmem [thread:$0]  %s35, 16, %s1239, [#allocation21]
        $region76: #{tpu_custom_call.1} parent=11 // pred_fallthru
          _
        // Predicated region
        $region77: #{tpu_custom_call.1} parent=11 // pred_check
          %p1242 = pneg %p527
        $region78: #{tpu_custom_call.1} parent=11 // pred_check_branch
          %1244 = sbr.rel (%p1242) target = $region80
        $region79: #{tpu_custom_call.1} parent=11 // pred_region
          %s1246 = ssub.s32 16, 16
          %1247 = vsyncadd [#allocation21], %s1246
          %s1249 = sshll.u32 [#allocation22], 4
          %s1250 = int_to_ptr.vmem [resolvable:$true] %s1249
          %1252 = dma.hbm_to_vmem [thread:$0]  %s37, 16, %s1250, [#allocation21]
        $region80: #{tpu_custom_call.1} parent=11 // pred_fallthru
          _
        // Predicated region
        $region81: #{tpu_custom_call.1} parent=11 // pred_check
          %p1253 = pneg %p548
        $region82: #{tpu_custom_call.1} parent=11 // pred_check_branch
          %1255 = sbr.rel (%p1253) target = $region84
        $region83: #{tpu_custom_call.1} parent=11 // pred_region
          %s1257 = ssub.s32 16, 16
          %1258 = vsyncadd [#allocation24], %s1257
          %s1260 = sshll.u32 [#allocation23], 4
          %s1261 = int_to_ptr.vmem [resolvable:$true] %s1260
          %1263 = dma.hbm_to_vmem [thread:$0]  %s39, 16, %s1261, [#allocation24]
        $region84: #{tpu_custom_call.1} parent=11 // pred_fallthru
          _
        // Predicated region
        $region85: #{tpu_custom_call.1} parent=11 // pred_check
          %p1264 = pneg %p569
        $region86: #{tpu_custom_call.1} parent=11 // pred_check_branch
          %1266 = sbr.rel (%p1264) target = $region88
        $region87: #{tpu_custom_call.1} parent=11 // pred_region
          _
        $region88: #{tpu_custom_call.1} parent=11 // pred_fallthru
          _
        // Predicated region
        $region89: #{tpu_custom_call.1} parent=11 // pred_check
          %p1267 = pneg %p590
        $region90: #{tpu_custom_call.1} parent=11 // pred_check_branch
          %1269 = sbr.rel (%p1267) target = $region92
        $region91: #{tpu_custom_call.1} parent=11 // pred_region
          %s1271 = ssub.s32 16, 16
          %1272 = vsyncadd [#allocation24], %s1271
          %s1274 = sshll.u32 [#allocation25], 4
          %s1275 = int_to_ptr.vmem [resolvable:$true] %s1274
          %1277 = dma.hbm_to_vmem [thread:$0]  %s43, 16, %s1275, [#allocation24]
        $region92: #{tpu_custom_call.1} parent=11 // pred_fallthru
          _
        // Predicated region
        $region93: #{tpu_custom_call.1} parent=11 // pred_check
          %p1278 = pneg %p611
        $region94: #{tpu_custom_call.1} parent=11 // pred_check_branch
          %1280 = sbr.rel (%p1278) target = $region96
        $region95: #{tpu_custom_call.1} parent=11 // pred_region
          _
        $region96: #{tpu_custom_call.1} parent=11 // pred_fallthru
          _
        // Predicated region
        $region97: #{tpu_custom_call.1} parent=11 // pred_check
          %p1281 = pneg %p632
        $region98: #{tpu_custom_call.1} parent=11 // pred_check_branch
          %1283 = sbr.rel (%p1281) target = $region100
        $region99: #{tpu_custom_call.1} parent=11 // pred_region
          %s1285 = ssub.s32 16, 16
          %1286 = vsyncadd [#allocation27], %s1285
          %s1288 = sshll.u32 [#allocation26], 4
          %s1289 = int_to_ptr.vmem [resolvable:$true] %s1288
          %1291 = dma.hbm_to_vmem [thread:$0]  %s47, 16, %s1289, [#allocation27]
        $region100: #{tpu_custom_call.1} parent=11 // pred_fallthru
          _
        // Predicated region
        $region101: #{tpu_custom_call.1} parent=11 // pred_check
          %p1292 = pneg %p653
        $region102: #{tpu_custom_call.1} parent=11 // pred_check_branch
          %1294 = sbr.rel (%p1292) target = $region104
        $region103: #{tpu_custom_call.1} parent=11 // pred_region
          %s1296 = ssub.s32 16, 16
          %1297 = vsyncadd [#allocation27], %s1296
          %s1299 = sshll.u32 [#allocation28], 4
          %s1300 = int_to_ptr.vmem [resolvable:$true] %s1299
          %1302 = dma.hbm_to_vmem [thread:$0]  %s49, 16, %s1300, [#allocation27]
        $region104: #{tpu_custom_call.1} parent=11 // pred_fallthru
          _
        // Predicated region
        $region105: #{tpu_custom_call.1} parent=11 // pred_check
          %p1303 = pneg %p674
        $region106: #{tpu_custom_call.1} parent=11 // pred_check_branch
          %1305 = sbr.rel (%p1303) target = $region108
        $region107: #{tpu_custom_call.1} parent=11 // pred_region
          %s1307 = ssub.s32 16, 16
          %1308 = vsyncadd [#allocation30], %s1307
          %s1310 = sshll.u32 [#allocation29], 4
          %s1311 = int_to_ptr.vmem [resolvable:$true] %s1310
          %1313 = dma.hbm_to_vmem [thread:$0]  %s51, 16, %s1311, [#allocation30]
        $region108: #{tpu_custom_call.1} parent=11 // pred_fallthru
          _
        // Predicated region
        $region109: #{tpu_custom_call.1} parent=11 // pred_check
          %p1314 = pneg %p695
        $region110: #{tpu_custom_call.1} parent=11 // pred_check_branch
          %1316 = sbr.rel (%p1314) target = $region112
        $region111: #{tpu_custom_call.1} parent=11 // pred_region
          %s1318 = ssub.s32 48, 48
          %1319 = vsyncadd [#allocation30], %s1318
          %s1320 = sshll.u32 [#allocation31], 4
          %s1321 = int_to_ptr.vmem [resolvable:$true] %s1320
          %1326 = dma.hbm_to_vmem [thread:$0]  %s53, 48, %s1321, [#allocation30], 16, 16, 1
        $region112: #{tpu_custom_call.1} parent=11 // pred_fallthru
          _
        // Predicated region
        $region113: #{tpu_custom_call.1} parent=11 // pred_check
          %p1327 = pneg %p716
        $region114: #{tpu_custom_call.1} parent=11 // pred_check_branch
          %1329 = sbr.rel (%p1327) target = $region116
        $region115: #{tpu_custom_call.1} parent=11 // pred_region
          %s1331 = ssub.s32 16, 16
          %1332 = vsyncadd [#allocation33], %s1331
          %s1334 = sshll.u32 [#allocation32], 4
          %s1335 = int_to_ptr.vmem [resolvable:$true] %s1334
          %1337 = dma.hbm_to_vmem [thread:$0]  %s55, 16, %s1335, [#allocation33]
        $region116: #{tpu_custom_call.1} parent=11 // pred_fallthru
          _
        // Predicated region
        $region117: #{tpu_custom_call.1} parent=11 // pred_check
          %p1338 = pneg %p737
        $region118: #{tpu_custom_call.1} parent=11 // pred_check_branch
          %1340 = sbr.rel (%p1338) target = $region120
        $region119: #{tpu_custom_call.1} parent=11 // pred_region
          _
        $region120: #{tpu_custom_call.1} parent=11 // pred_fallthru
          _
        // Predicated region
        $region121: #{tpu_custom_call.1} parent=11 // pred_check
          %p1341 = pneg %p758
        $region122: #{tpu_custom_call.1} parent=11 // pred_check_branch
          %1343 = sbr.rel (%p1341) target = $region124
        $region123: #{tpu_custom_call.1} parent=11 // pred_region
          %s1345 = ssub.s32 16, 16
          %1346 = vsyncadd [#allocation33], %s1345
          %s1348 = sshll.u32 [#allocation34], 4
          %s1349 = int_to_ptr.vmem [resolvable:$true] %s1348
          %1351 = dma.hbm_to_vmem [thread:$0]  %s59, 16, %s1349, [#allocation33]
        $region124: #{tpu_custom_call.1} parent=11 // pred_fallthru
          _
        // Predicated region
        $region125: #{tpu_custom_call.1} parent=11 // pred_check
          %p1352 = pneg %p779
        $region126: #{tpu_custom_call.1} parent=11 // pred_check_branch
          %1354 = sbr.rel (%p1352) target = $region128
        $region127: #{tpu_custom_call.1} parent=11 // pred_region
          %s1356 = ssub.s32 48, 48
          %1357 = vsyncadd [#allocation36], %s1356
          %s1358 = sshll.u32 [#allocation35], 4
          %s1359 = int_to_ptr.vmem [resolvable:$true] %s1358
          %1364 = dma.hbm_to_vmem [thread:$0]  %s61, 48, %s1359, [#allocation36], 16, 16, 1
        $region128: #{tpu_custom_call.1} parent=11 // pred_fallthru
          _
        // Predicated region
        $region129: #{tpu_custom_call.1} parent=11 // pred_check
          %p1365 = pneg %p800
        $region130: #{tpu_custom_call.1} parent=11 // pred_check_branch
          %1367 = sbr.rel (%p1365) target = $region132
        $region131: #{tpu_custom_call.1} parent=11 // pred_region
          %s1369 = ssub.s32 16, 16
          %1370 = vsyncadd [#allocation36], %s1369
          %s1372 = sshll.u32 [#allocation37], 4
          %s1373 = int_to_ptr.vmem [resolvable:$true] %s1372
          %1375 = dma.hbm_to_vmem [thread:$0]  %s63, 16, %s1373, [#allocation36]
        $region132: #{tpu_custom_call.1} parent=11 // pred_fallthru
          _
        // Predicated region
        $region133: #{tpu_custom_call.1} parent=11 // pred_check
          %p1376 = pneg %p821
        $region134: #{tpu_custom_call.1} parent=11 // pred_check_branch
          %1378 = sbr.rel (%p1376) target = $region136
        $region135: #{tpu_custom_call.1} parent=11 // pred_region
          %s1380 = ssub.s32 48, 48
          %1381 = vsyncadd [#allocation39], %s1380
          %s1382 = sshll.u32 [#allocation38], 4
          %s1383 = int_to_ptr.vmem [resolvable:$true] %s1382
          %1388 = dma.hbm_to_vmem [thread:$0]  %s65, 48, %s1383, [#allocation39], 16, 16, 1
        $region136: #{tpu_custom_call.1} parent=11 // pred_fallthru
          _
        // Predicated region
        $region137: #{tpu_custom_call.1} parent=11 // pred_check
          %p1389 = pneg %p842
        $region138: #{tpu_custom_call.1} parent=11 // pred_check_branch
          %1391 = sbr.rel (%p1389) target = $region140
        $region139: #{tpu_custom_call.1} parent=11 // pred_region
          %s1393 = ssub.s32 16, 16
          %1394 = vsyncadd [#allocation39], %s1393
          %s1396 = sshll.u32 [#allocation40], 4
          %s1397 = int_to_ptr.vmem [resolvable:$true] %s1396
          %1399 = dma.hbm_to_vmem [thread:$0]  %s67, 16, %s1397, [#allocation39]
        $region140: #{tpu_custom_call.1} parent=11 // pred_fallthru
          _
        // Predicated region
        $region141: #{tpu_custom_call.1} parent=11 // pred_check
          %p1400 = pneg %p863
        $region142: #{tpu_custom_call.1} parent=11 // pred_check_branch
          %1402 = sbr.rel (%p1400) target = $region144
        $region143: #{tpu_custom_call.1} parent=11 // pred_region
          _
        $region144: #{tpu_custom_call.1} parent=11 // pred_fallthru
          _
        // Predicated region
        $region145: #{tpu_custom_call.1} parent=11 // pred_check
          %p1403 = pneg %p884
        $region146: #{tpu_custom_call.1} parent=11 // pred_check_branch
          %1405 = sbr.rel (%p1403) target = $region148
        $region147: #{tpu_custom_call.1} parent=11 // pred_region
          %s1407 = ssub.s32 512, 512
          %1408 = vsyncadd [#allocation42], %s1407
          %s1409 = sshll.u32 [#allocation41], 4
          %s1410 = int_to_ptr.vmem [resolvable:$true] %s1409
          %1415 = dma.hbm_to_vmem [thread:$0]  %s71, 512, %s1410, [#allocation42], 128, 128, 8
        $region148: #{tpu_custom_call.1} parent=11 // pred_fallthru
          _
        // Predicated region
        $region149: #{tpu_custom_call.1} parent=11 // pred_check
          %p1416 = pneg %p905
        $region150: #{tpu_custom_call.1} parent=11 // pred_check_branch
          %1418 = sbr.rel (%p1416) target = $region152
        $region151: #{tpu_custom_call.1} parent=11 // pred_region
          _
        $region152: #{tpu_custom_call.1} parent=11 // pred_fallthru
          _
        // Predicated region
        $region153: #{tpu_custom_call.1} parent=11 // pred_check
          %p1419 = pneg %p926
        $region154: #{tpu_custom_call.1} parent=11 // pred_check_branch
          %1421 = sbr.rel (%p1419) target = $region156
        $region155: #{tpu_custom_call.1} parent=11 // pred_region
          _
        $region156: #{tpu_custom_call.1} parent=11 // pred_fallthru
          _
        // Predicated region
        $region157: #{tpu_custom_call.1} parent=11 // pred_check
          %p1422 = pneg %p947
        $region158: #{tpu_custom_call.1} parent=11 // pred_check_branch
          %1424 = sbr.rel (%p1422) target = $region160
        $region159: #{tpu_custom_call.1} parent=11 // pred_region
          _
        $region160: #{tpu_custom_call.1} parent=11 // pred_fallthru
          _
        // Predicated region
        $region161: #{tpu_custom_call.1} parent=11 // pred_check
          %p1425 = pneg %p968
        $region162: #{tpu_custom_call.1} parent=11 // pred_check_branch
          %1427 = sbr.rel (%p1425) target = $region164
        $region163: #{tpu_custom_call.1} parent=11 // pred_region
          %s1429 = ssub.s32 512, 512
          %1430 = vsyncadd [#allocation42], %s1429
          %s1431 = sshll.u32 [#allocation43], 4
          %s1432 = int_to_ptr.vmem [resolvable:$true] %s1431
          %1437 = dma.hbm_to_vmem [thread:$0]  %s79, 512, %s1432, [#allocation42], 128, 128, 8
        $region164: #{tpu_custom_call.1} parent=11 // pred_fallthru
          _
        // Predicated region
        $region165: #{tpu_custom_call.1} parent=11 // pred_check
          %p1438 = pneg %p989
        $region166: #{tpu_custom_call.1} parent=11 // pred_check_branch
          %1440 = sbr.rel (%p1438) target = $region168
        $region167: #{tpu_custom_call.1} parent=11 // pred_region
          _
        $region168: #{tpu_custom_call.1} parent=11 // pred_fallthru
          _
        // Predicated region
        $region169: #{tpu_custom_call.1} parent=11 // pred_check
          %p1441 = pneg %p1010
        $region170: #{tpu_custom_call.1} parent=11 // pred_check_branch
          %1443 = sbr.rel (%p1441) target = $region172
        $region171: #{tpu_custom_call.1} parent=11 // pred_region
          _
        $region172: #{tpu_custom_call.1} parent=11 // pred_fallthru
          _
        // Predicated region
        $region173: #{tpu_custom_call.1} parent=11 // pred_check
          %p1444 = pneg %p1031
        $region174: #{tpu_custom_call.1} parent=11 // pred_check_branch
          %1446 = sbr.rel (%p1444) target = $region176
        $region175: #{tpu_custom_call.1} parent=11 // pred_region
          _
        $region176: #{tpu_custom_call.1} parent=11 // pred_fallthru
          _
        // Predicated region
        $region177: #{tpu_custom_call.1} parent=11 // pred_check
          %p1447 = pneg %p1052
        $region178: #{tpu_custom_call.1} parent=11 // pred_check_branch
          %1449 = sbr.rel (%p1447) target = $region180
        $region179: #{tpu_custom_call.1} parent=11 // pred_region
          _
        $region180: #{tpu_custom_call.1} parent=11 // pred_fallthru
          _
        // Predicated region
        $region181: #{tpu_custom_call.1} parent=11 // pred_check
          %p1450 = pneg %p1073
        $region182: #{tpu_custom_call.1} parent=11 // pred_check_branch
          %1452 = sbr.rel (%p1450) target = $region184
        $region183: #{tpu_custom_call.1} parent=11 // pred_region
          _
        $region184: #{tpu_custom_call.1} parent=11 // pred_fallthru
          _
      $region12: #{tpu_custom_call.1} parent=5 // pred_fallthru
        _
      %p1453 = scmp.lt.s32.totalorder %s118, 2
      // Predicated region
      $region185: #{tpu_custom_call.1} parent=5 // pred_check
        %p1454 = pneg %p1453
      $region186: #{tpu_custom_call.1} parent=5 // pred_check_branch
        %1456 = sbr.rel (%p1454) target = $region188
      $region187: #{tpu_custom_call.1} parent=5 // pred_region
        // Predicated region
        $region189: #{tpu_custom_call.1} parent=187 // pred_check
          %p1457 = pneg %p138
        $region190: #{tpu_custom_call.1} parent=187 // pred_check_branch
          %1459 = sbr.rel (%p1457) target = $region192
        $region191: #{tpu_custom_call.1} parent=187 // pred_region
          %s1460 = sand.u32 %s128, 1
          %s1461 = scalar_lea.sflag [#allocation3], %s1460
          %s1462 = sand.u32 %s128, 1
          %s1463 = smul.addr %s1462, 8
          %s1464 = scalar_lea.vmem [#allocation2], %s1463
          %s1466 = ssub.s32 128, 128
          %1467 = vsyncadd %s1461, %s1466
          %s1468 = smul.addr %s118, 128
          %s1469 = scalar_lea.hbm %s1, %s1468
          %s1471 = sshll.u32 %s1464, 4
          %s1472 = int_to_ptr.vmem [resolvable:$true] %s1471
          %1474 = dma.hbm_to_vmem [thread:$0]  %s1469, 128, %s1472, %s1461
        $region192: #{tpu_custom_call.1} parent=187 // pred_fallthru
          _
        // Predicated region
        $region193: #{tpu_custom_call.1} parent=187 // pred_check
          %p1475 = pneg %p164
        $region194: #{tpu_custom_call.1} parent=187 // pred_check_branch
          %1477 = sbr.rel (%p1475) target = $region196
        $region195: #{tpu_custom_call.1} parent=187 // pred_region
          %s1478 = sand.u32 %s118, 1
          %s1479 = scalar_lea.sflag [#allocation6], %s1478
          %s1480 = sand.u32 %s154, 1
          %s1481 = scalar_lea.vmem [#allocation5], %s1480
          %s1483 = ssub.s32 16, 16
          %1484 = vsyncadd %s1479, %s1483
          %s1485 = smul.addr %s118, 16
          %s1486 = scalar_lea.hbm %s3, %s1485
          %s1488 = sshll.u32 %s1481, 4
          %s1489 = int_to_ptr.vmem [resolvable:$true] %s1488
          %1491 = dma.hbm_to_vmem [thread:$0]  %s1486, 16, %s1489, %s1479
        $region196: #{tpu_custom_call.1} parent=187 // pred_fallthru
          _
      $region188: #{tpu_custom_call.1} parent=5 // pred_fallthru
        _
      %p1492 = scmp.le.s32.totalorder 1, %s118
      %p1493 = scmp.lt.s32.totalorder %s118, 3
      %p1494 = pnand %p1492, %p1493
      %p1495 = pneg %p1494
      // Predicated region
      $region197: #{tpu_custom_call.1} parent=5 // pred_check
        _
      $region198: #{tpu_custom_call.1} parent=5 // pred_check_branch
        %1497 = sbr.rel (%p1494) target = $region200
      $region199: #{tpu_custom_call.1} parent=5 // pred_region
        %s1498 = ssub.s32 %s118, 1
        %s1499 = sand.u32 %s131, 1
        %s1500 = scalar_lea.sflag [#allocation3], %s1499
        %s1501 = sand.u32 %s131, 1
        %s1502 = smul.addr %s1501, 8
        %s1503 = scalar_lea.vmem [#allocation2], %s1502
        // Predicated region
        $region201: #{tpu_custom_call.1} parent=199 // pred_check
          %p1504 = pneg %p144
        $region202: #{tpu_custom_call.1} parent=199 // pred_check_branch
          %1506 = sbr.rel (%p1504) target = $region204
        $region203: #{tpu_custom_call.1} parent=199 // pred_region
          %1507 = dma.done %s1500, 128
        $region204: #{tpu_custom_call.1} parent=199 // pred_fallthru
          _
        %s1508 = sand.u32 %s123, 1
        %s1509 = scalar_lea.sflag [#allocation6], %s1508
        %s1510 = sand.u32 %s157, 1
        %s1511 = scalar_lea.vmem [#allocation5], %s1510
        // Predicated region
        $region205: #{tpu_custom_call.1} parent=199 // pred_check
          %p1512 = pneg %p170
        $region206: #{tpu_custom_call.1} parent=199 // pred_check_branch
          %1514 = sbr.rel (%p1512) target = $region208
        $region207: #{tpu_custom_call.1} parent=199 // pred_region
          %1515 = dma.done %s1509, 16
        $region208: #{tpu_custom_call.1} parent=199 // pred_fallthru
          _
        // Predicated region
        $region209: #{tpu_custom_call.1} parent=199 // pred_check
          %p1516 = pneg %p191
        $region210: #{tpu_custom_call.1} parent=199 // pred_check_branch
          %1518 = sbr.rel (%p1516) target = $region212
        $region211: #{tpu_custom_call.1} parent=199 // pred_region
          %1519 = dma.done [#allocation6], 16
        $region212: #{tpu_custom_call.1} parent=199 // pred_fallthru
          _
        // Predicated region
        $region213: #{tpu_custom_call.1} parent=199 // pred_check
          %p1520 = pneg %p212
        $region214: #{tpu_custom_call.1} parent=199 // pred_check_branch
          %1522 = sbr.rel (%p1520) target = $region216
        $region215: #{tpu_custom_call.1} parent=199 // pred_region
          %1523 = dma.done [#allocation9], 16
        $region216: #{tpu_custom_call.1} parent=199 // pred_fallthru
          _
        // Predicated region
        $region217: #{tpu_custom_call.1} parent=199 // pred_check
          %p1524 = pneg %p254
        $region218: #{tpu_custom_call.1} parent=199 // pred_check_branch
          %1526 = sbr.rel (%p1524) target = $region220
        $region219: #{tpu_custom_call.1} parent=199 // pred_region
          %1527 = dma.done [#allocation9], 16
        $region220: #{tpu_custom_call.1} parent=199 // pred_fallthru
          _
        // Predicated region
        $region221: #{tpu_custom_call.1} parent=199 // pred_check
          %p1528 = pneg %p296
        $region222: #{tpu_custom_call.1} parent=199 // pred_check_branch
          %1530 = sbr.rel (%p1528) target = $region224
        $region223: #{tpu_custom_call.1} parent=199 // pred_region
          %1531 = dma.done [#allocation12], 16
        $region224: #{tpu_custom_call.1} parent=199 // pred_fallthru
          _
        // Predicated region
        $region225: #{tpu_custom_call.1} parent=199 // pred_check
          %p1532 = pneg %p317
        $region226: #{tpu_custom_call.1} parent=199 // pred_check_branch
          %1534 = sbr.rel (%p1532) target = $region228
        $region227: #{tpu_custom_call.1} parent=199 // pred_region
          %1535 = dma.done [#allocation12], 16
        $region228: #{tpu_custom_call.1} parent=199 // pred_fallthru
          _
        // Predicated region
        $region229: #{tpu_custom_call.1} parent=199 // pred_check
          %p1536 = pneg %p338
        $region230: #{tpu_custom_call.1} parent=199 // pred_check_branch
          %1538 = sbr.rel (%p1536) target = $region232
        $region231: #{tpu_custom_call.1} parent=199 // pred_region
          %1539 = dma.done [#allocation15], 16
        $region232: #{tpu_custom_call.1} parent=199 // pred_fallthru
          _
        // Predicated region
        $region233: #{tpu_custom_call.1} parent=199 // pred_check
          %p1540 = pneg %p380
        $region234: #{tpu_custom_call.1} parent=199 // pred_check_branch
          %1542 = sbr.rel (%p1540) target = $region236
        $region235: #{tpu_custom_call.1} parent=199 // pred_region
          %1543 = dma.done [#allocation15], 16
        $region236: #{tpu_custom_call.1} parent=199 // pred_fallthru
          _
        // Predicated region
        $region237: #{tpu_custom_call.1} parent=199 // pred_check
          %p1544 = pneg %p422
        $region238: #{tpu_custom_call.1} parent=199 // pred_check_branch
          %1546 = sbr.rel (%p1544) target = $region240
        $region239: #{tpu_custom_call.1} parent=199 // pred_region
          %1547 = dma.done [#allocation18], 16
        $region240: #{tpu_custom_call.1} parent=199 // pred_fallthru
          _
        // Predicated region
        $region241: #{tpu_custom_call.1} parent=199 // pred_check
          %p1548 = pneg %p464
        $region242: #{tpu_custom_call.1} parent=199 // pred_check_branch
          %1550 = sbr.rel (%p1548) target = $region244
        $region243: #{tpu_custom_call.1} parent=199 // pred_region
          %1551 = dma.done [#allocation18], 16
        $region244: #{tpu_custom_call.1} parent=199 // pred_fallthru
          _
        // Predicated region
        $region245: #{tpu_custom_call.1} parent=199 // pred_check
          %p1552 = pneg %p506
        $region246: #{tpu_custom_call.1} parent=199 // pred_check_branch
          %1554 = sbr.rel (%p1552) target = $region248
        $region247: #{tpu_custom_call.1} parent=199 // pred_region
          %1555 = dma.done [#allocation21], 16
        $region248: #{tpu_custom_call.1} parent=199 // pred_fallthru
          _
        // Predicated region
        $region249: #{tpu_custom_call.1} parent=199 // pred_check
          %p1556 = pneg %p527
        $region250: #{tpu_custom_call.1} parent=199 // pred_check_branch
          %1558 = sbr.rel (%p1556) target = $region252
        $region251: #{tpu_custom_call.1} parent=199 // pred_region
          %1559 = dma.done [#allocation21], 16
        $region252: #{tpu_custom_call.1} parent=199 // pred_fallthru
          _
        // Predicated region
        $region253: #{tpu_custom_call.1} parent=199 // pred_check
          %p1560 = pneg %p548
        $region254: #{tpu_custom_call.1} parent=199 // pred_check_branch
          %1562 = sbr.rel (%p1560) target = $region256
        $region255: #{tpu_custom_call.1} parent=199 // pred_region
          %1563 = dma.done [#allocation24], 16
        $region256: #{tpu_custom_call.1} parent=199 // pred_fallthru
          _
        // Predicated region
        $region257: #{tpu_custom_call.1} parent=199 // pred_check
          %p1564 = pneg %p590
        $region258: #{tpu_custom_call.1} parent=199 // pred_check_branch
          %1566 = sbr.rel (%p1564) target = $region260
        $region259: #{tpu_custom_call.1} parent=199 // pred_region
          %1567 = dma.done [#allocation24], 16
        $region260: #{tpu_custom_call.1} parent=199 // pred_fallthru
          _
        // Predicated region
        $region261: #{tpu_custom_call.1} parent=199 // pred_check
          %p1568 = pneg %p632
        $region262: #{tpu_custom_call.1} parent=199 // pred_check_branch
          %1570 = sbr.rel (%p1568) target = $region264
        $region263: #{tpu_custom_call.1} parent=199 // pred_region
          %1571 = dma.done [#allocation27], 16
        $region264: #{tpu_custom_call.1} parent=199 // pred_fallthru
          _
        // Predicated region
        $region265: #{tpu_custom_call.1} parent=199 // pred_check
          %p1572 = pneg %p653
        $region266: #{tpu_custom_call.1} parent=199 // pred_check_branch
          %1574 = sbr.rel (%p1572) target = $region268
        $region267: #{tpu_custom_call.1} parent=199 // pred_region
          %1575 = dma.done [#allocation27], 16
        $region268: #{tpu_custom_call.1} parent=199 // pred_fallthru
          _
        // Predicated region
        $region269: #{tpu_custom_call.1} parent=199 // pred_check
          %p1576 = pneg %p674
        $region270: #{tpu_custom_call.1} parent=199 // pred_check_branch
          %1578 = sbr.rel (%p1576) target = $region272
        $region271: #{tpu_custom_call.1} parent=199 // pred_region
          %1579 = dma.done [#allocation30], 16
        $region272: #{tpu_custom_call.1} parent=199 // pred_fallthru
          _
        // Predicated region
        $region273: #{tpu_custom_call.1} parent=199 // pred_check
          %p1580 = pneg %p695
        $region274: #{tpu_custom_call.1} parent=199 // pred_check_branch
          %1582 = sbr.rel (%p1580) target = $region276
        $region275: #{tpu_custom_call.1} parent=199 // pred_region
          %1583 = dma.done [#allocation30], 48
        $region276: #{tpu_custom_call.1} parent=199 // pred_fallthru
          _
        // Predicated region
        $region277: #{tpu_custom_call.1} parent=199 // pred_check
          %p1584 = pneg %p716
        $region278: #{tpu_custom_call.1} parent=199 // pred_check_branch
          %1586 = sbr.rel (%p1584) target = $region280
        $region279: #{tpu_custom_call.1} parent=199 // pred_region
          %1587 = dma.done [#allocation33], 16
        $region280: #{tpu_custom_call.1} parent=199 // pred_fallthru
          _
        // Predicated region
        $region281: #{tpu_custom_call.1} parent=199 // pred_check
          %p1588 = pneg %p758
        $region282: #{tpu_custom_call.1} parent=199 // pred_check_branch
          %1590 = sbr.rel (%p1588) target = $region284
        $region283: #{tpu_custom_call.1} parent=199 // pred_region
          %1591 = dma.done [#allocation33], 16
        $region284: #{tpu_custom_call.1} parent=199 // pred_fallthru
          _
        // Predicated region
        $region285: #{tpu_custom_call.1} parent=199 // pred_check
          %p1592 = pneg %p779
        $region286: #{tpu_custom_call.1} parent=199 // pred_check_branch
          %1594 = sbr.rel (%p1592) target = $region288
        $region287: #{tpu_custom_call.1} parent=199 // pred_region
          %1595 = dma.done [#allocation36], 48
        $region288: #{tpu_custom_call.1} parent=199 // pred_fallthru
          _
        // Predicated region
        $region289: #{tpu_custom_call.1} parent=199 // pred_check
          %p1596 = pneg %p800
        $region290: #{tpu_custom_call.1} parent=199 // pred_check_branch
          %1598 = sbr.rel (%p1596) target = $region292
        $region291: #{tpu_custom_call.1} parent=199 // pred_region
          %1599 = dma.done [#allocation36], 16
        $region292: #{tpu_custom_call.1} parent=199 // pred_fallthru
          _
        // Predicated region
        $region293: #{tpu_custom_call.1} parent=199 // pred_check
          %p1600 = pneg %p821
        $region294: #{tpu_custom_call.1} parent=199 // pred_check_branch
          %1602 = sbr.rel (%p1600) target = $region296
        $region295: #{tpu_custom_call.1} parent=199 // pred_region
          %1603 = dma.done [#allocation39], 48
        $region296: #{tpu_custom_call.1} parent=199 // pred_fallthru
          _
        // Predicated region
        $region297: #{tpu_custom_call.1} parent=199 // pred_check
          %p1604 = pneg %p842
        $region298: #{tpu_custom_call.1} parent=199 // pred_check_branch
          %1606 = sbr.rel (%p1604) target = $region300
        $region299: #{tpu_custom_call.1} parent=199 // pred_region
          %1607 = dma.done [#allocation39], 16
        $region300: #{tpu_custom_call.1} parent=199 // pred_fallthru
          _
        // Predicated region
        $region301: #{tpu_custom_call.1} parent=199 // pred_check
          %p1608 = pneg %p884
        $region302: #{tpu_custom_call.1} parent=199 // pred_check_branch
          %1610 = sbr.rel (%p1608) target = $region304
        $region303: #{tpu_custom_call.1} parent=199 // pred_region
          %1611 = dma.done [#allocation42], 512
        $region304: #{tpu_custom_call.1} parent=199 // pred_fallthru
          _
        // Predicated region
        $region305: #{tpu_custom_call.1} parent=199 // pred_check
          %p1612 = pneg %p968
        $region306: #{tpu_custom_call.1} parent=199 // pred_check_branch
          %1614 = sbr.rel (%p1612) target = $region308
        $region307: #{tpu_custom_call.1} parent=199 // pred_region
          %1615 = dma.done [#allocation42], 512
        $region308: #{tpu_custom_call.1} parent=199 // pred_fallthru
          _
        %s1616 = sand.u32 %s131, 1
        %s1617 = scalar_lea.sflag [#allocation3], %s1616
        %s1618 = sand.u32 %s131, 1
        %s1619 = smul.addr %s1618, 8
        %s1620 = scalar_lea.vmem [#allocation2], %s1619
        %p1621 = pneg %p144
        %p1622 = pneg %p141
        %s1623 = sand.u32 %s123, 1
        %s1624 = scalar_lea.sflag [#allocation6], %s1623
        %s1625 = sand.u32 %s157, 1
        %s1626 = scalar_lea.vmem [#allocation5], %s1625
        %p1627 = pneg %p170
        %p1628 = pneg %p167
        %p1629 = pneg %p191
        %p1630 = pneg %p188
        %p1631 = pneg %p212
        %p1632 = pneg %p209
        %p1633 = pneg %p233
        %p1634 = pneg %p230
        %p1635 = pneg %p254
        %p1636 = pneg %p251
        %p1637 = pneg %p275
        %p1638 = pneg %p272
        %p1639 = pneg %p296
        %p1640 = pneg %p293
        %p1641 = pneg %p317
        %p1642 = pneg %p314
        %p1643 = pneg %p338
        %p1644 = pneg %p335
        %p1645 = pneg %p359
        %p1646 = pneg %p356
        %p1647 = pneg %p380
        %p1648 = pneg %p377
        %p1649 = pneg %p401
        %p1650 = pneg %p398
        %p1651 = pneg %p422
        %p1652 = pneg %p419
        %p1653 = pneg %p443
        %p1654 = pneg %p440
        %p1655 = pneg %p464
        %p1656 = pneg %p461
        %p1657 = pneg %p485
        %p1658 = pneg %p482
        %p1659 = pneg %p506
        %p1660 = pneg %p503
        %p1661 = pneg %p527
        %p1662 = pneg %p524
        %p1663 = pneg %p548
        %p1664 = pneg %p545
        %p1665 = pneg %p569
        %p1666 = pneg %p566
        %p1667 = pneg %p590
        %p1668 = pneg %p587
        %p1669 = pneg %p611
        %p1670 = pneg %p608
        %p1671 = pneg %p632
        %p1672 = pneg %p629
        %p1673 = pneg %p653
        %p1674 = pneg %p650
        %p1675 = pneg %p674
        %p1676 = pneg %p671
        %p1677 = pneg %p695
        %p1678 = pneg %p692
        %p1679 = pneg %p716
        %p1680 = pneg %p713
        %p1681 = pneg %p737
        %p1682 = pneg %p734
        %p1683 = pneg %p758
        %p1684 = pneg %p755
        %p1685 = pneg %p779
        %p1686 = pneg %p776
        %p1687 = pneg %p800
        %p1688 = pneg %p797
        %p1689 = pneg %p821
        %p1690 = pneg %p818
        %p1691 = pneg %p842
        %p1692 = pneg %p839
        %p1693 = pneg %p863
        %p1694 = pneg %p860
        %p1695 = pneg %p884
        %p1696 = pneg %p881
        %p1697 = pneg %p905
        %p1698 = pneg %p902
        %p1699 = pneg %p926
        %p1700 = pneg %p923
        %p1701 = pneg %p947
        %p1702 = pneg %p944
        %p1703 = pneg %p968
        %p1704 = pneg %p965
        %p1705 = pneg %p989
        %p1706 = pneg %p986
        %p1707 = pneg %p1010
        %p1708 = pneg %p1007
        %p1709 = pneg %p1031
        %p1710 = pneg %p1028
        %p1711 = pneg %p1052
        %p1712 = pneg %p1049
        %p1713 = pneg %p1073
        %p1714 = pneg %p1070
        %p1715 = pneg %p1099
        %p1716 = pneg %p1096
        %s1717 = sand.u32 %s1086, 1
        %s1718 = scalar_lea.sflag [#allocation4], %s1717
        %s1719 = sand.u32 %s1086, 1
        %s1720 = smul.addr %s1719, 8
        %s1721 = scalar_lea.vmem [#allocation44], %s1720
        %v1723 = vld [vmem:[%s1503] sm:$0xff]
        %v1724 = vld [vmem:[%s1511] sm:$0x1]
        %v1725 = vld [vmem:[#allocation7] sm:$0x1]
        %v1726 = vld [vmem:[#allocation8] sm:$0x1]
        %vm1727 = vcmask 261120
        %v1728 = vsel %vm1727, %v1723, 0.0
        %1729 = vadd.xlane.f32.xlu0 %v1728
        %v1730 = vpop.xlane.xlu0 %1729
        %v1731 = vrcp.pop 32.0
        %v1732 = vmul.f32 %v1730, %v1731
        %v1733 = vsub.f32 %v1723, %v1732
        %v1734 = vmul.f32 %v1733, %v1733
        %v1735 = vsel %vm1727, %v1734, 0.0
        %1736 = vadd.xlane.f32.xlu0 %v1735
        %v1737 = vpop.xlane.xlu0 %1736
        %v1738 = vmul.f32 %v1737, %v1731
        %v1739 = vadd.f32 %v1738, 1e-05
        %v1740 = vrsqrt.pop %v1739
        %v1741 = vmul.f32 %v1733, %v1740
        %v1743 = vlaneseq
        %v1744 = vshrl.u32 %v1743, 7
        %v1745 = vsub.s32 0, %v1744
        %v1746 = vrot.slane %v1725, %v1745
        %v1748 = vmul.f32 %v1741, %v1746
        %v1750 = vlaneseq
        %v1751 = vshrl.u32 %v1750, 7
        %v1752 = vsub.s32 0, %v1751
        %v1753 = vrot.slane %v1726, %v1752
        %v1755 = vadd.f32 %v1748, %v1753
        %v1756 = vld [vmem:[%s9] sm:$0xff]
        %v1757 = vld [vmem:[%s9 + $0x8] sm:$0xff]
        %v1758 = vld [vmem:[%s9 + $0x10] sm:$0xff]
        %v1759 = vld [vmem:[%s9 + $0x18] sm:$0xff]
        %v1760 = vpack.c.bf16 %v1755, %v1755
        %v1761 = vpack.c.bf16 %v1757, %v1756
        %v1762 = vpack.c.bf16 %v1759, %v1758
        %v1763 = vld [vmem:[#allocation10] sm:$0x1]
        %v1765 = vlaneseq
        %v1766 = vshrl.u32 %v1765, 7
        %v1767 = vsub.s32 0, %v1766
        %v1768 = vrot.slane %v1763, %v1767
        %v1771 = vsel %vm1727, %v1760, 0
        %1773 = vmatprep.subr.bf16.mxu0 0
        %1774 = vmatpush1.bf16.msra.mxu0 %v1761
        %1775 = vmatprep.subr.bf16.mxu0 0
        %1776 = vmatpush1.bf16.msra.mxu0 %v1762
        %1777 = vmatprep.subr.bf16.mxu0 0
        %1778 = vmatpush1.bf16.msra.mxu0 0
        %1779 = vmatprep.subr.bf16.mxu0 0
        %1780 = vmatpush1.bf16.msra.mxu0 0
        %1781 = vmatprep.subr.bf16.mxu0 0
        %1782 = vmatpush1.bf16.msra.mxu0 0
        %1783 = vmatprep.subr.bf16.mxu0 0
        %1784 = vmatpush1.bf16.msra.mxu0 0
        %1785 = vmatprep.subr.bf16.mxu0 0
        %1786 = vmatpush1.bf16.msra.mxu0 0
        %1787 = vmatprep.subr.bf16.mxu0 0
        %1788 = vmatpush1.bf16.msra.mxu0 0
        %1789 = vmatprep.subr.bf16.mxu0 0
        %1790 = vmatpush1.bf16.msra.mxu0 0
        %1791 = vmatprep.subr.bf16.mxu0 0
        %1792 = vmatpush1.bf16.msra.mxu0 0
        %1793 = vmatprep.subr.bf16.mxu0 0
        %1794 = vmatpush1.bf16.msra.mxu0 0
        %1795 = vmatprep.subr.bf16.mxu0 0
        %1796 = vmatpush1.bf16.msra.mxu0 0
        %1797 = vmatprep.subr.bf16.mxu0 0
        %1798 = vmatpush1.bf16.msra.mxu0 0
        %1799 = vmatprep.subr.bf16.mxu0 0
        %1800 = vmatpush1.bf16.msra.mxu0 0
        %1801 = vmatprep.subr.bf16.mxu0 0
        %1802 = vmatpush1.bf16.msra.mxu0 0
        %1803 = vmatprep.subr.bf16.mxu0 0
        %1804 = vmatpush1.bf16.msra.mxu0 0
        %1805 = vmatprep.mubr.bf16.mxu0 0
        %1806 = vmatmul.mubr.bf16.gmra.mrb[0].mxu0 %v1771
        %v1807 = vpop.f32.mrb[0].mxu0
        %v1808 = vadd.f32 %v1768, %v1807
        %v1809 = vpop.f32.mrb[0].mxu0
        %v1810 = vpop.f32.mrb[0].mxu0
        %v1811 = vpop.f32.mrb[0].mxu0
        %1812 = vdwg.mxu0
        %v1813 = vmax.f32 %v1808, 0.0
        %v1814 = vld [vmem:[%s13] sm:$0xff]
        %v1815 = vld [vmem:[%s13 + $0x8] sm:$0xff]
        %v1816 = vld [vmem:[%s13 + $0x10] sm:$0xff]
        %v1817 = vld [vmem:[%s13 + $0x18] sm:$0xff]
        %v1818 = vld [vmem:[%s13 + $0x20] sm:$0xff]
        %v1819 = vld [vmem:[%s13 + $0x28] sm:$0xff]
        %v1820 = vld [vmem:[%s13 + $0x30] sm:$0xff]
        %v1821 = vld [vmem:[%s13 + $0x38] sm:$0xff]
        %v1822 = vpack.c.bf16 %v1813, %v1813
        %v1823 = vpack.c.bf16 %v1815, %v1814
        %v1824 = vpack.c.bf16 %v1817, %v1816
        %v1825 = vpack.c.bf16 %v1819, %v1818
        %v1826 = vpack.c.bf16 %v1821, %v1820
        %v1827 = vld [vmem:[#allocation11] sm:$0x1]
        %v1829 = vlaneseq
        %v1830 = vshrl.u32 %v1829, 7
        %v1831 = vsub.s32 0, %v1830
        %v1832 = vrot.slane %v1827, %v1831
        %vm1834 = vcmask 523264
        %v1836 = vsel %vm1834, %v1822, 0
        %1838 = vmatprep.subr.bf16.mxu0 0
        %1839 = vmatpush1.bf16.msra.mxu0 %v1823
        %1840 = vmatprep.subr.bf16.mxu0 0
        %1841 = vmatpush1.bf16.msra.mxu0 %v1824
        %1842 = vmatprep.subr.bf16.mxu0 0
        %1843 = vmatpush1.bf16.msra.mxu0 %v1825
        %1844 = vmatprep.subr.bf16.mxu0 0
        %1845 = vmatpush1.bf16.msra.mxu0 %v1826
        %1846 = vmatprep.subr.bf16.mxu0 0
        %1847 = vmatpush1.bf16.msra.mxu0 0
        %1848 = vmatprep.subr.bf16.mxu0 0
        %1849 = vmatpush1.bf16.msra.mxu0 0
        %1850 = vmatprep.subr.bf16.mxu0 0
        %1851 = vmatpush1.bf16.msra.mxu0 0
        %1852 = vmatprep.subr.bf16.mxu0 0
        %1853 = vmatpush1.bf16.msra.mxu0 0
        %1854 = vmatprep.subr.bf16.mxu0 0
        %1855 = vmatpush1.bf16.msra.mxu0 0
        %1856 = vmatprep.subr.bf16.mxu0 0
        %1857 = vmatpush1.bf16.msra.mxu0 0
        %1858 = vmatprep.subr.bf16.mxu0 0
        %1859 = vmatpush1.bf16.msra.mxu0 0
        %1860 = vmatprep.subr.bf16.mxu0 0
        %1861 = vmatpush1.bf16.msra.mxu0 0
        %1862 = vmatprep.subr.bf16.mxu0 0
        %1863 = vmatpush1.bf16.msra.mxu0 0
        %1864 = vmatprep.subr.bf16.mxu0 0
        %1865 = vmatpush1.bf16.msra.mxu0 0
        %1866 = vmatprep.subr.bf16.mxu0 0
        %1867 = vmatpush1.bf16.msra.mxu0 0
        %1868 = vmatprep.subr.bf16.mxu0 0
        %1869 = vmatpush1.bf16.msra.mxu0 0
        %1870 = vmatprep.mubr.bf16.mxu0 0
        %1871 = vmatmul.mubr.bf16.gmra.mrb[0].mxu0 %v1836
        %v1872 = vpop.f32.mrb[0].mxu0
        %v1873 = vadd.f32 %v1832, %v1872
        %v1874 = vpop.f32.mrb[0].mxu0
        %v1875 = vpop.f32.mrb[0].mxu0
        %v1876 = vpop.f32.mrb[0].mxu0
        %1877 = vdwg.mxu0
        %v1878 = vmul.f32 %v1873, 0.5
        %v1879 = vadd.f32 %v1723, %v1878
        %v1880 = vld [vmem:[#allocation13] sm:$0x1]
        %v1881 = vld [vmem:[#allocation14] sm:$0x1]
        %v1882 = vsel %vm1727, %v1879, 0.0
        %1883 = vadd.xlane.f32.xlu0 %v1882
        %v1884 = vpop.xlane.xlu0 %1883
        %v1885 = vmul.f32 %v1884, %v1731
        %v1886 = vsub.f32 %v1879, %v1885
        %v1887 = vmul.f32 %v1886, %v1886
        %v1888 = vsel %vm1727, %v1887, 0.0
        %1889 = vadd.xlane.f32.xlu0 %v1888
        %v1890 = vpop.xlane.xlu0 %1889
        %v1891 = vmul.f32 %v1890, %v1731
        %v1892 = vadd.f32 %v1891, 1e-05
        %v1893 = vrsqrt.pop %v1892
        %v1894 = vmul.f32 %v1886, %v1893
        %v1896 = vlaneseq
        %v1897 = vshrl.u32 %v1896, 7
        %v1898 = vsub.s32 0, %v1897
        %v1899 = vrot.slane %v1880, %v1898
        %v1901 = vmul.f32 %v1894, %v1899
        %v1903 = vlaneseq
        %v1904 = vshrl.u32 %v1903, 7
        %v1905 = vsub.s32 0, %v1904
        %v1906 = vrot.slane %v1881, %v1905
        %v1908 = vadd.f32 %v1901, %v1906
        %vm1909 = vcmp.gt.f32.partialorder %v1724, 0.5
        %v1910 = vld [vmem:[%s21] sm:$0xff]
        %v1911 = vld [vmem:[%s21 + $0x8] sm:$0xff]
        %v1912 = vld [vmem:[%s21 + $0x10] sm:$0xff]
        %v1913 = vld [vmem:[%s21 + $0x18] sm:$0xff]
        %v1914 = vpack.c.bf16 %v1908, %v1908
        %v1915 = vpack.c.bf16 %v1911, %v1910
        %v1916 = vpack.c.bf16 %v1913, %v1912
        %v1917 = vld [vmem:[#allocation16] sm:$0x1]
        %v1919 = vlaneseq
        %v1920 = vshrl.u32 %v1919, 7
        %v1921 = vsub.s32 0, %v1920
        %v1922 = vrot.slane %v1917, %v1921
        %v1925 = vsel %vm1727, %v1914, 0
        %1927 = vmatprep.subr.bf16.mxu0 0
        %1928 = vmatpush1.bf16.msra.mxu0 %v1915
        %1929 = vmatprep.subr.bf16.mxu0 0
        %1930 = vmatpush1.bf16.msra.mxu0 %v1916
        %1931 = vmatprep.subr.bf16.mxu0 0
        %1932 = vmatpush1.bf16.msra.mxu0 0
        %1933 = vmatprep.subr.bf16.mxu0 0
        %1934 = vmatpush1.bf16.msra.mxu0 0
        %1935 = vmatprep.subr.bf16.mxu0 0
        %1936 = vmatpush1.bf16.msra.mxu0 0
        %1937 = vmatprep.subr.bf16.mxu0 0
        %1938 = vmatpush1.bf16.msra.mxu0 0
        %1939 = vmatprep.subr.bf16.mxu0 0
        %1940 = vmatpush1.bf16.msra.mxu0 0
        %1941 = vmatprep.subr.bf16.mxu0 0
        %1942 = vmatpush1.bf16.msra.mxu0 0
        %1943 = vmatprep.subr.bf16.mxu0 0
        %1944 = vmatpush1.bf16.msra.mxu0 0
        %1945 = vmatprep.subr.bf16.mxu0 0
        %1946 = vmatpush1.bf16.msra.mxu0 0
        %1947 = vmatprep.subr.bf16.mxu0 0
        %1948 = vmatpush1.bf16.msra.mxu0 0
        %1949 = vmatprep.subr.bf16.mxu0 0
        %1950 = vmatpush1.bf16.msra.mxu0 0
        %1951 = vmatprep.subr.bf16.mxu0 0
        %1952 = vmatpush1.bf16.msra.mxu0 0
        %1953 = vmatprep.subr.bf16.mxu0 0
        %1954 = vmatpush1.bf16.msra.mxu0 0
        %1955 = vmatprep.subr.bf16.mxu0 0
        %1956 = vmatpush1.bf16.msra.mxu0 0
        %1957 = vmatprep.subr.bf16.mxu0 0
        %1958 = vmatpush1.bf16.msra.mxu0 0
        %1959 = vmatprep.mubr.bf16.mxu0 0
        %1960 = vmatmul.mubr.bf16.gmra.mrb[0].mxu0 %v1925
        %v1961 = vpop.f32.mrb[0].mxu0
        %v1962 = vadd.f32 %v1922, %v1961
        %v1963 = vpop.f32.mrb[0].mxu0
        %v1964 = vpop.f32.mrb[0].mxu0
        %v1965 = vpop.f32.mrb[0].mxu0
        %1966 = vdwg.mxu0
        %v1967 = vld [vmem:[%s25] sm:$0xff]
        %v1968 = vld [vmem:[%s25 + $0x8] sm:$0xff]
        %v1969 = vld [vmem:[%s25 + $0x10] sm:$0xff]
        %v1970 = vld [vmem:[%s25 + $0x18] sm:$0xff]
        %v1971 = vpack.c.bf16 %v1968, %v1967
        %v1972 = vpack.c.bf16 %v1970, %v1969
        %v1973 = vld [vmem:[#allocation17] sm:$0x1]
        %v1975 = vlaneseq
        %v1976 = vshrl.u32 %v1975, 7
        %v1977 = vsub.s32 0, %v1976
        %v1978 = vrot.slane %v1973, %v1977
        %1980 = vmatprep.subr.bf16.mxu0 0
        %1981 = vmatpush1.bf16.msra.mxu0 %v1971
        %1982 = vmatprep.subr.bf16.mxu0 0
        %1983 = vmatpush1.bf16.msra.mxu0 %v1972
        %1984 = vmatprep.subr.bf16.mxu0 0
        %1985 = vmatpush1.bf16.msra.mxu0 0
        %1986 = vmatprep.subr.bf16.mxu0 0
        %1987 = vmatpush1.bf16.msra.mxu0 0
        %1988 = vmatprep.subr.bf16.mxu0 0
        %1989 = vmatpush1.bf16.msra.mxu0 0
        %1990 = vmatprep.subr.bf16.mxu0 0
        %1991 = vmatpush1.bf16.msra.mxu0 0
        %1992 = vmatprep.subr.bf16.mxu0 0
        %1993 = vmatpush1.bf16.msra.mxu0 0
        %1994 = vmatprep.subr.bf16.mxu0 0
        %1995 = vmatpush1.bf16.msra.mxu0 0
        %1996 = vmatprep.subr.bf16.mxu0 0
        %1997 = vmatpush1.bf16.msra.mxu0 0
        %1998 = vmatprep.subr.bf16.mxu0 0
        %1999 = vmatpush1.bf16.msra.mxu0 0
        %2000 = vmatprep.subr.bf16.mxu0 0
        %2001 = vmatpush1.bf16.msra.mxu0 0
        %2002 = vmatprep.subr.bf16.mxu0 0
        %2003 = vmatpush1.bf16.msra.mxu0 0
        %2004 = vmatprep.subr.bf16.mxu0 0
        %2005 = vmatpush1.bf16.msra.mxu0 0
        %2006 = vmatprep.subr.bf16.mxu0 0
        %2007 = vmatpush1.bf16.msra.mxu0 0
        %2008 = vmatprep.subr.bf16.mxu0 0
        %2009 = vmatpush1.bf16.msra.mxu0 0
        %2010 = vmatprep.subr.bf16.mxu0 0
        %2011 = vmatpush1.bf16.msra.mxu0 0
        %2012 = vmatprep.mubr.bf16.mxu0 0
        %2013 = vmatmul.mubr.bf16.gmra.mrb[0].mxu0 %v1925
        %v2014 = vpop.f32.mrb[0].mxu0
        %v2015 = vadd.f32 %v1978, %v2014
        %v2016 = vpop.f32.mrb[0].mxu0
        %v2017 = vpop.f32.mrb[0].mxu0
        %v2018 = vpop.f32.mrb[0].mxu0
        %2019 = vdwg.mxu0
        %v2020 = vld [vmem:[%s29] sm:$0xff]
        %v2021 = vld [vmem:[%s29 + $0x8] sm:$0xff]
        %v2022 = vld [vmem:[%s29 + $0x10] sm:$0xff]
        %v2023 = vld [vmem:[%s29 + $0x18] sm:$0xff]
        %v2024 = vpack.c.bf16 %v2021, %v2020
        %v2025 = vpack.c.bf16 %v2023, %v2022
        %v2026 = vld [vmem:[#allocation19] sm:$0x1]
        %v2028 = vlaneseq
        %v2029 = vshrl.u32 %v2028, 7
        %v2030 = vsub.s32 0, %v2029
        %v2031 = vrot.slane %v2026, %v2030
        %2033 = vmatprep.subr.bf16.mxu0 0
        %2034 = vmatpush1.bf16.msra.mxu0 %v2024
        %2035 = vmatprep.subr.bf16.mxu0 0
        %2036 = vmatpush1.bf16.msra.mxu0 %v2025
        %2037 = vmatprep.subr.bf16.mxu0 0
        %2038 = vmatpush1.bf16.msra.mxu0 0
        %2039 = vmatprep.subr.bf16.mxu0 0
        %2040 = vmatpush1.bf16.msra.mxu0 0
        %2041 = vmatprep.subr.bf16.mxu0 0
        %2042 = vmatpush1.bf16.msra.mxu0 0
        %2043 = vmatprep.subr.bf16.mxu0 0
        %2044 = vmatpush1.bf16.msra.mxu0 0
        %2045 = vmatprep.subr.bf16.mxu0 0
        %2046 = vmatpush1.bf16.msra.mxu0 0
        %2047 = vmatprep.subr.bf16.mxu0 0
        %2048 = vmatpush1.bf16.msra.mxu0 0
        %2049 = vmatprep.subr.bf16.mxu0 0
        %2050 = vmatpush1.bf16.msra.mxu0 0
        %2051 = vmatprep.subr.bf16.mxu0 0
        %2052 = vmatpush1.bf16.msra.mxu0 0
        %2053 = vmatprep.subr.bf16.mxu0 0
        %2054 = vmatpush1.bf16.msra.mxu0 0
        %2055 = vmatprep.subr.bf16.mxu0 0
        %2056 = vmatpush1.bf16.msra.mxu0 0
        %2057 = vmatprep.subr.bf16.mxu0 0
        %2058 = vmatpush1.bf16.msra.mxu0 0
        %2059 = vmatprep.subr.bf16.mxu0 0
        %2060 = vmatpush1.bf16.msra.mxu0 0
        %2061 = vmatprep.subr.bf16.mxu0 0
        %2062 = vmatpush1.bf16.msra.mxu0 0
        %2063 = vmatprep.subr.bf16.mxu0 0
        %2064 = vmatpush1.bf16.msra.mxu0 0
        %2065 = vmatprep.mubr.bf16.mxu0 0
        %2066 = vmatmul.mubr.bf16.gmra.mrb[0].mxu0 %v1925
        %v2067 = vpop.f32.mrb[0].mxu0
        %v2068 = vadd.f32 %v2031, %v2067
        %v2069 = vpop.f32.mrb[0].mxu0
        %v2070 = vpop.f32.mrb[0].mxu0
        %v2071 = vpop.f32.mrb[0].mxu0
        %2072 = vdwg.mxu0
        %v2073 = vld [vmem:[%s33] sm:$0xff]
        %v2074 = vld [vmem:[%s33 + $0x8] sm:$0xff]
        %v2075 = vld [vmem:[%s33 + $0x10] sm:$0xff]
        %v2076 = vld [vmem:[%s33 + $0x18] sm:$0xff]
        %v2077 = vpack.c.bf16 %v1962, %v1962
        %v2078 = vpack.c.bf16 %v2015, %v2015
        %vm2079 = vcmask 64512
        %v2081 = vsel %vm2079, %v2077, 0
        %v2084 = vsel %vm2079, %v2078, 0
        %2086 = vmatprep.subr.bf16.mxu0 0
        %2087 = vmatpush1.bf16.xpose.msra.mxu0 %v2084
        %2088 = vmatprep.subr.bf16.mxu0 0
        %2089 = vmatpush1.bf16.xpose.msra.mxu0 0
        %2090 = vmatprep.subr.bf16.mxu0 0
        %2091 = vmatpush1.bf16.xpose.msra.mxu0 0
        %2092 = vmatprep.subr.bf16.mxu0 0
        %2093 = vmatpush1.bf16.xpose.msra.mxu0 0
        %2094 = vmatprep.subr.bf16.mxu0 0
        %2095 = vmatpush1.bf16.xpose.msra.mxu0 0
        %2096 = vmatprep.subr.bf16.mxu0 0
        %2097 = vmatpush1.bf16.xpose.msra.mxu0 0
        %2098 = vmatprep.subr.bf16.mxu0 0
        %2099 = vmatpush1.bf16.xpose.msra.mxu0 0
        %2100 = vmatprep.subr.bf16.mxu0 0
        %2101 = vmatpush1.bf16.xpose.msra.mxu0 0
        %2102 = vmatprep.subr.bf16.mxu0 0
        %2103 = vmatpush1.bf16.xpose.msra.mxu0 0
        %2104 = vmatprep.subr.bf16.mxu0 0
        %2105 = vmatpush1.bf16.xpose.msra.mxu0 0
        %2106 = vmatprep.subr.bf16.mxu0 0
        %2107 = vmatpush1.bf16.xpose.msra.mxu0 0
        %2108 = vmatprep.subr.bf16.mxu0 0
        %2109 = vmatpush1.bf16.xpose.msra.mxu0 0
        %2110 = vmatprep.subr.bf16.mxu0 0
        %2111 = vmatpush1.bf16.xpose.msra.mxu0 0
        %2112 = vmatprep.subr.bf16.mxu0 0
        %2113 = vmatpush1.bf16.xpose.msra.mxu0 0
        %2114 = vmatprep.subr.bf16.mxu0 0
        %2115 = vmatpush1.bf16.xpose.msra.mxu0 0
        %2116 = vmatprep.subr.bf16.mxu0 0
        %2117 = vmatpush1.bf16.xpose.msra.mxu0 0
        %2118 = vmatprep.mubr.bf16.mxu0 0
        %2119 = vmatmul.mubr.bf16.gmra.mrb[0].mxu0 %v2081
        %v2120 = vpop.f32.mrb[0].mxu0
        %v2121 = vadd.f32 0.0, %v2120
        %v2122 = vpop.f32.mrb[0].mxu0
        %v2123 = vpop.f32.mrb[0].mxu0
        %v2124 = vpop.f32.mrb[0].mxu0
        %2125 = vdwg.mxu0
        %v2126 = vmul.f32 %v2121, 0.35355338
        %v2127 = vsel %vm1909, 1, 0
        %v2128 = vlaneseq
        %v2129 = vshrl.u32 %v2128, 7
        %v2130 = vsub.s32 0, %v2129
        %v2131 = vrot.slane %v2127, %v2130
        %vm2132 = vcmp.eq.s32.totalorder %v2131, 1
        %v2133 = vsel %vm2132, %v2126, -1e+30
        %v2134 = vsel %vm2079, %v2133, -inf
        %2135 = vmax.xlane.f32.xlu0 %v2134
        %v2136 = vpop.xlane.xlu0 %2135
        %v2137 = vsub.f32 %v2133, %v2136
        %v2138 = vmul.f32 %v2137, 1.442695
        %v2139 = vpow.pop %v2138
        %v2140 = vsel %vm2079, %v2139, 0.0
        %2141 = vadd.xlane.f32.xlu0 %v2140
        %v2142 = vpop.xlane.xlu0 %2141
        %v2143 = vrcp.pop %v2142
        %v2144 = vmul.f32 %v2139, %v2143
        %v2145 = vsel %vm2132, %v2144, 0.0
        %v2146 = vpack.c.bf16 %v2145, %v2145
        %v2147 = vpack.c.bf16 %v2068, %v2068
        %v2149 = vsel %vm2079, %v2146, 0
        %vm2151 = vcmask 1043456
        %v2153 = vsel %vm2151, %v2147, 0
        %2155 = vmatprep.subr.bf16.mxu0 0
        %2156 = vmatpush1.bf16.msra.mxu0 %v2153
        %2157 = vmatprep.subr.bf16.mxu0 0
        %2158 = vmatpush1.bf16.msra.mxu0 0
        %2159 = vmatprep.subr.bf16.mxu0 0
        %2160 = vmatpush1.bf16.msra.mxu0 0
        %2161 = vmatprep.subr.bf16.mxu0 0
        %2162 = vmatpush1.bf16.msra.mxu0 0
        %2163 = vmatprep.subr.bf16.mxu0 0
        %2164 = vmatpush1.bf16.msra.mxu0 0
        %2165 = vmatprep.subr.bf16.mxu0 0
        %2166 = vmatpush1.bf16.msra.mxu0 0
        %2167 = vmatprep.subr.bf16.mxu0 0
        %2168 = vmatpush1.bf16.msra.mxu0 0
        %2169 = vmatprep.subr.bf16.mxu0 0
        %2170 = vmatpush1.bf16.msra.mxu0 0
        %2171 = vmatprep.subr.bf16.mxu0 0
        %2172 = vmatpush1.bf16.msra.mxu0 0
        %2173 = vmatprep.subr.bf16.mxu0 0
        %2174 = vmatpush1.bf16.msra.mxu0 0
        %2175 = vmatprep.subr.bf16.mxu0 0
        %2176 = vmatpush1.bf16.msra.mxu0 0
        %2177 = vmatprep.subr.bf16.mxu0 0
        %2178 = vmatpush1.bf16.msra.mxu0 0
        %2179 = vmatprep.subr.bf16.mxu0 0
        %2180 = vmatpush1.bf16.msra.mxu0 0
        %2181 = vmatprep.subr.bf16.mxu0 0
        %2182 = vmatpush1.bf16.msra.mxu0 0
        %2183 = vmatprep.subr.bf16.mxu0 0
        %2184 = vmatpush1.bf16.msra.mxu0 0
        %2185 = vmatprep.subr.bf16.mxu0 0
        %2186 = vmatpush1.bf16.msra.mxu0 0
        %2187 = vmatprep.mubr.bf16.mxu0 0
        %2188 = vmatmul.mubr.bf16.gmra.mrb[0].mxu0 %v2149
        %v2189 = vpop.f32.mrb[0].mxu0
        %v2190 = vadd.f32 0.0, %v2189
        %v2191 = vpop.f32.mrb[0].mxu0
        %v2192 = vpop.f32.mrb[0].mxu0
        %v2193 = vpop.f32.mrb[0].mxu0
        %2194 = vdwg.mxu0
        %v2195 = vpack.c.bf16 %v2190, %v2190
        %v2196 = vpack.c.bf16 %v2073, %v2073
        %2198 = vrot.lane.b32.xlu0 %v2077, 120
        %v2199 = vpop.permute.xlu0 %2198
        %2201 = vrot.lane.b32.xlu0 %v2078, 120
        %v2202 = vpop.permute.xlu0 %2201
        %v2204 = vsel %vm2079, %v2199, 0
        %v2207 = vsel %vm2079, %v2202, 0
        %2209 = vmatprep.subr.bf16.mxu0 0
        %2210 = vmatpush1.bf16.xpose.msra.mxu0 %v2207
        %2211 = vmatprep.subr.bf16.mxu0 0
        %2212 = vmatpush1.bf16.xpose.msra.mxu0 0
        %2213 = vmatprep.subr.bf16.mxu0 0
        %2214 = vmatpush1.bf16.xpose.msra.mxu0 0
        %2215 = vmatprep.subr.bf16.mxu0 0
        %2216 = vmatpush1.bf16.xpose.msra.mxu0 0
        %2217 = vmatprep.subr.bf16.mxu0 0
        %2218 = vmatpush1.bf16.xpose.msra.mxu0 0
        %2219 = vmatprep.subr.bf16.mxu0 0
        %2220 = vmatpush1.bf16.xpose.msra.mxu0 0
        %2221 = vmatprep.subr.bf16.mxu0 0
        %2222 = vmatpush1.bf16.xpose.msra.mxu0 0
        %2223 = vmatprep.subr.bf16.mxu0 0
        %2224 = vmatpush1.bf16.xpose.msra.mxu0 0
        %2225 = vmatprep.subr.bf16.mxu0 0
        %2226 = vmatpush1.bf16.xpose.msra.mxu0 0
        %2227 = vmatprep.subr.bf16.mxu0 0
        %2228 = vmatpush1.bf16.xpose.msra.mxu0 0
        %2229 = vmatprep.subr.bf16.mxu0 0
        %2230 = vmatpush1.bf16.xpose.msra.mxu0 0
        %2231 = vmatprep.subr.bf16.mxu0 0
        %2232 = vmatpush1.bf16.xpose.msra.mxu0 0
        %2233 = vmatprep.subr.bf16.mxu0 0
        %2234 = vmatpush1.bf16.xpose.msra.mxu0 0
        %2235 = vmatprep.subr.bf16.mxu0 0
        %2236 = vmatpush1.bf16.xpose.msra.mxu0 0
        %2237 = vmatprep.subr.bf16.mxu0 0
        %2238 = vmatpush1.bf16.xpose.msra.mxu0 0
        %2239 = vmatprep.subr.bf16.mxu0 0
        %2240 = vmatpush1.bf16.xpose.msra.mxu0 0
        %2241 = vmatprep.mubr.bf16.mxu0 0
        %2242 = vmatmul.mubr.bf16.gmra.mrb[0].mxu0 %v2204
        %v2243 = vpop.f32.mrb[0].mxu0
        %v2244 = vadd.f32 0.0, %v2243
        %v2245 = vpop.f32.mrb[0].mxu0
        %v2246 = vpop.f32.mrb[0].mxu0
        %v2247 = vpop.f32.mrb[0].mxu0
        %2248 = vdwg.mxu0
        %v2249 = vmul.f32 %v2244, 0.35355338
        %v2250 = vsel %vm2132, %v2249, -1e+30
        %v2251 = vsel %vm2079, %v2250, -inf
        %2252 = vmax.xlane.f32.xlu0 %v2251
        %v2253 = vpop.xlane.xlu0 %2252
        %v2254 = vsub.f32 %v2250, %v2253
        %v2255 = vmul.f32 %v2254, 1.442695
        %v2256 = vpow.pop %v2255
        %v2257 = vsel %vm2079, %v2256, 0.0
        %2258 = vadd.xlane.f32.xlu0 %v2257
        %v2259 = vpop.xlane.xlu0 %2258
        %v2260 = vrcp.pop %v2259
        %v2261 = vmul.f32 %v2256, %v2260
        %v2262 = vsel %vm2132, %v2261, 0.0
        %v2263 = vpack.c.bf16 %v2262, %v2262
        %2265 = vrot.lane.b32.xlu0 %v2147, 120
        %v2266 = vpop.permute.xlu0 %2265
        %v2268 = vsel %vm2079, %v2263, 0
        %v2271 = vsel %vm2151, %v2266, 0
        %2273 = vmatprep.subr.bf16.mxu0 0
        %2274 = vmatpush1.bf16.msra.mxu0 %v2271
        %2275 = vmatprep.subr.bf16.mxu0 0
        %2276 = vmatpush1.bf16.msra.mxu0 0
        %2277 = vmatprep.subr.bf16.mxu0 0
        %2278 = vmatpush1.bf16.msra.mxu0 0
        %2279 = vmatprep.subr.bf16.mxu0 0
        %2280 = vmatpush1.bf16.msra.mxu0 0
        %2281 = vmatprep.subr.bf16.mxu0 0
        %2282 = vmatpush1.bf16.msra.mxu0 0
        %2283 = vmatprep.subr.bf16.mxu0 0
        %2284 = vmatpush1.bf16.msra.mxu0 0
        %2285 = vmatprep.subr.bf16.mxu0 0
        %2286 = vmatpush1.bf16.msra.mxu0 0
        %2287 = vmatprep.subr.bf16.mxu0 0
        %2288 = vmatpush1.bf16.msra.mxu0 0
        %2289 = vmatprep.subr.bf16.mxu0 0
        %2290 = vmatpush1.bf16.msra.mxu0 0
        %2291 = vmatprep.subr.bf16.mxu0 0
        %2292 = vmatpush1.bf16.msra.mxu0 0
        %2293 = vmatprep.subr.bf16.mxu0 0
        %2294 = vmatpush1.bf16.msra.mxu0 0
        %2295 = vmatprep.subr.bf16.mxu0 0
        %2296 = vmatpush1.bf16.msra.mxu0 0
        %2297 = vmatprep.subr.bf16.mxu0 0
        %2298 = vmatpush1.bf16.msra.mxu0 0
        %2299 = vmatprep.subr.bf16.mxu0 0
        %2300 = vmatpush1.bf16.msra.mxu0 0
        %2301 = vmatprep.subr.bf16.mxu0 0
        %2302 = vmatpush1.bf16.msra.mxu0 0
        %2303 = vmatprep.subr.bf16.mxu0 0
        %2304 = vmatpush1.bf16.msra.mxu0 0
        %2305 = vmatprep.mubr.bf16.mxu0 0
        %2306 = vmatmul.mubr.bf16.gmra.mrb[0].mxu0 %v2268
        %v2307 = vpop.f32.mrb[0].mxu0
        %v2308 = vadd.f32 0.0, %v2307
        %v2309 = vpop.f32.mrb[0].mxu0
        %v2310 = vpop.f32.mrb[0].mxu0
        %v2311 = vpop.f32.mrb[0].mxu0
        %2312 = vdwg.mxu0
        %v2313 = vpack.c.bf16 %v2308, %v2308
        %v2314 = vpack.c.bf16 %v2074, %v2074
        %v2316 = vsel %vm2079, %v2313, 0
        %v2319 = vsel %vm2151, %v2314, 0
        %2321 = vmatprep.subr.bf16.mxu0 0
        %2322 = vmatpush1.bf16.msra.mxu0 %v2319
        %2323 = vmatprep.subr.bf16.mxu0 0
        %2324 = vmatpush1.bf16.msra.mxu0 0
        %2325 = vmatprep.subr.bf16.mxu0 0
        %2326 = vmatpush1.bf16.msra.mxu0 0
        %2327 = vmatprep.subr.bf16.mxu0 0
        %2328 = vmatpush1.bf16.msra.mxu0 0
        %2329 = vmatprep.subr.bf16.mxu0 0
        %2330 = vmatpush1.bf16.msra.mxu0 0
        %2331 = vmatprep.subr.bf16.mxu0 0
        %2332 = vmatpush1.bf16.msra.mxu0 0
        %2333 = vmatprep.subr.bf16.mxu0 0
        %2334 = vmatpush1.bf16.msra.mxu0 0
        %2335 = vmatprep.subr.bf16.mxu0 0
        %2336 = vmatpush1.bf16.msra.mxu0 0
        %2337 = vmatprep.subr.bf16.mxu0 0
        %2338 = vmatpush1.bf16.msra.mxu0 0
        %2339 = vmatprep.subr.bf16.mxu0 0
        %2340 = vmatpush1.bf16.msra.mxu0 0
        %2341 = vmatprep.subr.bf16.mxu0 0
        %2342 = vmatpush1.bf16.msra.mxu0 0
        %2343 = vmatprep.subr.bf16.mxu0 0
        %2344 = vmatpush1.bf16.msra.mxu0 0
        %2345 = vmatprep.subr.bf16.mxu0 0
        %2346 = vmatpush1.bf16.msra.mxu0 0
        %2347 = vmatprep.subr.bf16.mxu0 0
        %2348 = vmatpush1.bf16.msra.mxu0 0
        %2349 = vmatprep.subr.bf16.mxu0 0
        %2350 = vmatpush1.bf16.msra.mxu0 0
        %2351 = vmatprep.subr.bf16.mxu0 0
        %2352 = vmatpush1.bf16.msra.mxu0 0
        %2353 = vmatprep.mubr.bf16.mxu0 0
        %2354 = vmatmul.mubr.bf16.gmra.mrb[0].mxu0 %v2316
        %v2355 = vpop.f32.mrb[0].mxu0
        %v2356 = vadd.f32 0.0, %v2355
        %v2357 = vpop.f32.mrb[0].mxu0
        %v2358 = vpop.f32.mrb[0].mxu0
        %v2359 = vpop.f32.mrb[0].mxu0
        %2360 = vdwg.mxu0
        %v2362 = vsel %vm2079, %v2195, 0
        %v2365 = vsel %vm2151, %v2196, 0
        %2367 = vmatprep.subr.bf16.mxu0 0
        %2368 = vmatpush1.bf16.msra.mxu0 %v2365
        %2369 = vmatprep.subr.bf16.mxu0 0
        %2370 = vmatpush1.bf16.msra.mxu0 0
        %2371 = vmatprep.subr.bf16.mxu0 0
        %2372 = vmatpush1.bf16.msra.mxu0 0
        %2373 = vmatprep.subr.bf16.mxu0 0
        %2374 = vmatpush1.bf16.msra.mxu0 0
        %2375 = vmatprep.subr.bf16.mxu0 0
        %2376 = vmatpush1.bf16.msra.mxu0 0
        %2377 = vmatprep.subr.bf16.mxu0 0
        %2378 = vmatpush1.bf16.msra.mxu0 0
        %2379 = vmatprep.subr.bf16.mxu0 0
        %2380 = vmatpush1.bf16.msra.mxu0 0
        %2381 = vmatprep.subr.bf16.mxu0 0
        %2382 = vmatpush1.bf16.msra.mxu0 0
        %2383 = vmatprep.subr.bf16.mxu0 0
        %2384 = vmatpush1.bf16.msra.mxu0 0
        %2385 = vmatprep.subr.bf16.mxu0 0
        %2386 = vmatpush1.bf16.msra.mxu0 0
        %2387 = vmatprep.subr.bf16.mxu0 0
        %2388 = vmatpush1.bf16.msra.mxu0 0
        %2389 = vmatprep.subr.bf16.mxu0 0
        %2390 = vmatpush1.bf16.msra.mxu0 0
        %2391 = vmatprep.subr.bf16.mxu0 0
        %2392 = vmatpush1.bf16.msra.mxu0 0
        %2393 = vmatprep.subr.bf16.mxu0 0
        %2394 = vmatpush1.bf16.msra.mxu0 0
        %2395 = vmatprep.subr.bf16.mxu0 0
        %2396 = vmatpush1.bf16.msra.mxu0 0
        %2397 = vmatprep.subr.bf16.mxu0 0
        %2398 = vmatpush1.bf16.msra.mxu0 0
        %2399 = vmatprep.mubr.bf16.mxu0 0
        %2400 = vmatmul.mubr.bf16.gmra.mrb[0].mxu0 %v2362
        %v2401 = vpop.f32.mrb[0].mxu0
        %v2402 = vadd.f32 %v2356, %v2401
        %v2403 = vpop.f32.mrb[0].mxu0
        %v2404 = vpop.f32.mrb[0].mxu0
        %v2405 = vpop.f32.mrb[0].mxu0
        %2406 = vdwg.mxu0
        %2407 = vrot.lane.b32.xlu0 %v2077, 112
        %v2408 = vpop.permute.xlu0 %2407
        %2409 = vrot.lane.b32.xlu0 %v2078, 112
        %v2410 = vpop.permute.xlu0 %2409
        %v2412 = vsel %vm2079, %v2408, 0
        %v2415 = vsel %vm2079, %v2410, 0
        %2417 = vmatprep.subr.bf16.mxu0 0
        %2418 = vmatpush1.bf16.xpose.msra.mxu0 %v2415
        %2419 = vmatprep.subr.bf16.mxu0 0
        %2420 = vmatpush1.bf16.xpose.msra.mxu0 0
        %2421 = vmatprep.subr.bf16.mxu0 0
        %2422 = vmatpush1.bf16.xpose.msra.mxu0 0
        %2423 = vmatprep.subr.bf16.mxu0 0
        %2424 = vmatpush1.bf16.xpose.msra.mxu0 0
        %2425 = vmatprep.subr.bf16.mxu0 0
        %2426 = vmatpush1.bf16.xpose.msra.mxu0 0
        %2427 = vmatprep.subr.bf16.mxu0 0
        %2428 = vmatpush1.bf16.xpose.msra.mxu0 0
        %2429 = vmatprep.subr.bf16.mxu0 0
        %2430 = vmatpush1.bf16.xpose.msra.mxu0 0
        %2431 = vmatprep.subr.bf16.mxu0 0
        %2432 = vmatpush1.bf16.xpose.msra.mxu0 0
        %2433 = vmatprep.subr.bf16.mxu0 0
        %2434 = vmatpush1.bf16.xpose.msra.mxu0 0
        %2435 = vmatprep.subr.bf16.mxu0 0
        %2436 = vmatpush1.bf16.xpose.msra.mxu0 0
        %2437 = vmatprep.subr.bf16.mxu0 0
        %2438 = vmatpush1.bf16.xpose.msra.mxu0 0
        %2439 = vmatprep.subr.bf16.mxu0 0
        %2440 = vmatpush1.bf16.xpose.msra.mxu0 0
        %2441 = vmatprep.subr.bf16.mxu0 0
        %2442 = vmatpush1.bf16.xpose.msra.mxu0 0
        %2443 = vmatprep.subr.bf16.mxu0 0
        %2444 = vmatpush1.bf16.xpose.msra.mxu0 0
        %2445 = vmatprep.subr.bf16.mxu0 0
        %2446 = vmatpush1.bf16.xpose.msra.mxu0 0
        %2447 = vmatprep.subr.bf16.mxu0 0
        %2448 = vmatpush1.bf16.xpose.msra.mxu0 0
        %2449 = vmatprep.mubr.bf16.mxu0 0
        %2450 = vmatmul.mubr.bf16.gmra.mrb[0].mxu0 %v2412
        %v2451 = vpop.f32.mrb[0].mxu0
        %v2452 = vadd.f32 0.0, %v2451
        %v2453 = vpop.f32.mrb[0].mxu0
        %v2454 = vpop.f32.mrb[0].mxu0
        %v2455 = vpop.f32.mrb[0].mxu0
        %2456 = vdwg.mxu0
        %v2457 = vmul.f32 %v2452, 0.35355338
        %v2458 = vsel %vm2132, %v2457, -1e+30
        %v2459 = vsel %vm2079, %v2458, -inf
        %2460 = vmax.xlane.f32.xlu0 %v2459
        %v2461 = vpop.xlane.xlu0 %2460
        %v2462 = vsub.f32 %v2458, %v2461
        %v2463 = vmul.f32 %v2462, 1.442695
        %v2464 = vpow.pop %v2463
        %v2465 = vsel %vm2079, %v2464, 0.0
        %2466 = vadd.xlane.f32.xlu0 %v2465
        %v2467 = vpop.xlane.xlu0 %2466
        %v2468 = vrcp.pop %v2467
        %v2469 = vmul.f32 %v2464, %v2468
        %v2470 = vsel %vm2132, %v2469, 0.0
        %v2471 = vpack.c.bf16 %v2470, %v2470
        %2472 = vrot.lane.b32.xlu0 %v2147, 112
        %v2473 = vpop.permute.xlu0 %2472
        %v2475 = vsel %vm2079, %v2471, 0
        %v2478 = vsel %vm2151, %v2473, 0
        %2480 = vmatprep.subr.bf16.mxu0 0
        %2481 = vmatpush1.bf16.msra.mxu0 %v2478
        %2482 = vmatprep.subr.bf16.mxu0 0
        %2483 = vmatpush1.bf16.msra.mxu0 0
        %2484 = vmatprep.subr.bf16.mxu0 0
        %2485 = vmatpush1.bf16.msra.mxu0 0
        %2486 = vmatprep.subr.bf16.mxu0 0
        %2487 = vmatpush1.bf16.msra.mxu0 0
        %2488 = vmatprep.subr.bf16.mxu0 0
        %2489 = vmatpush1.bf16.msra.mxu0 0
        %2490 = vmatprep.subr.bf16.mxu0 0
        %2491 = vmatpush1.bf16.msra.mxu0 0
        %2492 = vmatprep.subr.bf16.mxu0 0
        %2493 = vmatpush1.bf16.msra.mxu0 0
        %2494 = vmatprep.subr.bf16.mxu0 0
        %2495 = vmatpush1.bf16.msra.mxu0 0
        %2496 = vmatprep.subr.bf16.mxu0 0
        %2497 = vmatpush1.bf16.msra.mxu0 0
        %2498 = vmatprep.subr.bf16.mxu0 0
        %2499 = vmatpush1.bf16.msra.mxu0 0
        %2500 = vmatprep.subr.bf16.mxu0 0
        %2501 = vmatpush1.bf16.msra.mxu0 0
        %2502 = vmatprep.subr.bf16.mxu0 0
        %2503 = vmatpush1.bf16.msra.mxu0 0
        %2504 = vmatprep.subr.bf16.mxu0 0
        %2505 = vmatpush1.bf16.msra.mxu0 0
        %2506 = vmatprep.subr.bf16.mxu0 0
        %2507 = vmatpush1.bf16.msra.mxu0 0
        %2508 = vmatprep.subr.bf16.mxu0 0
        %2509 = vmatpush1.bf16.msra.mxu0 0
        %2510 = vmatprep.subr.bf16.mxu0 0
        %2511 = vmatpush1.bf16.msra.mxu0 0
        %2512 = vmatprep.mubr.bf16.mxu0 0
        %2513 = vmatmul.mubr.bf16.gmra.mrb[0].mxu0 %v2475
        %v2514 = vpop.f32.mrb[0].mxu0
        %v2515 = vadd.f32 0.0, %v2514
        %v2516 = vpop.f32.mrb[0].mxu0
        %v2517 = vpop.f32.mrb[0].mxu0
        %v2518 = vpop.f32.mrb[0].mxu0
        %2519 = vdwg.mxu0
        %v2520 = vpack.c.bf16 %v2515, %v2515
        %v2521 = vpack.c.bf16 %v2075, %v2075
        %v2523 = vsel %vm2079, %v2520, 0
        %v2526 = vsel %vm2151, %v2521, 0
        %2528 = vmatprep.subr.bf16.mxu0 0
        %2529 = vmatpush1.bf16.msra.mxu0 %v2526
        %2530 = vmatprep.subr.bf16.mxu0 0
        %2531 = vmatpush1.bf16.msra.mxu0 0
        %2532 = vmatprep.subr.bf16.mxu0 0
        %2533 = vmatpush1.bf16.msra.mxu0 0
        %2534 = vmatprep.subr.bf16.mxu0 0
        %2535 = vmatpush1.bf16.msra.mxu0 0
        %2536 = vmatprep.subr.bf16.mxu0 0
        %2537 = vmatpush1.bf16.msra.mxu0 0
        %2538 = vmatprep.subr.bf16.mxu0 0
        %2539 = vmatpush1.bf16.msra.mxu0 0
        %2540 = vmatprep.subr.bf16.mxu0 0
        %2541 = vmatpush1.bf16.msra.mxu0 0
        %2542 = vmatprep.subr.bf16.mxu0 0
        %2543 = vmatpush1.bf16.msra.mxu0 0
        %2544 = vmatprep.subr.bf16.mxu0 0
        %2545 = vmatpush1.bf16.msra.mxu0 0
        %2546 = vmatprep.subr.bf16.mxu0 0
        %2547 = vmatpush1.bf16.msra.mxu0 0
        %2548 = vmatprep.subr.bf16.mxu0 0
        %2549 = vmatpush1.bf16.msra.mxu0 0
        %2550 = vmatprep.subr.bf16.mxu0 0
        %2551 = vmatpush1.bf16.msra.mxu0 0
        %2552 = vmatprep.subr.bf16.mxu0 0
        %2553 = vmatpush1.bf16.msra.mxu0 0
        %2554 = vmatprep.subr.bf16.mxu0 0
        %2555 = vmatpush1.bf16.msra.mxu0 0
        %2556 = vmatprep.subr.bf16.mxu0 0
        %2557 = vmatpush1.bf16.msra.mxu0 0
        %2558 = vmatprep.subr.bf16.mxu0 0
        %2559 = vmatpush1.bf16.msra.mxu0 0
        %2560 = vmatprep.mubr.bf16.mxu0 0
        %2561 = vmatmul.mubr.bf16.gmra.mrb[0].mxu0 %v2523
        %v2562 = vpop.f32.mrb[0].mxu0
        %v2563 = vadd.f32 0.0, %v2562
        %v2564 = vpop.f32.mrb[0].mxu0
        %v2565 = vpop.f32.mrb[0].mxu0
        %v2566 = vpop.f32.mrb[0].mxu0
        %2567 = vdwg.mxu0
        %v2568 = vadd.f32 %v2402, %v2563
        %2569 = vrot.lane.b32.xlu0 %v2077, 104
        %v2570 = vpop.permute.xlu0 %2569
        %2571 = vrot.lane.b32.xlu0 %v2078, 104
        %v2572 = vpop.permute.xlu0 %2571
        %v2574 = vsel %vm2079, %v2570, 0
        %v2577 = vsel %vm2079, %v2572, 0
        %2579 = vmatprep.subr.bf16.mxu0 0
        %2580 = vmatpush1.bf16.xpose.msra.mxu0 %v2577
        %2581 = vmatprep.subr.bf16.mxu0 0
        %2582 = vmatpush1.bf16.xpose.msra.mxu0 0
        %2583 = vmatprep.subr.bf16.mxu0 0
        %2584 = vmatpush1.bf16.xpose.msra.mxu0 0
        %2585 = vmatprep.subr.bf16.mxu0 0
        %2586 = vmatpush1.bf16.xpose.msra.mxu0 0
        %2587 = vmatprep.subr.bf16.mxu0 0
        %2588 = vmatpush1.bf16.xpose.msra.mxu0 0
        %2589 = vmatprep.subr.bf16.mxu0 0
        %2590 = vmatpush1.bf16.xpose.msra.mxu0 0
        %2591 = vmatprep.subr.bf16.mxu0 0
        %2592 = vmatpush1.bf16.xpose.msra.mxu0 0
        %2593 = vmatprep.subr.bf16.mxu0 0
        %2594 = vmatpush1.bf16.xpose.msra.mxu0 0
        %2595 = vmatprep.subr.bf16.mxu0 0
        %2596 = vmatpush1.bf16.xpose.msra.mxu0 0
        %2597 = vmatprep.subr.bf16.mxu0 0
        %2598 = vmatpush1.bf16.xpose.msra.mxu0 0
        %2599 = vmatprep.subr.bf16.mxu0 0
        %2600 = vmatpush1.bf16.xpose.msra.mxu0 0
        %2601 = vmatprep.subr.bf16.mxu0 0
        %2602 = vmatpush1.bf16.xpose.msra.mxu0 0
        %2603 = vmatprep.subr.bf16.mxu0 0
        %2604 = vmatpush1.bf16.xpose.msra.mxu0 0
        %2605 = vmatprep.subr.bf16.mxu0 0
        %2606 = vmatpush1.bf16.xpose.msra.mxu0 0
        %2607 = vmatprep.subr.bf16.mxu0 0
        %2608 = vmatpush1.bf16.xpose.msra.mxu0 0
        %2609 = vmatprep.subr.bf16.mxu0 0
        %2610 = vmatpush1.bf16.xpose.msra.mxu0 0
        %2611 = vmatprep.mubr.bf16.mxu0 0
        %2612 = vmatmul.mubr.bf16.gmra.mrb[0].mxu0 %v2574
        %v2613 = vpop.f32.mrb[0].mxu0
        %v2614 = vadd.f32 0.0, %v2613
        %v2615 = vpop.f32.mrb[0].mxu0
        %v2616 = vpop.f32.mrb[0].mxu0
        %v2617 = vpop.f32.mrb[0].mxu0
        %2618 = vdwg.mxu0
        %v2619 = vmul.f32 %v2614, 0.35355338
        %v2620 = vsel %vm2132, %v2619, -1e+30
        %v2621 = vsel %vm2079, %v2620, -inf
        %2622 = vmax.xlane.f32.xlu0 %v2621
        %v2623 = vpop.xlane.xlu0 %2622
        %v2624 = vsub.f32 %v2620, %v2623
        %v2625 = vmul.f32 %v2624, 1.442695
        %v2626 = vpow.pop %v2625
        %v2627 = vsel %vm2079, %v2626, 0.0
        %2628 = vadd.xlane.f32.xlu0 %v2627
        %v2629 = vpop.xlane.xlu0 %2628
        %v2630 = vrcp.pop %v2629
        %v2631 = vmul.f32 %v2626, %v2630
        %v2632 = vsel %vm2132, %v2631, 0.0
        %v2633 = vpack.c.bf16 %v2632, %v2632
        %2634 = vrot.lane.b32.xlu0 %v2147, 104
        %v2635 = vpop.permute.xlu0 %2634
        %v2637 = vsel %vm2079, %v2633, 0
        %v2640 = vsel %vm2151, %v2635, 0
        %2642 = vmatprep.subr.bf16.mxu0 0
        %2643 = vmatpush1.bf16.msra.mxu0 %v2640
        %2644 = vmatprep.subr.bf16.mxu0 0
        %2645 = vmatpush1.bf16.msra.mxu0 0
        %2646 = vmatprep.subr.bf16.mxu0 0
        %2647 = vmatpush1.bf16.msra.mxu0 0
        %2648 = vmatprep.subr.bf16.mxu0 0
        %2649 = vmatpush1.bf16.msra.mxu0 0
        %2650 = vmatprep.subr.bf16.mxu0 0
        %2651 = vmatpush1.bf16.msra.mxu0 0
        %2652 = vmatprep.subr.bf16.mxu0 0
        %2653 = vmatpush1.bf16.msra.mxu0 0
        %2654 = vmatprep.subr.bf16.mxu0 0
        %2655 = vmatpush1.bf16.msra.mxu0 0
        %2656 = vmatprep.subr.bf16.mxu0 0
        %2657 = vmatpush1.bf16.msra.mxu0 0
        %2658 = vmatprep.subr.bf16.mxu0 0
        %2659 = vmatpush1.bf16.msra.mxu0 0
        %2660 = vmatprep.subr.bf16.mxu0 0
        %2661 = vmatpush1.bf16.msra.mxu0 0
        %2662 = vmatprep.subr.bf16.mxu0 0
        %2663 = vmatpush1.bf16.msra.mxu0 0
        %2664 = vmatprep.subr.bf16.mxu0 0
        %2665 = vmatpush1.bf16.msra.mxu0 0
        %2666 = vmatprep.subr.bf16.mxu0 0
        %2667 = vmatpush1.bf16.msra.mxu0 0
        %2668 = vmatprep.subr.bf16.mxu0 0
        %2669 = vmatpush1.bf16.msra.mxu0 0
        %2670 = vmatprep.subr.bf16.mxu0 0
        %2671 = vmatpush1.bf16.msra.mxu0 0
        %2672 = vmatprep.subr.bf16.mxu0 0
        %2673 = vmatpush1.bf16.msra.mxu0 0
        %2674 = vmatprep.mubr.bf16.mxu0 0
        %2675 = vmatmul.mubr.bf16.gmra.mrb[0].mxu0 %v2637
        %v2676 = vpop.f32.mrb[0].mxu0
        %v2677 = vadd.f32 0.0, %v2676
        %v2678 = vpop.f32.mrb[0].mxu0
        %v2679 = vpop.f32.mrb[0].mxu0
        %v2680 = vpop.f32.mrb[0].mxu0
        %2681 = vdwg.mxu0
        %v2682 = vpack.c.bf16 %v2677, %v2677
        %v2683 = vpack.c.bf16 %v2076, %v2076
        %v2685 = vsel %vm2079, %v2682, 0
        %v2688 = vsel %vm2151, %v2683, 0
        %2690 = vmatprep.subr.bf16.mxu0 0
        %2691 = vmatpush1.bf16.msra.mxu0 %v2688
        %2692 = vmatprep.subr.bf16.mxu0 0
        %2693 = vmatpush1.bf16.msra.mxu0 0
        %2694 = vmatprep.subr.bf16.mxu0 0
        %2695 = vmatpush1.bf16.msra.mxu0 0
        %2696 = vmatprep.subr.bf16.mxu0 0
        %2697 = vmatpush1.bf16.msra.mxu0 0
        %2698 = vmatprep.subr.bf16.mxu0 0
        %2699 = vmatpush1.bf16.msra.mxu0 0
        %2700 = vmatprep.subr.bf16.mxu0 0
        %2701 = vmatpush1.bf16.msra.mxu0 0
        %2702 = vmatprep.subr.bf16.mxu0 0
        %2703 = vmatpush1.bf16.msra.mxu0 0
        %2704 = vmatprep.subr.bf16.mxu0 0
        %2705 = vmatpush1.bf16.msra.mxu0 0
        %2706 = vmatprep.subr.bf16.mxu0 0
        %2707 = vmatpush1.bf16.msra.mxu0 0
        %2708 = vmatprep.subr.bf16.mxu0 0
        %2709 = vmatpush1.bf16.msra.mxu0 0
        %2710 = vmatprep.subr.bf16.mxu0 0
        %2711 = vmatpush1.bf16.msra.mxu0 0
        %2712 = vmatprep.subr.bf16.mxu0 0
        %2713 = vmatpush1.bf16.msra.mxu0 0
        %2714 = vmatprep.subr.bf16.mxu0 0
        %2715 = vmatpush1.bf16.msra.mxu0 0
        %2716 = vmatprep.subr.bf16.mxu0 0
        %2717 = vmatpush1.bf16.msra.mxu0 0
        %2718 = vmatprep.subr.bf16.mxu0 0
        %2719 = vmatpush1.bf16.msra.mxu0 0
        %2720 = vmatprep.subr.bf16.mxu0 0
        %2721 = vmatpush1.bf16.msra.mxu0 0
        %2722 = vmatprep.mubr.bf16.mxu0 0
        %2723 = vmatmul.mubr.bf16.gmra.mrb[0].mxu0 %v2685
        %v2724 = vpop.f32.mrb[0].mxu0
        %v2725 = vadd.f32 0.0, %v2724
        %v2726 = vpop.f32.mrb[0].mxu0
        %v2727 = vpop.f32.mrb[0].mxu0
        %v2728 = vpop.f32.mrb[0].mxu0
        %2729 = vdwg.mxu0
        %v2730 = vadd.f32 %v2568, %v2725
        %v2731 = vld [vmem:[#allocation20] sm:$0x1]
        %v2733 = vlaneseq
        %v2734 = vshrl.u32 %v2733, 7
        %v2735 = vsub.s32 0, %v2734
        %v2736 = vrot.slane %v2731, %v2735
        %v2738 = vadd.f32 %v2730, %v2736
        %v2739 = vld [vmem:[#allocation22] sm:$0x1]
        %v2740 = vld [vmem:[#allocation23] sm:$0x1]
        %v2742 = vlaneseq
        %v2743 = vshrl.u32 %v2742, 7
        %v2744 = vsub.s32 0, %v2743
        %v2745 = vrot.slane %v2739, %v2744
        %v2747 = vmul.f32 %v1894, %v2745
        %v2749 = vlaneseq
        %v2750 = vshrl.u32 %v2749, 7
        %v2751 = vsub.s32 0, %v2750
        %v2752 = vrot.slane %v2740, %v2751
        %v2754 = vadd.f32 %v2747, %v2752
        %v2755 = vld [vmem:[%s41] sm:$0xff]
        %v2756 = vld [vmem:[%s41 + $0x8] sm:$0xff]
        %v2757 = vld [vmem:[%s41 + $0x10] sm:$0xff]
        %v2758 = vld [vmem:[%s41 + $0x18] sm:$0xff]
        %v2759 = vpack.c.bf16 %v2754, %v2754
        %v2760 = vpack.c.bf16 %v2756, %v2755
        %v2761 = vpack.c.bf16 %v2758, %v2757
        %v2762 = vld [vmem:[#allocation25] sm:$0x1]
        %v2764 = vlaneseq
        %v2765 = vshrl.u32 %v2764, 7
        %v2766 = vsub.s32 0, %v2765
        %v2767 = vrot.slane %v2762, %v2766
        %v2770 = vsel %vm1727, %v2759, 0
        %2772 = vmatprep.subr.bf16.mxu0 0
        %2773 = vmatpush1.bf16.msra.mxu0 %v2760
        %2774 = vmatprep.subr.bf16.mxu0 0
        %2775 = vmatpush1.bf16.msra.mxu0 %v2761
        %2776 = vmatprep.subr.bf16.mxu0 0
        %2777 = vmatpush1.bf16.msra.mxu0 0
        %2778 = vmatprep.subr.bf16.mxu0 0
        %2779 = vmatpush1.bf16.msra.mxu0 0
        %2780 = vmatprep.subr.bf16.mxu0 0
        %2781 = vmatpush1.bf16.msra.mxu0 0
        %2782 = vmatprep.subr.bf16.mxu0 0
        %2783 = vmatpush1.bf16.msra.mxu0 0
        %2784 = vmatprep.subr.bf16.mxu0 0
        %2785 = vmatpush1.bf16.msra.mxu0 0
        %2786 = vmatprep.subr.bf16.mxu0 0
        %2787 = vmatpush1.bf16.msra.mxu0 0
        %2788 = vmatprep.subr.bf16.mxu0 0
        %2789 = vmatpush1.bf16.msra.mxu0 0
        %2790 = vmatprep.subr.bf16.mxu0 0
        %2791 = vmatpush1.bf16.msra.mxu0 0
        %2792 = vmatprep.subr.bf16.mxu0 0
        %2793 = vmatpush1.bf16.msra.mxu0 0
        %2794 = vmatprep.subr.bf16.mxu0 0
        %2795 = vmatpush1.bf16.msra.mxu0 0
        %2796 = vmatprep.subr.bf16.mxu0 0
        %2797 = vmatpush1.bf16.msra.mxu0 0
        %2798 = vmatprep.subr.bf16.mxu0 0
        %2799 = vmatpush1.bf16.msra.mxu0 0
        %2800 = vmatprep.subr.bf16.mxu0 0
        %2801 = vmatpush1.bf16.msra.mxu0 0
        %2802 = vmatprep.subr.bf16.mxu0 0
        %2803 = vmatpush1.bf16.msra.mxu0 0
        %2804 = vmatprep.mubr.bf16.mxu0 0
        %2805 = vmatmul.mubr.bf16.gmra.mrb[0].mxu0 %v2770
        %v2806 = vpop.f32.mrb[0].mxu0
        %v2807 = vadd.f32 %v2767, %v2806
        %v2808 = vpop.f32.mrb[0].mxu0
        %v2809 = vpop.f32.mrb[0].mxu0
        %v2810 = vpop.f32.mrb[0].mxu0
        %2811 = vdwg.mxu0
        %v2812 = vmul.f32 %v2807, %v2807
        %v2813 = vmul.f32 %v2807, %v2812
        %v2814 = vmul.f32 %v2813, 0.044715
        %v2815 = vadd.f32 %v2807, %v2814
        %v2816 = vmul.f32 %v2815, 0.7978846
        %v2817 = vtanh.pop %v2816
        %v2818 = vadd.f32 %v2817, 1.0
        %v2819 = vmul.f32 %v2818, 0.5
        %v2820 = vmul.f32 %v2807, %v2819
        %v2821 = vld [vmem:[%s45] sm:$0xff]
        %v2822 = vld [vmem:[%s45 + $0x8] sm:$0xff]
        %v2823 = vld [vmem:[%s45 + $0x10] sm:$0xff]
        %v2824 = vld [vmem:[%s45 + $0x18] sm:$0xff]
        %v2825 = vpack.c.bf16 %v2822, %v2821
        %v2826 = vpack.c.bf16 %v2824, %v2823
        %v2827 = vld [vmem:[#allocation26] sm:$0x1]
        %v2829 = vlaneseq
        %v2830 = vshrl.u32 %v2829, 7
        %v2831 = vsub.s32 0, %v2830
        %v2832 = vrot.slane %v2827, %v2831
        %2834 = vmatprep.subr.bf16.mxu0 0
        %2835 = vmatpush1.bf16.msra.mxu0 %v2825
        %2836 = vmatprep.subr.bf16.mxu0 0
        %2837 = vmatpush1.bf16.msra.mxu0 %v2826
        %2838 = vmatprep.subr.bf16.mxu0 0
        %2839 = vmatpush1.bf16.msra.mxu0 0
        %2840 = vmatprep.subr.bf16.mxu0 0
        %2841 = vmatpush1.bf16.msra.mxu0 0
        %2842 = vmatprep.subr.bf16.mxu0 0
        %2843 = vmatpush1.bf16.msra.mxu0 0
        %2844 = vmatprep.subr.bf16.mxu0 0
        %2845 = vmatpush1.bf16.msra.mxu0 0
        %2846 = vmatprep.subr.bf16.mxu0 0
        %2847 = vmatpush1.bf16.msra.mxu0 0
        %2848 = vmatprep.subr.bf16.mxu0 0
        %2849 = vmatpush1.bf16.msra.mxu0 0
        %2850 = vmatprep.subr.bf16.mxu0 0
        %2851 = vmatpush1.bf16.msra.mxu0 0
        %2852 = vmatprep.subr.bf16.mxu0 0
        %2853 = vmatpush1.bf16.msra.mxu0 0
        %2854 = vmatprep.subr.bf16.mxu0 0
        %2855 = vmatpush1.bf16.msra.mxu0 0
        %2856 = vmatprep.subr.bf16.mxu0 0
        %2857 = vmatpush1.bf16.msra.mxu0 0
        %2858 = vmatprep.subr.bf16.mxu0 0
        %2859 = vmatpush1.bf16.msra.mxu0 0
        %2860 = vmatprep.subr.bf16.mxu0 0
        %2861 = vmatpush1.bf16.msra.mxu0 0
        %2862 = vmatprep.subr.bf16.mxu0 0
        %2863 = vmatpush1.bf16.msra.mxu0 0
        %2864 = vmatprep.subr.bf16.mxu0 0
        %2865 = vmatpush1.bf16.msra.mxu0 0
        %2866 = vmatprep.mubr.bf16.mxu0 0
        %2867 = vmatmul.mubr.bf16.gmra.mrb[0].mxu0 %v2770
        %v2868 = vpop.f32.mrb[0].mxu0
        %v2869 = vadd.f32 %v2832, %v2868
        %v2870 = vpop.f32.mrb[0].mxu0
        %v2871 = vpop.f32.mrb[0].mxu0
        %v2872 = vpop.f32.mrb[0].mxu0
        %2873 = vdwg.mxu0
        %v2874 = vmul.f32 %v2869, %v2869
        %v2875 = vmul.f32 %v2869, %v2874
        %v2876 = vmul.f32 %v2875, 0.044715
        %v2877 = vadd.f32 %v2869, %v2876
        %v2878 = vmul.f32 %v2877, 0.7978846
        %v2879 = vtanh.pop %v2878
        %v2880 = vadd.f32 %v2879, 1.0
        %v2881 = vmul.f32 %v2880, 0.5
        %v2882 = vmul.f32 %v2869, %v2881
        %v2883 = vld [vmem:[#allocation28] sm:$0x1]
        %v2884 = vld [vmem:[#allocation29] sm:$0x1]
        %v2885 = vsel %vm1727, %v2882, 0.0
        %2886 = vadd.xlane.f32.xlu0 %v2885
        %v2887 = vpop.xlane.xlu0 %2886
        %v2888 = vmul.f32 %v2887, %v1731
        %v2889 = vsub.f32 %v2882, %v2888
        %v2890 = vmul.f32 %v2889, %v2889
        %v2891 = vsel %vm1727, %v2890, 0.0
        %2892 = vadd.xlane.f32.xlu0 %v2891
        %v2893 = vpop.xlane.xlu0 %2892
        %v2894 = vmul.f32 %v2893, %v1731
        %v2895 = vadd.f32 %v2894, 1e-05
        %v2896 = vrsqrt.pop %v2895
        %v2897 = vmul.f32 %v2889, %v2896
        %v2899 = vlaneseq
        %v2900 = vshrl.u32 %v2899, 7
        %v2901 = vsub.s32 0, %v2900
        %v2902 = vrot.slane %v2883, %v2901
        %v2904 = vmul.f32 %v2897, %v2902
        %v2906 = vlaneseq
        %v2907 = vshrl.u32 %v2906, 7
        %v2908 = vsub.s32 0, %v2907
        %v2909 = vrot.slane %v2884, %v2908
        %v2911 = vadd.f32 %v2904, %v2909
        %v2912 = vld [vmem:[#allocation31] sm:$0x1]
        %v2913 = vld [vmem:[#allocation31 + $0x1] sm:$0x1]
        %v2914 = vld [vmem:[#allocation31 + $0x2] sm:$0x1]
        %v2915 = vld [vmem:[#allocation32] sm:$0x1]
        %v2916 = vlaneseq
        %v2917 = vshrl.u32 %v2916, 7
        %v2919 = vlaneseq
        %v2920 = vshrl.u32 %v2919, 7
        %v2921 = vsub.s32 0, %v2920
        %v2922 = vrot.slane %v2915, %v2921
        %v2924 = vrot.slane %v2911, 7
        %v2925 = vadd.s32 %v2917, 4294967295
        %vm2926 = vcmp.ge.s32.totalorder %v2925, 0
        %vm2927 = vcmp.lt.s32.totalorder %v2925, 8
        %vm2928 = vmand %vm2926, %vm2927
        %v2929 = vsel %vm2928, 1, 0
        %vm2930 = vcmp.eq.s32.totalorder %v2929, 1
        %v2931 = vsel %vm2930, %v2924, 0.0
        %v2933 = vlaneseq
        %v2934 = vshrl.u32 %v2933, 7
        %v2935 = vsub.s32 0, %v2934
        %v2936 = vrot.slane %v2912, %v2935
        %v2938 = vmul.f32 %v2931, %v2936
        %v2939 = vadd.f32 %v2922, %v2938
        %v2941 = vlaneseq
        %v2942 = vshrl.u32 %v2941, 7
        %v2943 = vsub.s32 0, %v2942
        %v2944 = vrot.slane %v2913, %v2943
        %v2946 = vmul.f32 %v2911, %v2944
        %v2947 = vadd.f32 %v2939, %v2946
        %v2948 = vrot.slane %v2911, 1
        %v2949 = vadd.s32 %v2917, 1
        %vm2950 = vcmp.ge.s32.totalorder %v2949, 0
        %vm2951 = vcmp.lt.s32.totalorder %v2949, 8
        %vm2952 = vmand %vm2950, %vm2951
        %v2953 = vsel %vm2952, 1, 0
        %vm2954 = vcmp.eq.s32.totalorder %v2953, 1
        %v2955 = vsel %vm2954, %v2948, 0.0
        %v2957 = vlaneseq
        %v2958 = vshrl.u32 %v2957, 7
        %v2959 = vsub.s32 0, %v2958
        %v2960 = vrot.slane %v2914, %v2959
        %v2962 = vmul.f32 %v2955, %v2960
        %v2963 = vadd.f32 %v2947, %v2962
        %v2964 = vmul.f32 %v2820, %v2963
        %v2965 = vld [vmem:[%s57] sm:$0xff]
        %v2966 = vld [vmem:[%s57 + $0x8] sm:$0xff]
        %v2967 = vld [vmem:[%s57 + $0x10] sm:$0xff]
        %v2968 = vld [vmem:[%s57 + $0x18] sm:$0xff]
        %v2969 = vpack.c.bf16 %v2964, %v2964
        %v2970 = vpack.c.bf16 %v2966, %v2965
        %v2971 = vpack.c.bf16 %v2968, %v2967
        %v2972 = vld [vmem:[#allocation34] sm:$0x1]
        %v2974 = vlaneseq
        %v2975 = vshrl.u32 %v2974, 7
        %v2976 = vsub.s32 0, %v2975
        %v2977 = vrot.slane %v2972, %v2976
        %v2980 = vsel %vm1727, %v2969, 0
        %2982 = vmatprep.subr.bf16.mxu0 0
        %2983 = vmatpush1.bf16.msra.mxu0 %v2970
        %2984 = vmatprep.subr.bf16.mxu0 0
        %2985 = vmatpush1.bf16.msra.mxu0 %v2971
        %2986 = vmatprep.subr.bf16.mxu0 0
        %2987 = vmatpush1.bf16.msra.mxu0 0
        %2988 = vmatprep.subr.bf16.mxu0 0
        %2989 = vmatpush1.bf16.msra.mxu0 0
        %2990 = vmatprep.subr.bf16.mxu0 0
        %2991 = vmatpush1.bf16.msra.mxu0 0
        %2992 = vmatprep.subr.bf16.mxu0 0
        %2993 = vmatpush1.bf16.msra.mxu0 0
        %2994 = vmatprep.subr.bf16.mxu0 0
        %2995 = vmatpush1.bf16.msra.mxu0 0
        %2996 = vmatprep.subr.bf16.mxu0 0
        %2997 = vmatpush1.bf16.msra.mxu0 0
        %2998 = vmatprep.subr.bf16.mxu0 0
        %2999 = vmatpush1.bf16.msra.mxu0 0
        %3000 = vmatprep.subr.bf16.mxu0 0
        %3001 = vmatpush1.bf16.msra.mxu0 0
        %3002 = vmatprep.subr.bf16.mxu0 0
        %3003 = vmatpush1.bf16.msra.mxu0 0
        %3004 = vmatprep.subr.bf16.mxu0 0
        %3005 = vmatpush1.bf16.msra.mxu0 0
        %3006 = vmatprep.subr.bf16.mxu0 0
        %3007 = vmatpush1.bf16.msra.mxu0 0
        %3008 = vmatprep.subr.bf16.mxu0 0
        %3009 = vmatpush1.bf16.msra.mxu0 0
        %3010 = vmatprep.subr.bf16.mxu0 0
        %3011 = vmatpush1.bf16.msra.mxu0 0
        %3012 = vmatprep.subr.bf16.mxu0 0
        %3013 = vmatpush1.bf16.msra.mxu0 0
        %3014 = vmatprep.mubr.bf16.mxu0 0
        %3015 = vmatmul.mubr.bf16.gmra.mrb[0].mxu0 %v2980
        %v3016 = vpop.f32.mrb[0].mxu0
        %v3017 = vadd.f32 %v2977, %v3016
        %v3018 = vpop.f32.mrb[0].mxu0
        %v3019 = vpop.f32.mrb[0].mxu0
        %v3020 = vpop.f32.mrb[0].mxu0
        %3021 = vdwg.mxu0
        %v3022 = vld [vmem:[#allocation35] sm:$0x1]
        %v3023 = vld [vmem:[#allocation35 + $0x1] sm:$0x1]
        %v3024 = vld [vmem:[#allocation35 + $0x2] sm:$0x1]
        %v3025 = vld [vmem:[#allocation37] sm:$0x1]
        %v3027 = vlaneseq
        %v3028 = vshrl.u32 %v3027, 7
        %v3029 = vsub.s32 0, %v3028
        %v3030 = vrot.slane %v3025, %v3029
        %v3032 = vrot.slane %v2738, 7
        %v3033 = vsel %vm2930, %v3032, 0.0
        %v3035 = vlaneseq
        %v3036 = vshrl.u32 %v3035, 7
        %v3037 = vsub.s32 0, %v3036
        %v3038 = vrot.slane %v3022, %v3037
        %v3040 = vmul.f32 %v3033, %v3038
        %v3041 = vadd.f32 %v3030, %v3040
        %v3043 = vlaneseq
        %v3044 = vshrl.u32 %v3043, 7
        %v3045 = vsub.s32 0, %v3044
        %v3046 = vrot.slane %v3023, %v3045
        %v3048 = vmul.f32 %v2738, %v3046
        %v3049 = vadd.f32 %v3041, %v3048
        %v3050 = vrot.slane %v2738, 1
        %v3051 = vsel %vm2954, %v3050, 0.0
        %v3053 = vlaneseq
        %v3054 = vshrl.u32 %v3053, 7
        %v3055 = vsub.s32 0, %v3054
        %v3056 = vrot.slane %v3024, %v3055
        %v3058 = vmul.f32 %v3051, %v3056
        %v3059 = vadd.f32 %v3049, %v3058
        %v3060 = vld [vmem:[#allocation38] sm:$0x1]
        %v3061 = vld [vmem:[#allocation38 + $0x1] sm:$0x1]
        %v3062 = vld [vmem:[#allocation38 + $0x2] sm:$0x1]
        %v3063 = vld [vmem:[#allocation40] sm:$0x1]
        %v3065 = vlaneseq
        %v3066 = vshrl.u32 %v3065, 7
        %v3067 = vsub.s32 0, %v3066
        %v3068 = vrot.slane %v3063, %v3067
        %v3070 = vrot.slane %v3017, 7
        %v3071 = vsel %vm2930, %v3070, 0.0
        %v3073 = vlaneseq
        %v3074 = vshrl.u32 %v3073, 7
        %v3075 = vsub.s32 0, %v3074
        %v3076 = vrot.slane %v3060, %v3075
        %v3078 = vmul.f32 %v3071, %v3076
        %v3079 = vadd.f32 %v3068, %v3078
        %v3081 = vlaneseq
        %v3082 = vshrl.u32 %v3081, 7
        %v3083 = vsub.s32 0, %v3082
        %v3084 = vrot.slane %v3061, %v3083
        %v3086 = vmul.f32 %v3017, %v3084
        %v3087 = vadd.f32 %v3079, %v3086
        %v3088 = vrot.slane %v3017, 1
        %v3089 = vsel %vm2954, %v3088, 0.0
        %v3091 = vlaneseq
        %v3092 = vshrl.u32 %v3091, 7
        %v3093 = vsub.s32 0, %v3092
        %v3094 = vrot.slane %v3062, %v3093
        %v3096 = vmul.f32 %v3089, %v3094
        %v3097 = vadd.f32 %v3087, %v3096
        %v3098 = vadd.f32 %v2738, %v3059
        %v3099 = vld [vmem:[%s69] sm:$0xff]
        %v3100 = vld [vmem:[%s69 + $0x8] sm:$0xff]
        %v3101 = vld [vmem:[%s69 + $0x10] sm:$0xff]
        %v3102 = vld [vmem:[%s69 + $0x18] sm:$0xff]
        %v3103 = vpack.c.bf16 %v3098, %v3098
        %v3104 = vpack.c.bf16 %v3100, %v3099
        %v3105 = vpack.c.bf16 %v3102, %v3101
        %v3106 = vadd.f32 %v3017, %v3097
        %v3107 = vld [vmem:[#allocation41] sm:$0xff]
        %v3108 = vld [vmem:[#allocation41 + $0x8] sm:$0xff]
        %v3109 = vld [vmem:[#allocation41 + $0x10] sm:$0xff]
        %v3110 = vld [vmem:[#allocation41 + $0x18] sm:$0xff]
        %v3111 = vpack.c.bf16 %v3106, %v3106
        %v3112 = vpack.c.bf16 %v3108, %v3107
        %v3113 = vpack.c.bf16 %v3110, %v3109
        %v3115 = vsel %vm1727, %v3111, 0
        %3117 = vmatprep.subr.bf16.mxu0 0
        %3118 = vmatpush1.bf16.msra.mxu0 %v3112
        %3119 = vmatprep.subr.bf16.mxu0 0
        %3120 = vmatpush1.bf16.msra.mxu0 %v3113
        %3121 = vmatprep.subr.bf16.mxu0 0
        %3122 = vmatpush1.bf16.msra.mxu0 0
        %3123 = vmatprep.subr.bf16.mxu0 0
        %3124 = vmatpush1.bf16.msra.mxu0 0
        %3125 = vmatprep.subr.bf16.mxu0 0
        %3126 = vmatpush1.bf16.msra.mxu0 0
        %3127 = vmatprep.subr.bf16.mxu0 0
        %3128 = vmatpush1.bf16.msra.mxu0 0
        %3129 = vmatprep.subr.bf16.mxu0 0
        %3130 = vmatpush1.bf16.msra.mxu0 0
        %3131 = vmatprep.subr.bf16.mxu0 0
        %3132 = vmatpush1.bf16.msra.mxu0 0
        %3133 = vmatprep.subr.bf16.mxu0 0
        %3134 = vmatpush1.bf16.msra.mxu0 0
        %3135 = vmatprep.subr.bf16.mxu0 0
        %3136 = vmatpush1.bf16.msra.mxu0 0
        %3137 = vmatprep.subr.bf16.mxu0 0
        %3138 = vmatpush1.bf16.msra.mxu0 0
        %3139 = vmatprep.subr.bf16.mxu0 0
        %3140 = vmatpush1.bf16.msra.mxu0 0
        %3141 = vmatprep.subr.bf16.mxu0 0
        %3142 = vmatpush1.bf16.msra.mxu0 0
        %3143 = vmatprep.subr.bf16.mxu0 0
        %3144 = vmatpush1.bf16.msra.mxu0 0
        %3145 = vmatprep.subr.bf16.mxu0 0
        %3146 = vmatpush1.bf16.msra.mxu0 0
        %3147 = vmatprep.subr.bf16.mxu0 0
        %3148 = vmatpush1.bf16.msra.mxu0 0
        %3149 = vmatprep.mubr.bf16.mxu0 0
        %3150 = vmatmul.mubr.bf16.gmra.mrb[0].mxu0 %v3115
        %v3151 = vpop.f32.mrb[0].mxu0
        %v3152 = vadd.f32 0.0, %v3151
        %v3153 = vpop.f32.mrb[0].mxu0
        %v3154 = vpop.f32.mrb[0].mxu0
        %v3155 = vpop.f32.mrb[0].mxu0
        %3156 = vdwg.mxu0
        %v3158 = vsel %vm1727, %v3103, 0
        %3160 = vmatprep.subr.bf16.mxu0 0
        %3161 = vmatpush1.bf16.msra.mxu0 %v3104
        %3162 = vmatprep.subr.bf16.mxu0 0
        %3163 = vmatpush1.bf16.msra.mxu0 %v3105
        %3164 = vmatprep.subr.bf16.mxu0 0
        %3165 = vmatpush1.bf16.msra.mxu0 0
        %3166 = vmatprep.subr.bf16.mxu0 0
        %3167 = vmatpush1.bf16.msra.mxu0 0
        %3168 = vmatprep.subr.bf16.mxu0 0
        %3169 = vmatpush1.bf16.msra.mxu0 0
        %3170 = vmatprep.subr.bf16.mxu0 0
        %3171 = vmatpush1.bf16.msra.mxu0 0
        %3172 = vmatprep.subr.bf16.mxu0 0
        %3173 = vmatpush1.bf16.msra.mxu0 0
        %3174 = vmatprep.subr.bf16.mxu0 0
        %3175 = vmatpush1.bf16.msra.mxu0 0
        %3176 = vmatprep.subr.bf16.mxu0 0
        %3177 = vmatpush1.bf16.msra.mxu0 0
        %3178 = vmatprep.subr.bf16.mxu0 0
        %3179 = vmatpush1.bf16.msra.mxu0 0
        %3180 = vmatprep.subr.bf16.mxu0 0
        %3181 = vmatpush1.bf16.msra.mxu0 0
        %3182 = vmatprep.subr.bf16.mxu0 0
        %3183 = vmatpush1.bf16.msra.mxu0 0
        %3184 = vmatprep.subr.bf16.mxu0 0
        %3185 = vmatpush1.bf16.msra.mxu0 0
        %3186 = vmatprep.subr.bf16.mxu0 0
        %3187 = vmatpush1.bf16.msra.mxu0 0
        %3188 = vmatprep.subr.bf16.mxu0 0
        %3189 = vmatpush1.bf16.msra.mxu0 0
        %3190 = vmatprep.subr.bf16.mxu0 0
        %3191 = vmatpush1.bf16.msra.mxu0 0
        %3192 = vmatprep.mubr.bf16.mxu0 0
        %3193 = vmatmul.mubr.bf16.gmra.mrb[0].mxu0 %v3158
        %v3194 = vpop.f32.mrb[0].mxu0
        %v3195 = vadd.f32 %v3152, %v3194
        %v3196 = vpop.f32.mrb[0].mxu0
        %v3197 = vpop.f32.mrb[0].mxu0
        %v3198 = vpop.f32.mrb[0].mxu0
        %3199 = vdwg.mxu0
        %v3200 = vld [vmem:[%s73] sm:$0x1]
        %v3202 = vlaneseq
        %v3203 = vshrl.u32 %v3202, 7
        %v3204 = vsub.s32 0, %v3203
        %v3205 = vrot.slane %v3200, %v3204
        %v3207 = vadd.f32 %v3195, %v3205
        %v3208 = vadd.f32 %v1879, %v3207
        %v3209 = vld [vmem:[%s75] sm:$0x1]
        %v3210 = vld [vmem:[%s77] sm:$0x1]
        %v3211 = vsel %vm1727, %v3208, 0.0
        %3212 = vadd.xlane.f32.xlu0 %v3211
        %v3213 = vpop.xlane.xlu0 %3212
        %v3214 = vmul.f32 %v3213, %v1731
        %v3215 = vsub.f32 %v3208, %v3214
        %v3216 = vmul.f32 %v3215, %v3215
        %v3217 = vsel %vm1727, %v3216, 0.0
        %3218 = vadd.xlane.f32.xlu0 %v3217
        %v3219 = vpop.xlane.xlu0 %3218
        %v3220 = vmul.f32 %v3219, %v1731
        %v3221 = vadd.f32 %v3220, 1e-05
        %v3222 = vrsqrt.pop %v3221
        %v3223 = vmul.f32 %v3215, %v3222
        %v3225 = vlaneseq
        %v3226 = vshrl.u32 %v3225, 7
        %v3227 = vsub.s32 0, %v3226
        %v3228 = vrot.slane %v3209, %v3227
        %v3230 = vmul.f32 %v3223, %v3228
        %v3232 = vlaneseq
        %v3233 = vshrl.u32 %v3232, 7
        %v3234 = vsub.s32 0, %v3233
        %v3235 = vrot.slane %v3210, %v3234
        %v3237 = vadd.f32 %v3230, %v3235
        %v3238 = vld [vmem:[#allocation43] sm:$0xff]
        %v3239 = vld [vmem:[#allocation43 + $0x8] sm:$0xff]
        %v3240 = vld [vmem:[#allocation43 + $0x10] sm:$0xff]
        %v3241 = vld [vmem:[#allocation43 + $0x18] sm:$0xff]
        %v3242 = vpack.c.bf16 %v3237, %v3237
        %v3243 = vpack.c.bf16 %v3239, %v3238
        %v3244 = vpack.c.bf16 %v3241, %v3240
        %v3245 = vld [vmem:[%s81] sm:$0x1]
        %v3247 = vlaneseq
        %v3248 = vshrl.u32 %v3247, 7
        %v3249 = vsub.s32 0, %v3248
        %v3250 = vrot.slane %v3245, %v3249
        %v3253 = vsel %vm1727, %v3242, 0
        %3255 = vmatprep.subr.bf16.mxu0 0
        %3256 = vmatpush1.bf16.msra.mxu0 %v3243
        %3257 = vmatprep.subr.bf16.mxu0 0
        %3258 = vmatpush1.bf16.msra.mxu0 %v3244
        %3259 = vmatprep.subr.bf16.mxu0 0
        %3260 = vmatpush1.bf16.msra.mxu0 0
        %3261 = vmatprep.subr.bf16.mxu0 0
        %3262 = vmatpush1.bf16.msra.mxu0 0
        %3263 = vmatprep.subr.bf16.mxu0 0
        %3264 = vmatpush1.bf16.msra.mxu0 0
        %3265 = vmatprep.subr.bf16.mxu0 0
        %3266 = vmatpush1.bf16.msra.mxu0 0
        %3267 = vmatprep.subr.bf16.mxu0 0
        %3268 = vmatpush1.bf16.msra.mxu0 0
        %3269 = vmatprep.subr.bf16.mxu0 0
        %3270 = vmatpush1.bf16.msra.mxu0 0
        %3271 = vmatprep.subr.bf16.mxu0 0
        %3272 = vmatpush1.bf16.msra.mxu0 0
        %3273 = vmatprep.subr.bf16.mxu0 0
        %3274 = vmatpush1.bf16.msra.mxu0 0
        %3275 = vmatprep.subr.bf16.mxu0 0
        %3276 = vmatpush1.bf16.msra.mxu0 0
        %3277 = vmatprep.subr.bf16.mxu0 0
        %3278 = vmatpush1.bf16.msra.mxu0 0
        %3279 = vmatprep.subr.bf16.mxu0 0
        %3280 = vmatpush1.bf16.msra.mxu0 0
        %3281 = vmatprep.subr.bf16.mxu0 0
        %3282 = vmatpush1.bf16.msra.mxu0 0
        %3283 = vmatprep.subr.bf16.mxu0 0
        %3284 = vmatpush1.bf16.msra.mxu0 0
        %3285 = vmatprep.subr.bf16.mxu0 0
        %3286 = vmatpush1.bf16.msra.mxu0 0
        %3287 = vmatprep.mubr.bf16.mxu0 0
        %3288 = vmatmul.mubr.bf16.gmra.mrb[0].mxu0 %v3253
        %v3289 = vpop.f32.mrb[0].mxu0
        %v3290 = vadd.f32 %v3250, %v3289
        %v3291 = vpop.f32.mrb[0].mxu0
        %v3292 = vpop.f32.mrb[0].mxu0
        %v3293 = vpop.f32.mrb[0].mxu0
        %3294 = vdwg.mxu0
        %v3295 = vmax.f32 %v3290, 0.0
        %v3296 = vld [vmem:[%s83] sm:$0xff]
        %v3297 = vld [vmem:[%s83 + $0x8] sm:$0xff]
        %v3298 = vld [vmem:[%s83 + $0x10] sm:$0xff]
        %v3299 = vld [vmem:[%s83 + $0x18] sm:$0xff]
        %v3300 = vld [vmem:[%s83 + $0x20] sm:$0xff]
        %v3301 = vld [vmem:[%s83 + $0x28] sm:$0xff]
        %v3302 = vld [vmem:[%s83 + $0x30] sm:$0xff]
        %v3303 = vld [vmem:[%s83 + $0x38] sm:$0xff]
        %v3304 = vpack.c.bf16 %v3295, %v3295
        %v3305 = vpack.c.bf16 %v3297, %v3296
        %v3306 = vpack.c.bf16 %v3299, %v3298
        %v3307 = vpack.c.bf16 %v3301, %v3300
        %v3308 = vpack.c.bf16 %v3303, %v3302
        %v3309 = vld [vmem:[%s85] sm:$0x1]
        %v3311 = vlaneseq
        %v3312 = vshrl.u32 %v3311, 7
        %v3313 = vsub.s32 0, %v3312
        %v3314 = vrot.slane %v3309, %v3313
        %v3317 = vsel %vm1834, %v3304, 0
        %3319 = vmatprep.subr.bf16.mxu0 0
        %3320 = vmatpush1.bf16.msra.mxu0 %v3305
        %3321 = vmatprep.subr.bf16.mxu0 0
        %3322 = vmatpush1.bf16.msra.mxu0 %v3306
        %3323 = vmatprep.subr.bf16.mxu0 0
        %3324 = vmatpush1.bf16.msra.mxu0 %v3307
        %3325 = vmatprep.subr.bf16.mxu0 0
        %3326 = vmatpush1.bf16.msra.mxu0 %v3308
        %3327 = vmatprep.subr.bf16.mxu0 0
        %3328 = vmatpush1.bf16.msra.mxu0 0
        %3329 = vmatprep.subr.bf16.mxu0 0
        %3330 = vmatpush1.bf16.msra.mxu0 0
        %3331 = vmatprep.subr.bf16.mxu0 0
        %3332 = vmatpush1.bf16.msra.mxu0 0
        %3333 = vmatprep.subr.bf16.mxu0 0
        %3334 = vmatpush1.bf16.msra.mxu0 0
        %3335 = vmatprep.subr.bf16.mxu0 0
        %3336 = vmatpush1.bf16.msra.mxu0 0
        %3337 = vmatprep.subr.bf16.mxu0 0
        %3338 = vmatpush1.bf16.msra.mxu0 0
        %3339 = vmatprep.subr.bf16.mxu0 0
        %3340 = vmatpush1.bf16.msra.mxu0 0
        %3341 = vmatprep.subr.bf16.mxu0 0
        %3342 = vmatpush1.bf16.msra.mxu0 0
        %3343 = vmatprep.subr.bf16.mxu0 0
        %3344 = vmatpush1.bf16.msra.mxu0 0
        %3345 = vmatprep.subr.bf16.mxu0 0
        %3346 = vmatpush1.bf16.msra.mxu0 0
        %3347 = vmatprep.subr.bf16.mxu0 0
        %3348 = vmatpush1.bf16.msra.mxu0 0
        %3349 = vmatprep.subr.bf16.mxu0 0
        %3350 = vmatpush1.bf16.msra.mxu0 0
        %3351 = vmatprep.mubr.bf16.mxu0 0
        %3352 = vmatmul.mubr.bf16.gmra.mrb[0].mxu0 %v3317
        %v3353 = vpop.f32.mrb[0].mxu0
        %v3354 = vadd.f32 %v3314, %v3353
        %v3355 = vpop.f32.mrb[0].mxu0
        %v3356 = vpop.f32.mrb[0].mxu0
        %v3357 = vpop.f32.mrb[0].mxu0
        %3358 = vdwg.mxu0
        %v3359 = vmul.f32 %v3354, 0.5
        %v3360 = vadd.f32 %v3208, %v3359
        %v3361 = vld [vmem:[%s87] sm:$0x1]
        %v3362 = vld [vmem:[%s89] sm:$0x1]
        %v3363 = vsel %vm1727, %v3360, 0.0
        %3364 = vadd.xlane.f32.xlu0 %v3363
        %v3365 = vpop.xlane.xlu0 %3364
        %v3366 = vmul.f32 %v3365, %v1731
        %v3367 = vsub.f32 %v3360, %v3366
        %v3368 = vmul.f32 %v3367, %v3367
        %v3369 = vsel %vm1727, %v3368, 0.0
        %3370 = vadd.xlane.f32.xlu0 %v3369
        %v3371 = vpop.xlane.xlu0 %3370
        %v3372 = vmul.f32 %v3371, %v1731
        %v3373 = vadd.f32 %v3372, 1e-05
        %v3374 = vrsqrt.pop %v3373
        %v3375 = vmul.f32 %v3367, %v3374
        %v3377 = vlaneseq
        %v3378 = vshrl.u32 %v3377, 7
        %v3379 = vsub.s32 0, %v3378
        %v3380 = vrot.slane %v3361, %v3379
        %v3382 = vmul.f32 %v3375, %v3380
        %v3384 = vlaneseq
        %v3385 = vshrl.u32 %v3384, 7
        %v3386 = vsub.s32 0, %v3385
        %v3387 = vrot.slane %v3362, %v3386
        %v3389 = vadd.f32 %v3382, %v3387
        %3390 = vst.msk [vmem:[%s1721] sm:$0xff] %vm1727, %v3389
        %s3391 = sand.u32 %s1086, 1
        %s3392 = scalar_lea.sflag [#allocation4], %s3391
        %s3393 = sand.u32 %s1086, 1
        %s3394 = smul.addr %s3393, 8
        %s3395 = scalar_lea.vmem [#allocation44], %s3394
        // Predicated region
        $region309: #{tpu_custom_call.1} parent=199 // pred_check
          %p3396 = pneg %p1096
        $region310: #{tpu_custom_call.1} parent=199 // pred_check_branch
          %3398 = sbr.rel (%p3396) target = $region312
        $region311: #{tpu_custom_call.1} parent=199 // pred_region
          %s3400 = ssub.s32 128, 128
          %3401 = vsyncadd %s3392, %s3400
          %s3402 = smul.addr %s123, 128
          %s3403 = scalar_lea.hbm %s91, %s3402
          %s3405 = sshll.u32 %s3395, 4
          %s3406 = int_to_ptr.vmem [resolvable:$true] %s3405
          %3408 = dma.vmem_to_hbm [thread:$0]  %s3406, 128, %s3403, %s3392
        $region312: #{tpu_custom_call.1} parent=199 // pred_fallthru
          _
      $region200: #{tpu_custom_call.1} parent=5 // pred_fallthru
        _
      %p3409 = scmp.le.s32.totalorder 2, %s118
      // Predicated region
      $region313: #{tpu_custom_call.1} parent=5 // pred_check
        %p3410 = pneg %p3409
      $region314: #{tpu_custom_call.1} parent=5 // pred_check_branch
        %3412 = sbr.rel (%p3410) target = $region316
      $region315: #{tpu_custom_call.1} parent=5 // pred_region
        %s3413 = ssub.s32 %s118, 2
        // Predicated region
        $region317: #{tpu_custom_call.1} parent=315 // pred_check
          %p3414 = pneg %p1102
        $region318: #{tpu_custom_call.1} parent=315 // pred_check_branch
          %3416 = sbr.rel (%p3414) target = $region320
        $region319: #{tpu_custom_call.1} parent=315 // pred_region
          %s3417 = sand.u32 %s1087, 1
          %s3418 = scalar_lea.sflag [#allocation4], %s3417
          %s3419 = sand.u32 %s1087, 1
          %s3420 = smul.addr %s3419, 8
          %s3421 = scalar_lea.vmem [#allocation44], %s3420
          %3422 = dma.done %s3418, 128
        $region320: #{tpu_custom_call.1} parent=315 // pred_fallthru
          _
      $region316: #{tpu_custom_call.1} parent=5 // pred_fallthru
        _
    $region6: #{tpu_custom_call.1} parent=1 // loop_footer
      %s122 = sadd.s32 1, %s118
    $region7: #{tpu_custom_call.1} parent=1 // loop_footer_branch
      %117 = sbr.rel target = $region3
    $region8: #{tpu_custom_call.1} parent=1 // loop_exit
      _
    %3423 = vsyncpa [#allocation3], 1
    %s3424 = scalar_lea.sflag [#allocation3], 1
    %3425 = vsyncpa %s3424, 1
    %3426 = vsyncpa [#allocation6], 1
    %s3427 = scalar_lea.sflag [#allocation6], 1
    %3428 = vsyncpa %s3427, 1
    %3429 = vsyncpa [#allocation9], 1
    %3430 = vsyncpa [#allocation12], 1
    %3431 = vsyncpa [#allocation15], 1
    %3432 = vsyncpa [#allocation18], 1
    %3433 = vsyncpa [#allocation21], 1
    %3434 = vsyncpa [#allocation24], 1
    %3435 = vsyncpa [#allocation27], 1
    %3436 = vsyncpa [#allocation30], 1
    %3437 = vsyncpa [#allocation33], 1
    %3438 = vsyncpa [#allocation36], 1
    %3439 = vsyncpa [#allocation39], 1
    %3440 = vsyncpa [#allocation42], 1
    %3441 = vsyncpa [#allocation4], 1
    %s3442 = scalar_lea.sflag [#allocation4], 1
    %3443 = vsyncpa %s3442, 1

</llo_original>
